<compile_context>
chip_gen: v7x
topology: tpu7x:2x2x1
jax: 0.10.0
libtpu: 0.0.40
codegen_flags: <defaults>
</compile_context>

<pallas_src>
import functools

import jax
import jax.numpy as jnp
from jax.experimental import pallas as pl
from jax.experimental.pallas import tpu as pltpu


# ----------------------------------------------------------------------------
# Tunables (generation-aware, safe fallbacks)
# ----------------------------------------------------------------------------
def _pick_vmem_limit():
    try:
        cap = int(pltpu.get_tpu_info().vmem_capacity_bytes)
        if cap >= 128 * 1024 * 1024:          # v5e / v6e
            return 64 * 1024 * 1024
        return max(16 * 1024 * 1024,          # v7x-class (64 MiB per core)
                   min(40 * 1024 * 1024, cap - 8 * 1024 * 1024))
    except Exception:
        return 32 * 1024 * 1024               # known-good conservative default


_MM_TILE_M = 256
_VMEM_LIMIT = _pick_vmem_limit()


def _round_up(x, m):
    return ((x + m - 1) // m) * m


# ----------------------------------------------------------------------------
# In-kernel math helpers
# ----------------------------------------------------------------------------
def _gelu(x):
    # TODO(synk): PyTorch nn.GELU defaults to the exact erf form; this is the
    # tanh approximation (EUP tanh), |abs err| < ~1e-3.
    c = 0.7978845608028654  # sqrt(2/pi)
    return 0.5 * x * (1.0 + jnp.tanh(c * (x + 0.044715 * x * x * x)))


def _emit_stats(y, s1_ref, s2_ref, *, tm, m_valid, needs_mask):
    # Per-tile channel sums / sums-of-squares for the downstream BatchNorm.
    if needs_mask:
        last = pl.program_id(0) == pl.num_programs(0) - 1

        @pl.when(jnp.logical_not(last))
        def _():
            s1_ref[0] = jnp.sum(y, axis=0, keepdims=True)
            s2_ref[0] = jnp.sum(y * y, axis=0, keepdims=True)

        @pl.when(last)
        def _():
            row = pl.program_id(0) * tm + jax.lax.broadcasted_iota(
                jnp.int32, y.shape, 0)
            ys = jnp.where(row < m_valid, y, 0.0)
            s1_ref[0] = jnp.sum(ys, axis=0, keepdims=True)
            s2_ref[0] = jnp.sum(ys * ys, axis=0, keepdims=True)
    else:
        s1_ref[0] = jnp.sum(y, axis=0, keepdims=True)
        s2_ref[0] = jnp.sum(y * y, axis=0, keepdims=True)


# ----------------------------------------------------------------------------
# Pallas kernels
# ----------------------------------------------------------------------------
def _matmul_gelu_stats_kernel(*refs, fused, tm, m_valid, needs_mask):
    # fused=False : a_ref(bf16), w_ref(bf16), b_ref(f32) -> GELU(a@w+b)
    # fused=True  : z_ref, u_ref (bf16), cz/cu/d (per-channel f32 affines),
    #               w_ref(bf16), b_ref(f32)
    #               a = z*cz + u*cu + d   (bn1-apply + residual, fused prologue)
    if fused:
        z_ref, u_ref, cz_ref, cu_ref, d_ref, w_ref, b_ref, y_ref, s1_ref, s2_ref = refs
        a_f32 = (z_ref[...].astype(jnp.float32) * cz_ref[...] +
                 u_ref[...].astype(jnp.float32) * cu_ref[...] + d_ref[...])
        a = a_f32.astype(jnp.bfloat16)
    else:
        a_ref, w_ref, b_ref, y_ref, s1_ref, s2_ref = refs
        a = a_ref[...]
    acc = jnp.dot(a, w_ref[...], preferred_element_type=jnp.float32)
    y = _gelu(acc + b_ref[...])
    y_ref[...] = y.astype(y_ref.dtype)
    _emit_stats(y, s1_ref, s2_ref, tm=tm, m_valid=m_valid, needs_mask=needs_mask)


def _dwconv_gelu_stats_kernel(x_ref, w_ref, b_ref, y_ref, s1_ref, s2_ref,
                              xpad_ref, *, K, H, W):
    # Depthwise "same" conv + GELU on one image.  The incoming BN affine is
    # already folded into (w_ref, b_ref) by the wrapper.  The zero halo is
    # built in VMEM scratch; only the thin border strips are zeroed each step
    # (interior is fully overwritten, so no full-scratch zero-fill).
    padh = (K - 1) // 2
    Hp2, Wp2 = H + 2 * padh, W + 2 * padh
    C = xpad_ref.shape[-1]
    if padh > 0:
        xpad_ref[pl.ds(0, padh), :, :] = jnp.zeros((padh, Wp2, C), jnp.float32)
        xpad_ref[pl.ds(padh + H, padh), :, :] = jnp.zeros((padh, Wp2, C), jnp.float32)
        xpad_ref[:, pl.ds(0, padh), :] = jnp.zeros((Hp2, padh, C), jnp.float32)
        xpad_ref[:, pl.ds(padh + W, padh), :] = jnp.zeros((Hp2, padh, C), jnp.float32)
    xpad_ref[pl.ds(padh, H), pl.ds(padh, W), :] = x_ref[0].astype(jnp.float32)

    w = w_ref[...]
    acc = jnp.zeros((H, W, C), jnp.float32)
    # One sublane (W-axis) shift per kw, reused across all kh (K instead of K*K
    # unaligned sublane-offset accesses).
    for kw in range(K):
        col = xpad_ref[:, pl.ds(kw, W), :]           # (Hp2, W, C)
        for kh in range(K):
            tap = kh * K + kw
            acc = acc + col[kh:kh + H, :, :] * w[tap:tap + 1, :]
    y = _gelu(acc + b_ref[...])
    y_ref[0] = y.astype(y_ref.dtype)
    s1_ref[0] = jnp.sum(jnp.sum(y, axis=0), axis=0, keepdims=True)
    s2_ref[0] = jnp.sum(jnp.sum(y * y, axis=0), axis=0, keepdims=True)


def _pool_linear_kernel(x_ref, c_ref, d_ref, w_ref, b_ref, o_ref):
    # AdaptiveAvgPool2d((1,1)) of the *normalized* activation (pending BN
    # affine applied to the pooled mean — exact, since the pool is linear),
    # then Flatten + the 4 linear heads stacked along N.
    pooled = jnp.mean(x_ref[0].astype(jnp.float32), axis=0, keepdims=True)   # (1, C)
    pooled = pooled * c_ref[...] + d_ref[...]
    p8 = jnp.broadcast_to(pooled, (8, pooled.shape[1]))       # aligned MXU tile
    out = jnp.dot(p8, w_ref[...], preferred_element_type=jnp.float32) + b_ref[...]
    o_ref[0] = out[0:1, :]


# ----------------------------------------------------------------------------
# pallas_call wrappers
# ----------------------------------------------------------------------------
def matmul_gelu_stats(a_bf16, w_bf16, b, *, tm=_MM_TILE_M):
    """y = GELU(a @ w + b) (bf16 out) + per-channel BN partial stats (f32)."""
    M, Kd = a_bf16.shape
    N = w_bf16.shape[1]
    tm = min(tm, _round_up(M, 16))
    M_pad = _round_up(M, tm)
    if M_pad != M:
        a_bf16 = jnp.pad(a_bf16, ((0, M_pad - M), (0, 0)))
    G = M_pad // tm
    kernel = functools.partial(_matmul_gelu_stats_kernel, fused=False, tm=tm,
                               m_valid=M, needs_mask=(M_pad != M))
    y, s1, s2 = pl.pallas_call(
        kernel,
        out_shape=(jax.ShapeDtypeStruct((M_pad, N), jnp.bfloat16),
                   jax.ShapeDtypeStruct((G, 1, N), jnp.float32),
                   jax.ShapeDtypeStruct((G, 1, N), jnp.float32)),
        grid=(G,),
        in_specs=[pl.BlockSpec((tm, Kd), lambda i: (i, 0)),
                  pl.BlockSpec((Kd, N), lambda i: (0, 0)),
                  pl.BlockSpec((1, N), lambda i: (0, 0))],
        out_specs=(pl.BlockSpec((tm, N), lambda i: (i, 0)),
                   pl.BlockSpec((1, 1, N), lambda i: (i, 0, 0)),
                   pl.BlockSpec((1, 1, N), lambda i: (i, 0, 0))),
        compiler_params=pltpu.CompilerParams(
            dimension_semantics=("parallel",), vmem_limit_bytes=_VMEM_LIMIT),
    )(a_bf16, w_bf16, b.reshape(1, N))
    if M_pad != M:
        y = y[:M]
    return y, jnp.sum(s1, axis=0), jnp.sum(s2, axis=0)


def fused_pw_matmul(z_bf16, u_bf16, scale_z, scale_u, shift, w_bf16, b,
                    *, tm=_MM_TILE_M):
    """v = GELU((z*scale_z + u*scale_u + shift) @ w + b)  [bn1 + residual fused]."""
    M, C = z_bf16.shape
    N = w_bf16.shape[1]
    tm = min(tm, _round_up(M, 16))
    M_pad = _round_up(M, tm)
    if M_pad != M:
        z_bf16 = jnp.pad(z_bf16, ((0, M_pad - M), (0, 0)))
        u_bf16 = jnp.pad(u_bf16, ((0, M_pad - M), (0, 0)))
    G = M_pad // tm
    kernel = functools.partial(_matmul_gelu_stats_kernel, fused=True, tm=tm,
                               m_valid=M, needs_mask=(M_pad != M))
    y, s1, s2 = pl.pallas_call(
        kernel,
        out_shape=(jax.ShapeDtypeStruct((M_pad, N), jnp.bfloat16),
                   jax.ShapeDtypeStruct((G, 1, N), jnp.float32),
                   jax.ShapeDtypeStruct((G, 1, N), jnp.float32)),
        grid=(G,),
        in_specs=[pl.BlockSpec((tm, C), lambda i: (i, 0)),
                  pl.BlockSpec((tm, C), lambda i: (i, 0)),
                  pl.BlockSpec((1, C), lambda i: (0, 0)),
                  pl.BlockSpec((1, C), lambda i: (0, 0)),
                  pl.BlockSpec((1, C), lambda i: (0, 0)),
                  pl.BlockSpec((C, N), lambda i: (0, 0)),
                  pl.BlockSpec((1, N), lambda i: (0, 0))],
        out_specs=(pl.BlockSpec((tm, N), lambda i: (i, 0)),
                   pl.BlockSpec((1, 1, N), lambda i: (i, 0, 0)),
                   pl.BlockSpec((1, 1, N), lambda i: (i, 0, 0))),
        compiler_params=pltpu.CompilerParams(
            dimension_semantics=("parallel",), vmem_limit_bytes=_VMEM_LIMIT),
    )(z_bf16, u_bf16, scale_z.reshape(1, C), scale_u.reshape(1, C),
      shift.reshape(1, C), w_bf16, b.reshape(1, N))
    if M_pad != M:
        y = y[:M]
    return y, jnp.sum(s1, axis=0), jnp.sum(s2, axis=0)


def dwconv_gelu_stats(x_nhwc_bf16, w_dw, b_dw, K):
    """Depthwise 'same' conv + GELU (bf16 out) + per-channel BN partial stats."""
    B, H, W, C = x_nhwc_bf16.shape
    padh = (K - 1) // 2
    kernel = functools.partial(_dwconv_gelu_stats_kernel, K=K, H=H, W=W)
    y, s1, s2 = pl.pallas_call(
        kernel,
        out_shape=(jax.ShapeDtypeStruct((B, H, W, C), jnp.bfloat16),
                   jax.ShapeDtypeStruct((B, 1, C), jnp.float32),
                   jax.ShapeDtypeStruct((B, 1, C), jnp.float32)),
        grid=(B,),
        in_specs=[pl.BlockSpec((1, H, W, C), lambda b: (b, 0, 0, 0)),
                  pl.BlockSpec((K * K, C), lambda b: (0, 0)),
                  pl.BlockSpec((1, C), lambda b: (0, 0))],
        out_specs=(pl.BlockSpec((1, H, W, C), lambda b: (b, 0, 0, 0)),
                   pl.BlockSpec((1, 1, C), lambda b: (b, 0, 0)),
                   pl.BlockSpec((1, 1, C), lambda b: (b, 0, 0))),
        scratch_shapes=[pltpu.VMEM((H + 2 * padh, W + 2 * padh, C), jnp.float32)],
        compiler_params=pltpu.CompilerParams(
            dimension_semantics=("parallel",), vmem_limit_bytes=_VMEM_LIMIT),
    )(x_nhwc_bf16, w_dw, b_dw.reshape(1, C))
    return y, jnp.sum(s1, axis=0), jnp.sum(s2, axis=0)


def pool_linear(x_nhwc_bf16, scale, shift, w, b):
    """Global average pool (with pending BN affine) fused with the 4 heads."""
    B, H, W, C = x_nhwc_bf16.shape
    Nout = w.shape[1]
    x3 = x_nhwc_bf16.reshape(B, H * W, C)
    out = pl.pallas_call(
        _pool_linear_kernel,
        out_shape=jax.ShapeDtypeStruct((B, 1, Nout), jnp.float32),
        grid=(B,),
        in_specs=[pl.BlockSpec((1, H * W, C), lambda i: (i, 0, 0)),
                  pl.BlockSpec((1, C), lambda i: (0, 0)),
                  pl.BlockSpec((1, C), lambda i: (0, 0)),
                  pl.BlockSpec((C, Nout), lambda i: (0, 0)),
                  pl.BlockSpec((1, Nout), lambda i: (0, 0))],
        out_specs=pl.BlockSpec((1, 1, Nout), lambda i: (i, 0, 0)),
        compiler_params=pltpu.CompilerParams(
            dimension_semantics=("parallel",), vmem_limit_bytes=_VMEM_LIMIT),
    )(x3, scale.reshape(1, C), shift.reshape(1, C), w, b.reshape(1, Nout))
    return out.reshape(B, Nout)


# ----------------------------------------------------------------------------
# BN affine from batch statistics (tiny per-channel JAX glue)
# ----------------------------------------------------------------------------
def _bn_affine(s1, s2, m, gamma, beta, *, fwt=False, eps=1e-5, fwt_eps=1e-5):
    # Train-mode BatchNorm2d: batch statistics, biased variance.
    s1 = s1.reshape(-1)
    s2 = s2.reshape(-1)
    mean = s1 / float(m)
    var = jnp.maximum(s2 / float(m) - mean * mean, 0.0)
    scale = gamma * jax.lax.rsqrt(var + eps)
    shift = beta - mean * scale
    if fwt:
        # FWT = train-mode BN with weight=1, bias=0 on top of this BN:
        # batch mean of the BN output = beta, batch var = g^2*var/(var+eps),
        # so it folds exactly into the affine.
        var_u = (gamma * gamma) * var / (var + eps)
        inv = jax.lax.rsqrt(var_u + fwt_eps)
        scale = scale * inv
        shift = (shift - beta) * inv
    return scale, shift


# ----------------------------------------------------------------------------
# ConvMixerAdapt forward (param plumbing in plain JAX, compute in Pallas)
# ----------------------------------------------------------------------------
def convmixer_adapt_forward(x_nchw, params, *, dim, K, patch_size, n_classes,
                            adapt=False):
    B, Cin, Himg, Wimg = x_nchw.shape
    p = patch_size
    Hp, Wp = Himg // p, Wimg // p
    M = B * Hp * Wp

    # patch_embed: Conv2d(3, dim, kernel=p, stride=p) == non-overlapping patch matmul
    patches = (x_nchw.reshape(B, Cin, Hp, p, Wp, p)
               .transpose(0, 2, 4, 1, 3, 5)                 # (B, Hp, Wp, Cin, p, p)
               .reshape(M, Cin * p * p))
    Kd = Cin * p * p
    Kd_pad = _round_up(Kd, 128)                             # lane-align contraction dim
    pe_w = params["pe_w"].reshape(dim, Kd).T                # (Kd, dim)
    if Kd_pad != Kd:
        patches = jnp.pad(patches, ((0, 0), (0, Kd_pad - Kd)))
        pe_w = jnp.pad(pe_w, ((0, Kd_pad - Kd), (0, 0)))
    u, s1, s2 = matmul_gelu_stats(patches.astype(jnp.bfloat16),
                                  pe_w.astype(jnp.bfloat16), params["pe_b"])
    # pending affine of self.norm (applied by the next consumer, never materialized)
    scale_in, shift_in = _bn_affine(s1, s2, M, params["norm_g"], params["norm_b"])

    for blk in params["blocks"]:
        u4 = u.reshape(B, Hp, Wp, dim)
        # Fold the pending per-channel BN affine into the depthwise conv:
        #   dwconv(x*s + t) = s*dwconv(x) + t*sum_taps(w) + b   (per channel)
        dw_w = blk["dw_w"] * scale_in[None, :]
        dw_b = blk["dw_b"] + shift_in * jnp.sum(blk["dw_w"], axis=0)
        z4, t1, t2 = dwconv_gelu_stats(u4, dw_w, dw_b, K)        # conv1 + GELU
        scale1, shift1 = _bn_affine(t1, t2, M, blk["bn1_g"], blk["bn1_b"])
        z = z4.reshape(M, dim)
        # conv2 (1x1) + GELU with bn1-apply + residual fused into the prologue:
        #   a = bn1(z) + (u*scale_in + shift_in)
        v, r1, r2 = fused_pw_matmul(z, u, scale1, scale_in, shift1 + shift_in,
                                    blk["pw_w"].astype(jnp.bfloat16), blk["pw_b"])
        scale_in, shift_in = _bn_affine(r1, r2, M, blk["bn2_g"], blk["bn2_b"],
                                        fwt=adapt)               # bn2 (+FWT fold)
        u = v

    # pool (applies the pending affine to the pooled mean) + flatten + 4 heads
    logits = pool_linear(u.reshape(B, Hp, Wp, dim), scale_in, shift_in,
                         params["lin_w"], params["lin_b"])
    return tuple(logits[:, i * n_classes:(i + 1) * n_classes] for i in range(4))


def init_params(key, *, dim, depth, K, patch_size, n_classes, in_ch=3):
    cnt = [0]

    def nk(shape, s=0.1):
        cnt[0] += 1
        return s * jax.random.normal(jax.random.fold_in(key, cnt[0]), shape, jnp.float32)

    params = {
        "pe_w": nk((dim, in_ch, patch_size, patch_size)),
        "pe_b": nk((dim,)),
        "norm_g": 1.0 + nk((dim,)),
        "norm_b": nk((dim,)),
        "blocks": [],
    }
    for _ in range(depth):
        dw_w = nk((dim, 1, K, K))                           # PyTorch depthwise weight
        pw_w = nk((dim, dim, 1, 1))                         # PyTorch 1x1 conv weight
        params["blocks"].append({
            "dw_w": dw_w.reshape(dim, K * K).T,             # (K*K, dim)
            "dw_b": nk((dim,)),
            "bn1_g": 1.0 + nk((dim,)),
            "bn1_b": nk((dim,)),
            "pw_w": pw_w.reshape(dim, dim).T,               # (dim_in, dim_out)
            "pw_b": nk((dim,)),
            "bn2_g": 1.0 + nk((dim,)),
            "bn2_b": nk((dim,)),
        })
    # get_liner: 4 heads stacked into one matmul, split after
    lin_w = [nk((n_classes, dim)) for _ in range(4)]
    lin_b = [nk((n_classes,)) for _ in range(4)]
    params["lin_w"] = jnp.concatenate([w.T for w in lin_w], axis=1)   # (dim, 4*n_classes)
    params["lin_b"] = jnp.concatenate(lin_b, axis=0)                  # (4*n_classes,)
    return params


if __name__ == "__main__":
    # ConvMixerAdapt(dim=128, depth=2, img_size=16, kernel_size=3, patch_size=2,
    #                n_classes=8, adapt=True), batch=4.
    # (batch=2 is avoided: the reference AdaptBlock's `len(x) == 2` check would
    #  misinterpret a batch-2 tensor as the [x, loss] pair.)
    dim, depth, img_size, K, patch_size, n_classes = 128, 2, 16, 3, 2, 8
    batch = 4

    root = jax.random.PRNGKey(0)
    k_x, k_p = jax.random.split(root)
    x = jax.random.normal(k_x, (batch, 3, img_size, img_size), jnp.float32)   # NCHW
    params = init_params(k_p, dim=dim, depth=depth, K=K,
                         patch_size=patch_size, n_classes=n_classes)

    fwd = jax.jit(functools.partial(convmixer_adapt_forward, dim=dim, K=K,
                                    patch_size=patch_size, n_classes=n_classes,
                                    adapt=True))
    outs = fwd(x, params)
    outs = jax.block_until_ready(outs)

    assert len(outs) == 4
    for o in outs:
        assert o.shape == (batch, n_classes)
        assert bool(jnp.all(jnp.isfinite(o)))
    print("KERNEL_OK")
</pallas_src>

<mosaic_0001>
module attributes {stable_mosaic.version = 11 : i64} {
  func.func @_matmul_gelu_stats_kernel(%arg0: i32, %arg1: memref<256x128xbf16, #tpu.memory_space<vmem>>, %arg2: memref<128x128xbf16, #tpu.memory_space<vmem>>, %arg3: memref<1x128xf32, #tpu.memory_space<vmem>>, %arg4: memref<256x128xbf16, #tpu.memory_space<vmem>>, %arg5: memref<1x1x128xf32, #tpu.memory_space<vmem>>, %arg6: memref<1x1x128xf32, #tpu.memory_space<vmem>>) attributes {dimension_semantics = [#tpu.dimension_semantics<parallel>], iteration_bounds = array<i64: 1>, scalar_prefetch = 0 : i64, scratch_operands = 0 : i64, tpu.core_type = #tpu.core_type<tc>, window_params = [{transform_indices = @transform_0, window_bounds = array<i64: 256, 128>}, {pipeline_mode = #tpu.pipeline_mode<synchronous>, transform_indices = @transform_1, window_bounds = array<i64: 128, 128>}, {pipeline_mode = #tpu.pipeline_mode<synchronous>, transform_indices = @transform_2, window_bounds = array<i64: 1, 128>}, {transform_indices = @transform_3, window_bounds = array<i64: 256, 128>}, {transform_indices = @transform_4, window_bounds = array<i64: 1, 1, 128>}, {transform_indices = @transform_5, window_bounds = array<i64: 1, 1, 128>}]} {
    %c0 = arith.constant 0 : index
    %c0_0 = arith.constant 0 : index
    %0 = vector.load %arg1[%c0, %c0_0] : memref<256x128xbf16, #tpu.memory_space<vmem>>, vector<256x128xbf16>
    %c0_1 = arith.constant 0 : index
    %c0_2 = arith.constant 0 : index
    %1 = vector.load %arg2[%c0_1, %c0_2] : memref<128x128xbf16, #tpu.memory_space<vmem>>, vector<128x128xbf16>
    %cst = arith.constant dense<0.000000e+00> : vector<256x128xf32>
    %2 = tpu.matmul %0, %1, %cst {dimension_numbers = #tpu.dot_dimension_numbers<[1], [0], [0], [1], [0, 0, 1, 1], [], []>} : vector<256x128xbf16>, vector<128x128xbf16>, vector<256x128xf32> -> vector<256x128xf32>
    %c0_3 = arith.constant 0 : index
    %c0_4 = arith.constant 0 : index
    %3 = vector.load %arg3[%c0_3, %c0_4] : memref<1x128xf32, #tpu.memory_space<vmem>>, vector<1x128xf32>
    %4 = vector.broadcast %3 : vector<1x128xf32> to vector<256x128xf32>
    %5 = arith.addf %2, %4 : vector<256x128xf32>
    %cst_5 = arith.constant 5.000000e-01 : f32
    %6 = vector.broadcast %cst_5 : f32 to vector<256x128xf32>
    %7 = arith.mulf %6, %5 : vector<256x128xf32>
    %cst_6 = arith.constant 4.471500e-02 : f32
    %8 = vector.broadcast %cst_6 : f32 to vector<256x128xf32>
    %9 = arith.mulf %8, %5 : vector<256x128xf32>
    %10 = arith.mulf %9, %5 : vector<256x128xf32>
    %11 = arith.mulf %10, %5 : vector<256x128xf32>
    %12 = arith.addf %5, %11 : vector<256x128xf32>
    %cst_7 = arith.constant 0.797884583 : f32
    %13 = vector.broadcast %cst_7 : f32 to vector<256x128xf32>
    %14 = arith.mulf %13, %12 : vector<256x128xf32>
    %15 = math.tanh %14 : vector<256x128xf32>
    %cst_8 = arith.constant 1.000000e+00 : f32
    %16 = vector.broadcast %cst_8 : f32 to vector<256x128xf32>
    %17 = arith.addf %16, %15 : vector<256x128xf32>
    %18 = arith.mulf %7, %17 : vector<256x128xf32>
    %19 = arith.truncf %18 : vector<256x128xf32> to vector<256x128xbf16>
    %c0_9 = arith.constant 0 : index
    %c0_10 = arith.constant 0 : index
    %20 = vector.load %arg4[%c0_9, %c0_10] : memref<256x128xbf16, #tpu.memory_space<vmem>>, vector<256x128xbf16>
    tpu.vector_store %arg4[%c0_9, %c0_10], %19 {strides = array<i32>} : memref<256x128xbf16, #tpu.memory_space<vmem>>, vector<256x128xbf16>,
    %cst_11 = arith.constant dense<0.000000e+00> : vector<128xf32>
    %21 = vector.multi_reduction <add>, %18, %cst_11 [0] : vector<256x128xf32> to vector<128xf32>
    %22 = vector.shape_cast %21 : vector<128xf32> to vector<1x128xf32>
    %c0_12 = arith.constant 0 : index
    %c0_13 = arith.constant 0 : index
    %c0_14 = arith.constant 0 : index
    %23 = vector.load %arg5[%c0_12, %c0_13, %c0_14] : memref<1x1x128xf32, #tpu.memory_space<vmem>>, vector<1x1x128xf32>
    %24 = vector.shape_cast %23 : vector<1x1x128xf32> to vector<1x128xf32>
    %25 = vector.shape_cast %22 : vector<1x128xf32> to vector<1x1x128xf32>
    tpu.vector_store %arg5[%c0_12, %c0_13, %c0_14], %25 {strides = array<i32>} : memref<1x1x128xf32, #tpu.memory_space<vmem>>, vector<1x1x128xf32>,
    %26 = arith.mulf %18, %18 : vector<256x128xf32>
    %cst_15 = arith.constant dense<0.000000e+00> : vector<128xf32>
    %27 = vector.multi_reduction <add>, %26, %cst_15 [0] : vector<256x128xf32> to vector<128xf32>
    %28 = vector.shape_cast %27 : vector<128xf32> to vector<1x128xf32>
    %c0_16 = arith.constant 0 : index
    %c0_17 = arith.constant 0 : index
    %c0_18 = arith.constant 0 : index
    %29 = vector.load %arg6[%c0_16, %c0_17, %c0_18] : memref<1x1x128xf32, #tpu.memory_space<vmem>>, vector<1x1x128xf32>
    %30 = vector.shape_cast %29 : vector<1x1x128xf32> to vector<1x128xf32>
    %31 = vector.shape_cast %28 : vector<1x128xf32> to vector<1x1x128xf32>
    tpu.vector_store %arg6[%c0_16, %c0_17, %c0_18], %31 {strides = array<i32>} : memref<1x1x128xf32, #tpu.memory_space<vmem>>, vector<1x1x128xf32>,
    return
  }
  func.func @transform_0(%arg0: i32) -> (i32, i32) {
    %c0_i32 = arith.constant 0 : i32
    %c0_i32_0 = arith.constant 0 : i32
    return %arg0, %c0_i32 : i32, i32
  }
  func.func @transform_1(%arg0: i32) -> (i32, i32) {
    %c0_i32 = arith.constant 0 : i32
    %c0_i32_0 = arith.constant 0 : i32
    %c0_i32_1 = arith.constant 0 : i32
    return %c0_i32, %c0_i32_0 : i32, i32
  }
  func.func @transform_2(%arg0: i32) -> (i32, i32) {
    %c0_i32 = arith.constant 0 : i32
    %c0_i32_0 = arith.constant 0 : i32
    %c0_i32_1 = arith.constant 0 : i32
    return %c0_i32, %c0_i32_0 : i32, i32
  }
  func.func @transform_3(%arg0: i32) -> (i32, i32) {
    %c0_i32 = arith.constant 0 : i32
    %c0_i32_0 = arith.constant 0 : i32
    return %arg0, %c0_i32 : i32, i32
  }
  func.func @transform_4(%arg0: i32) -> (i32, i32, i32) {
    %c0_i32 = arith.constant 0 : i32
    %c0_i32_0 = arith.constant 0 : i32
    %c0_i32_1 = arith.constant 0 : i32
    return %arg0, %c0_i32, %c0_i32_0 : i32, i32, i32
  }
  func.func @transform_5(%arg0: i32) -> (i32, i32, i32) {
    %c0_i32 = arith.constant 0 : i32
    %c0_i32_0 = arith.constant 0 : i32
    %c0_i32_1 = arith.constant 0 : i32
    return %arg0, %c0_i32, %c0_i32_0 : i32, i32, i32
  }
}

module attributes {stable_mosaic.version = 11 : i64} {
  func.func @_dwconv_gelu_stats_kernel(%arg0: i32, %arg1: memref<1x8x8x128xbf16, #tpu.memory_space<vmem>>, %arg2: memref<9x128xf32, #tpu.memory_space<vmem>>, %arg3: memref<1x128xf32, #tpu.memory_space<vmem>>, %arg4: memref<1x8x8x128xbf16, #tpu.memory_space<vmem>>, %arg5: memref<1x1x128xf32, #tpu.memory_space<vmem>>, %arg6: memref<1x1x128xf32, #tpu.memory_space<vmem>>, %arg7: memref<10x10x128xf32, #tpu.memory_space<vmem>>) attributes {dimension_semantics = [#tpu.dimension_semantics<parallel>], iteration_bounds = array<i64: 4>, scalar_prefetch = 0 : i64, scratch_operands = 1 : i64, tpu.core_type = #tpu.core_type<tc>, window_params = [{transform_indices = @transform_0, window_bounds = array<i64: 1, 8, 8, 128>}, {pipeline_mode = #tpu.pipeline_mode<synchronous>, transform_indices = @transform_1, window_bounds = array<i64: 9, 128>}, {pipeline_mode = #tpu.pipeline_mode<synchronous>, transform_indices = @transform_2, window_bounds = array<i64: 1, 128>}, {transform_indices = @transform_3, window_bounds = array<i64: 1, 8, 8, 128>}, {transform_indices = @transform_4, window_bounds = array<i64: 1, 1, 128>}, {transform_indices = @transform_5, window_bounds = array<i64: 1, 1, 128>}]} {
    %cst = arith.constant 0.000000e+00 : f32
    %0 = vector.broadcast %cst : f32 to vector<1x10x128xf32>
    %c0 = arith.constant 0 : index
    %c0_0 = arith.constant 0 : index
    %c0_1 = arith.constant 0 : index
    %1 = vector.load %arg7[%c0, %c0_0, %c0_1] : memref<10x10x128xf32, #tpu.memory_space<vmem>>, vector<1x10x128xf32>
    tpu.vector_store %arg7[%c0, %c0_0, %c0_1], %0 {strides = array<i32>} : memref<10x10x128xf32, #tpu.memory_space<vmem>>, vector<1x10x128xf32>,
    %cst_2 = arith.constant 0.000000e+00 : f32
    %2 = vector.broadcast %cst_2 : f32 to vector<1x10x128xf32>
    %c9 = arith.constant 9 : index
    %c0_3 = arith.constant 0 : index
    %c0_4 = arith.constant 0 : index
    %3 = vector.load %arg7[%c9, %c0_3, %c0_4] : memref<10x10x128xf32, #tpu.memory_space<vmem>>, vector<1x10x128xf32>
    tpu.vector_store %arg7[%c9, %c0_3, %c0_4], %2 {strides = array<i32>} : memref<10x10x128xf32, #tpu.memory_space<vmem>>, vector<1x10x128xf32>,
    %cst_5 = arith.constant 0.000000e+00 : f32
    %4 = vector.broadcast %cst_5 : f32 to vector<10x1x128xf32>
    %c0_6 = arith.constant 0 : index
    %c0_7 = arith.constant 0 : index
    %c0_8 = arith.constant 0 : index
    %5 = vector.load %arg7[%c0_6, %c0_7, %c0_8] : memref<10x10x128xf32, #tpu.memory_space<vmem>>, vector<10x1x128xf32>
    tpu.vector_store %arg7[%c0_6, %c0_7, %c0_8], %4 {strides = array<i32>} : memref<10x10x128xf32, #tpu.memory_space<vmem>>, vector<10x1x128xf32>,
    %cst_9 = arith.constant 0.000000e+00 : f32
    %6 = vector.broadcast %cst_9 : f32 to vector<10x1x128xf32>
    %c0_10 = arith.constant 0 : index
    %c9_11 = arith.constant 9 : index
    %c0_12 = arith.constant 0 : index
    %7 = vector.load %arg7[%c0_10, %c9_11, %c0_12] : memref<10x10x128xf32, #tpu.memory_space<vmem>>, vector<10x1x128xf32>
    tpu.vector_store %arg7[%c0_10, %c9_11, %c0_12], %6 {strides = array<i32>} : memref<10x10x128xf32, #tpu.memory_space<vmem>>, vector<10x1x128xf32>,
    %c0_13 = arith.constant 0 : index
    %c0_14 = arith.constant 0 : index
    %c0_15 = arith.constant 0 : index
    %c0_16 = arith.constant 0 : index
    %8 = vector.load %arg1[%c0_13, %c0_14, %c0_15, %c0_16] : memref<1x8x8x128xbf16, #tpu.memory_space<vmem>>, vector<1x8x8x128xbf16>
    %9 = vector.shape_cast %8 : vector<1x8x8x128xbf16> to vector<8x8x128xbf16>
    %10 = arith.extf %9 : vector<8x8x128xbf16> to vector<8x8x128xf32>
    %c1 = arith.constant 1 : index
    %c1_17 = arith.constant 1 : index
    %c0_18 = arith.constant 0 : index
    %11 = vector.load %arg7[%c1, %c1_17, %c0_18] : memref<10x10x128xf32, #tpu.memory_space<vmem>>, vector<8x8x128xf32>
    tpu.vector_store %arg7[%c1, %c1_17, %c0_18], %10 {strides = array<i32>} : memref<10x10x128xf32, #tpu.memory_space<vmem>>, vector<8x8x128xf32>,
    %c0_19 = arith.constant 0 : index
    %c0_20 = arith.constant 0 : index
    %12 = vector.load %arg2[%c0_19, %c0_20] : memref<9x128xf32, #tpu.memory_space<vmem>>, vector<9x128xf32>
    %cst_21 = arith.constant 0.000000e+00 : f32
    %13 = vector.broadcast %cst_21 : f32 to vector<8x8x128xf32>
    %c0_22 = arith.constant 0 : index
    %c0_23 = arith.constant 0 : index
    %c0_24 = arith.constant 0 : index
    %14 = vector.load %arg7[%c0_22, %c0_23, %c0_24] : memref<10x10x128xf32, #tpu.memory_space<vmem>>, vector<10x8x128xf32>
    %15 = vector.extract_strided_slice %14 {offsets = [0, 0, 0], sizes = [8, 8, 128], strides = [1, 1, 1]} : vector<10x8x128xf32> to vector<8x8x128xf32>
    %16 = vector.extract_strided_slice %12 {offsets = [0, 0], sizes = [1, 128], strides = [1, 1]} : vector<9x128xf32> to vector<1x128xf32>
    %17 = vector.shape_cast %16 : vector<1x128xf32> to vector<1x1x128xf32>
    %18 = vector.broadcast %17 : vector<1x1x128xf32> to vector<8x8x128xf32>
    %19 = arith.mulf %15, %18 : vector<8x8x128xf32>
    %20 = arith.addf %13, %19 : vector<8x8x128xf32>
    %21 = vector.extract_strided_slice %14 {offsets = [1, 0, 0], sizes = [8, 8, 128], strides = [1, 1, 1]} : vector<10x8x128xf32> to vector<8x8x128xf32>
    %22 = vector.extract_strided_slice %12 {offsets = [3, 0], sizes = [1, 128], strides = [1, 1]} : vector<9x128xf32> to vector<1x128xf32>
    %23 = vector.shape_cast %22 : vector<1x128xf32> to vector<1x1x128xf32>
    %24 = vector.broadcast %23 : vector<1x1x128xf32> to vector<8x8x128xf32>
    %25 = arith.mulf %21, %24 : vector<8x8x128xf32>
    %26 = arith.addf %20, %25 : vector<8x8x128xf32>
    %27 = vector.extract_strided_slice %14 {offsets = [2, 0, 0], sizes = [8, 8, 128], strides = [1, 1, 1]} : vector<10x8x128xf32> to vector<8x8x128xf32>
    %28 = vector.extract_strided_slice %12 {offsets = [6, 0], sizes = [1, 128], strides = [1, 1]} : vector<9x128xf32> to vector<1x128xf32>
    %29 = vector.shape_cast %28 : vector<1x128xf32> to vector<1x1x128xf32>
    %30 = vector.broadcast %29 : vector<1x1x128xf32> to vector<8x8x128xf32>
    %31 = arith.mulf %27, %30 : vector<8x8x128xf32>
    %32 = arith.addf %26, %31 : vector<8x8x128xf32>
    %c0_25 = arith.constant 0 : index
    %c1_26 = arith.constant 1 : index
    %c0_27 = arith.constant 0 : index
    %33 = vector.load %arg7[%c0_25, %c1_26, %c0_27] : memref<10x10x128xf32, #tpu.memory_space<vmem>>, vector<10x8x128xf32>
    %34 = vector.extract_strided_slice %33 {offsets = [0, 0, 0], sizes = [8, 8, 128], strides = [1, 1, 1]} : vector<10x8x128xf32> to vector<8x8x128xf32>
    %35 = vector.extract_strided_slice %12 {offsets = [1, 0], sizes = [1, 128], strides = [1, 1]} : vector<9x128xf32> to vector<1x128xf32>
    %36 = vector.shape_cast %35 : vector<1x128xf32> to vector<1x1x128xf32>
    %37 = vector.broadcast %36 : vector<1x1x128xf32> to vector<8x8x128xf32>
    %38 = arith.mulf %34, %37 : vector<8x8x128xf32>
    %39 = arith.addf %32, %38 : vector<8x8x128xf32>
    %40 = vector.extract_strided_slice %33 {offsets = [1, 0, 0], sizes = [8, 8, 128], strides = [1, 1, 1]} : vector<10x8x128xf32> to vector<8x8x128xf32>
    %41 = vector.extract_strided_slice %12 {offsets = [4, 0], sizes = [1, 128], strides = [1, 1]} : vector<9x128xf32> to vector<1x128xf32>
    %42 = vector.shape_cast %41 : vector<1x128xf32> to vector<1x1x128xf32>
    %43 = vector.broadcast %42 : vector<1x1x128xf32> to vector<8x8x128xf32>
    %44 = arith.mulf %40, %43 : vector<8x8x128xf32>
    %45 = arith.addf %39, %44 : vector<8x8x128xf32>
    %46 = vector.extract_strided_slice %33 {offsets = [2, 0, 0], sizes = [8, 8, 128], strides = [1, 1, 1]} : vector<10x8x128xf32> to vector<8x8x128xf32>
    %47 = vector.extract_strided_slice %12 {offsets = [7, 0], sizes = [1, 128], strides = [1, 1]} : vector<9x128xf32> to vector<1x128xf32>
    %48 = vector.shape_cast %47 : vector<1x128xf32> to vector<1x1x128xf32>
    %49 = vector.broadcast %48 : vector<1x1x128xf32> to vector<8x8x128xf32>
    %50 = arith.mulf %46, %49 : vector<8x8x128xf32>
    %51 = arith.addf %45, %50 : vector<8x8x128xf32>
    %c0_28 = arith.constant 0 : index
    %c2 = arith.constant 2 : index
    %c0_29 = arith.constant 0 : index
    %52 = vector.load %arg7[%c0_28, %c2, %c0_29] : memref<10x10x128xf32, #tpu.memory_space<vmem>>, vector<10x8x128xf32>
    %53 = vector.extract_strided_slice %52 {offsets = [0, 0, 0], sizes = [8, 8, 128], strides = [1, 1, 1]} : vector<10x8x128xf32> to vector<8x8x128xf32>
    %54 = vector.extract_strided_slice %12 {offsets = [2, 0], sizes = [1, 128], strides = [1, 1]} : vector<9x128xf32> to vector<1x128xf32>
    %55 = vector.shape_cast %54 : vector<1x128xf32> to vector<1x1x128xf32>
    %56 = vector.broadcast %55 : vector<1x1x128xf32> to vector<8x8x128xf32>
    %57 = arith.mulf %53, %56 : vector<8x8x128xf32>
    %58 = arith.addf %51, %57 : vector<8x8x128xf32>
    %59 = vector.extract_strided_slice %52 {offsets = [1, 0, 0], sizes = [8, 8, 128], strides = [1, 1, 1]} : vector<10x8x128xf32> to vector<8x8x128xf32>
    %60 = vector.extract_strided_slice %12 {offsets = [5, 0], sizes = [1, 128], strides = [1, 1]} : vector<9x128xf32> to vector<1x128xf32>
    %61 = vector.shape_cast %60 : vector<1x128xf32> to vector<1x1x128xf32>
    %62 = vector.broadcast %61 : vector<1x1x128xf32> to vector<8x8x128xf32>
    %63 = arith.mulf %59, %62 : vector<8x8x128xf32>
    %64 = arith.addf %58, %63 : vector<8x8x128xf32>
    %65 = vector.extract_strided_slice %52 {offsets = [2, 0, 0], sizes = [8, 8, 128], strides = [1, 1, 1]} : vector<10x8x128xf32> to vector<8x8x128xf32>
    %66 = vector.extract_strided_slice %12 {offsets = [8, 0], sizes = [1, 128], strides = [1, 1]} : vector<9x128xf32> to vector<1x128xf32>
    %67 = vector.shape_cast %66 : vector<1x128xf32> to vector<1x1x128xf32>
    %68 = vector.broadcast %67 : vector<1x1x128xf32> to vector<8x8x128xf32>
    %69 = arith.mulf %65, %68 : vector<8x8x128xf32>
    %70 = arith.addf %64, %69 : vector<8x8x128xf32>
    %c0_30 = arith.constant 0 : index
    %c0_31 = arith.constant 0 : index
    %71 = vector.load %arg3[%c0_30, %c0_31] : memref<1x128xf32, #tpu.memory_space<vmem>>, vector<1x128xf32>
    %72 = vector.shape_cast %71 : vector<1x128xf32> to vector<1x1x128xf32>
    %73 = vector.broadcast %72 : vector<1x1x128xf32> to vector<8x8x128xf32>
    %74 = arith.addf %70, %73 : vector<8x8x128xf32>
    %cst_32 = arith.constant 5.000000e-01 : f32
    %75 = vector.broadcast %cst_32 : f32 to vector<8x8x128xf32>
    %76 = arith.mulf %75, %74 : vector<8x8x128xf32>
    %cst_33 = arith.constant 4.471500e-02 : f32
    %77 = vector.broadcast %cst_33 : f32 to vector<8x8x128xf32>
    %78 = arith.mulf %77, %74 : vector<8x8x128xf32>
    %79 = arith.mulf %78, %74 : vector<8x8x128xf32>
    %80 = arith.mulf %79, %74 : vector<8x8x128xf32>
    %81 = arith.addf %74, %80 : vector<8x8x128xf32>
    %cst_34 = arith.constant 0.797884583 : f32
    %82 = vector.broadcast %cst_34 : f32 to vector<8x8x128xf32>
    %83 = arith.mulf %82, %81 : vector<8x8x128xf32>
    %84 = math.tanh %83 : vector<8x8x128xf32>
    %cst_35 = arith.constant 1.000000e+00 : f32
    %85 = vector.broadcast %cst_35 : f32 to vector<8x8x128xf32>
    %86 = arith.addf %85, %84 : vector<8x8x128xf32>
    %87 = arith.mulf %76, %86 : vector<8x8x128xf32>
    %88 = arith.truncf %87 : vector<8x8x128xf32> to vector<8x8x128xbf16>
    %c0_36 = arith.constant 0 : index
    %c0_37 = arith.constant 0 : index
    %c0_38 = arith.constant 0 : index
    %c0_39 = arith.constant 0 : index
    %89 = vector.load %arg4[%c0_36, %c0_37, %c0_38, %c0_39] : memref<1x8x8x128xbf16, #tpu.memory_space<vmem>>, vector<1x8x8x128xbf16>
    %90 = vector.shape_cast %89 : vector<1x8x8x128xbf16> to vector<8x8x128xbf16>
    %91 = vector.shape_cast %88 : vector<8x8x128xbf16> to vector<1x8x8x128xbf16>
    tpu.vector_store %arg4[%c0_36, %c0_37, %c0_38, %c0_39], %91 {strides = array<i32>} : memref<1x8x8x128xbf16, #tpu.memory_space<vmem>>, vector<1x8x8x128xbf16>,
    %cst_40 = arith.constant dense<0.000000e+00> : vector<8x128xf32>
    %92 = vector.multi_reduction <add>, %87, %cst_40 [0] : vector<8x8x128xf32> to vector<8x128xf32>
    %cst_41 = arith.constant dense<0.000000e+00> : vector<128xf32>
    %93 = vector.multi_reduction <add>, %92, %cst_41 [0] : vector<8x128xf32> to vector<128xf32>
    %94 = vector.shape_cast %93 : vector<128xf32> to vector<1x128xf32>
    %c0_42 = arith.constant 0 : index
    %c0_43 = arith.constant 0 : index
    %c0_44 = arith.constant 0 : index
    %95 = vector.load %arg5[%c0_42, %c0_43, %c0_44] : memref<1x1x128xf32, #tpu.memory_space<vmem>>, vector<1x1x128xf32>
    %96 = vector.shape_cast %95 : vector<1x1x128xf32> to vector<1x128xf32>
    %97 = vector.shape_cast %94 : vector<1x128xf32> to vector<1x1x128xf32>
    tpu.vector_store %arg5[%c0_42, %c0_43, %c0_44], %97 {strides = array<i32>} : memref<1x1x128xf32, #tpu.memory_space<vmem>>, vector<1x1x128xf32>,
    %98 = arith.mulf %87, %87 : vector<8x8x128xf32>
    %cst_45 = arith.constant dense<0.000000e+00> : vector<8x128xf32>
    %99 = vector.multi_reduction <add>, %98, %cst_45 [0] : vector<8x8x128xf32> to vector<8x128xf32>
    %cst_46 = arith.constant dense<0.000000e+00> : vector<128xf32>
    %100 = vector.multi_reduction <add>, %99, %cst_46 [0] : vector<8x128xf32> to vector<128xf32>
    %101 = vector.shape_cast %100 : vector<128xf32> to vector<1x128xf32>
    %c0_47 = arith.constant 0 : index
    %c0_48 = arith.constant 0 : index
    %c0_49 = arith.constant 0 : index
    %102 = vector.load %arg6[%c0_47, %c0_48, %c0_49] : memref<1x1x128xf32, #tpu.memory_space<vmem>>, vector<1x1x128xf32>
    %103 = vector.shape_cast %102 : vector<1x1x128xf32> to vector<1x128xf32>
    %104 = vector.shape_cast %101 : vector<1x128xf32> to vector<1x1x128xf32>
    tpu.vector_store %arg6[%c0_47, %c0_48, %c0_49], %104 {strides = array<i32>} : memref<1x1x128xf32, #tpu.memory_space<vmem>>, vector<1x1x128xf32>,
    return
  }
  func.func @transform_0(%arg0: i32) -> (i32, i32, i32, i32) {
    %c0_i32 = arith.constant 0 : i32
    %c0_i32_0 = arith.constant 0 : i32
    %c0_i32_1 = arith.constant 0 : i32
    %c0_i32_2 = arith.constant 0 : i32
    return %arg0, %c0_i32, %c0_i32_0, %c0_i32_1 : i32, i32, i32, i32
  }
  func.func @transform_1(%arg0: i32) -> (i32, i32) {
    %c0_i32 = arith.constant 0 : i32
    %c0_i32_0 = arith.constant 0 : i32
    %c0_i32_1 = arith.constant 0 : i32
    return %c0_i32, %c0_i32_0 : i32, i32
  }
  func.func @transform_2(%arg0: i32) -> (i32, i32) {
    %c0_i32 = arith.constant 0 : i32
    %c0_i32_0 = arith.constant 0 : i32
    %c0_i32_1 = arith.constant 0 : i32
    return %c0_i32, %c0_i32_0 : i32, i32
  }
  func.func @transform_3(%arg0: i32) -> (i32, i32, i32, i32) {
    %c0_i32 = arith.constant 0 : i32
    %c0_i32_0 = arith.constant 0 : i32
    %c0_i32_1 = arith.constant 0 : i32
    %c0_i32_2 = arith.constant 0 : i32
    return %arg0, %c0_i32, %c0_i32_0, %c0_i32_1 : i32, i32, i32, i32
  }
  func.func @transform_4(%arg0: i32) -> (i32, i32, i32) {
    %c0_i32 = arith.constant 0 : i32
    %c0_i32_0 = arith.constant 0 : i32
    %c0_i32_1 = arith.constant 0 : i32
    return %arg0, %c0_i32, %c0_i32_0 : i32, i32, i32
  }
  func.func @transform_5(%arg0: i32) -> (i32, i32, i32) {
    %c0_i32 = arith.constant 0 : i32
    %c0_i32_0 = arith.constant 0 : i32
    %c0_i32_1 = arith.constant 0 : i32
    return %arg0, %c0_i32, %c0_i32_0 : i32, i32, i32
  }
}

module attributes {stable_mosaic.version = 11 : i64} {
  func.func @_matmul_gelu_stats_kernel(%arg0: i32, %arg1: memref<256x128xbf16, #tpu.memory_space<vmem>>, %arg2: memref<256x128xbf16, #tpu.memory_space<vmem>>, %arg3: memref<1x128xf32, #tpu.memory_space<vmem>>, %arg4: memref<1x128xf32, #tpu.memory_space<vmem>>, %arg5: memref<1x128xf32, #tpu.memory_space<vmem>>, %arg6: memref<128x128xbf16, #tpu.memory_space<vmem>>, %arg7: memref<1x128xf32, #tpu.memory_space<vmem>>, %arg8: memref<256x128xbf16, #tpu.memory_space<vmem>>, %arg9: memref<1x1x128xf32, #tpu.memory_space<vmem>>, %arg10: memref<1x1x128xf32, #tpu.memory_space<vmem>>) attributes {dimension_semantics = [#tpu.dimension_semantics<parallel>], iteration_bounds = array<i64: 1>, scalar_prefetch = 0 : i64, scratch_operands = 0 : i64, tpu.core_type = #tpu.core_type<tc>, window_params = [{transform_indices = @transform_0, window_bounds = array<i64: 256, 128>}, {transform_indices = @transform_1, window_bounds = array<i64: 256, 128>}, {pipeline_mode = #tpu.pipeline_mode<synchronous>, transform_indices = @transform_2, window_bounds = array<i64: 1, 128>}, {pipeline_mode = #tpu.pipeline_mode<synchronous>, transform_indices = @transform_3, window_bounds = array<i64: 1, 128>}, {pipeline_mode = #tpu.pipeline_mode<synchronous>, transform_indices = @transform_4, window_bounds = array<i64: 1, 128>}, {pipeline_mode = #tpu.pipeline_mode<synchronous>, transform_indices = @transform_5, window_bounds = array<i64: 128, 128>}, {pipeline_mode = #tpu.pipeline_mode<synchronous>, transform_indices = @transform_6, window_bounds = array<i64: 1, 128>}, {transform_indices = @transform_7, window_bounds = array<i64: 256, 128>}, {transform_indices = @transform_8, window_bounds = array<i64: 1, 1, 128>}, {transform_indices = @transform_9, window_bounds = array<i64: 1, 1, 128>}]} {
    %c0 = arith.constant 0 : index
    %c0_0 = arith.constant 0 : index
    %0 = vector.load %arg1[%c0, %c0_0] : memref<256x128xbf16, #tpu.memory_space<vmem>>, vector<256x128xbf16>
    %1 = arith.extf %0 : vector<256x128xbf16> to vector<256x128xf32>
    %c0_1 = arith.constant 0 : index
    %c0_2 = arith.constant 0 : index
    %2 = vector.load %arg3[%c0_1, %c0_2] : memref<1x128xf32, #tpu.memory_space<vmem>>, vector<1x128xf32>
    %3 = vector.broadcast %2 : vector<1x128xf32> to vector<256x128xf32>
    %4 = arith.mulf %1, %3 : vector<256x128xf32>
    %c0_3 = arith.constant 0 : index
    %c0_4 = arith.constant 0 : index
    %5 = vector.load %arg2[%c0_3, %c0_4] : memref<256x128xbf16, #tpu.memory_space<vmem>>, vector<256x128xbf16>
    %6 = arith.extf %5 : vector<256x128xbf16> to vector<256x128xf32>
    %c0_5 = arith.constant 0 : index
    %c0_6 = arith.constant 0 : index
    %7 = vector.load %arg4[%c0_5, %c0_6] : memref<1x128xf32, #tpu.memory_space<vmem>>, vector<1x128xf32>
    %8 = vector.broadcast %7 : vector<1x128xf32> to vector<256x128xf32>
    %9 = arith.mulf %6, %8 : vector<256x128xf32>
    %10 = arith.addf %4, %9 : vector<256x128xf32>
    %c0_7 = arith.constant 0 : index
    %c0_8 = arith.constant 0 : index
    %11 = vector.load %arg5[%c0_7, %c0_8] : memref<1x128xf32, #tpu.memory_space<vmem>>, vector<1x128xf32>
    %12 = vector.broadcast %11 : vector<1x128xf32> to vector<256x128xf32>
    %13 = arith.addf %10, %12 : vector<256x128xf32>
    %14 = arith.truncf %13 : vector<256x128xf32> to vector<256x128xbf16>
    %c0_9 = arith.constant 0 : index
    %c0_10 = arith.constant 0 : index
    %15 = vector.load %arg6[%c0_9, %c0_10] : memref<128x128xbf16, #tpu.memory_space<vmem>>, vector<128x128xbf16>
    %cst = arith.constant dense<0.000000e+00> : vector<256x128xf32>
    %16 = tpu.matmul %14, %15, %cst {dimension_numbers = #tpu.dot_dimension_numbers<[1], [0], [0], [1], [0, 0, 1, 1], [], []>} : vector<256x128xbf16>, vector<128x128xbf16>, vector<256x128xf32> -> vector<256x128xf32>
    %c0_11 = arith.constant 0 : index
    %c0_12 = arith.constant 0 : index
    %17 = vector.load %arg7[%c0_11, %c0_12] : memref<1x128xf32, #tpu.memory_space<vmem>>, vector<1x128xf32>
    %18 = vector.broadcast %17 : vector<1x128xf32> to vector<256x128xf32>
    %19 = arith.addf %16, %18 : vector<256x128xf32>
    %cst_13 = arith.constant 5.000000e-01 : f32
    %20 = vector.broadcast %cst_13 : f32 to vector<256x128xf32>
    %21 = arith.mulf %20, %19 : vector<256x128xf32>
    %cst_14 = arith.constant 4.471500e-02 : f32
    %22 = vector.broadcast %cst_14 : f32 to vector<256x128xf32>
    %23 = arith.mulf %22, %19 : vector<256x128xf32>
    %24 = arith.mulf %23, %19 : vector<256x128xf32>
    %25 = arith.mulf %24, %19 : vector<256x128xf32>
    %26 = arith.addf %19, %25 : vector<256x128xf32>
    %cst_15 = arith.constant 0.797884583 : f32
    %27 = vector.broadcast %cst_15 : f32 to vector<256x128xf32>
    %28 = arith.mulf %27, %26 : vector<256x128xf32>
    %29 = math.tanh %28 : vector<256x128xf32>
    %cst_16 = arith.constant 1.000000e+00 : f32
    %30 = vector.broadcast %cst_16 : f32 to vector<256x128xf32>
    %31 = arith.addf %30, %29 : vector<256x128xf32>
    %32 = arith.mulf %21, %31 : vector<256x128xf32>
    %33 = arith.truncf %32 : vector<256x128xf32> to vector<256x128xbf16>
    %c0_17 = arith.constant 0 : index
    %c0_18 = arith.constant 0 : index
    %34 = vector.load %arg8[%c0_17, %c0_18] : memref<256x128xbf16, #tpu.memory_space<vmem>>, vector<256x128xbf16>
    tpu.vector_store %arg8[%c0_17, %c0_18], %33 {strides = array<i32>} : memref<256x128xbf16, #tpu.memory_space<vmem>>, vector<256x128xbf16>,
    %cst_19 = arith.constant dense<0.000000e+00> : vector<128xf32>
    %35 = vector.multi_reduction <add>, %32, %cst_19 [0] : vector<256x128xf32> to vector<128xf32>
    %36 = vector.shape_cast %35 : vector<128xf32> to vector<1x128xf32>
    %c0_20 = arith.constant 0 : index
    %c0_21 = arith.constant 0 : index
    %c0_22 = arith.constant 0 : index
    %37 = vector.load %arg9[%c0_20, %c0_21, %c0_22] : memref<1x1x128xf32, #tpu.memory_space<vmem>>, vector<1x1x128xf32>
    %38 = vector.shape_cast %37 : vector<1x1x128xf32> to vector<1x128xf32>
    %39 = vector.shape_cast %36 : vector<1x128xf32> to vector<1x1x128xf32>
    tpu.vector_store %arg9[%c0_20, %c0_21, %c0_22], %39 {strides = array<i32>} : memref<1x1x128xf32, #tpu.memory_space<vmem>>, vector<1x1x128xf32>,
    %40 = arith.mulf %32, %32 : vector<256x128xf32>
    %cst_23 = arith.constant dense<0.000000e+00> : vector<128xf32>
    %41 = vector.multi_reduction <add>, %40, %cst_23 [0] : vector<256x128xf32> to vector<128xf32>
    %42 = vector.shape_cast %41 : vector<128xf32> to vector<1x128xf32>
    %c0_24 = arith.constant 0 : index
    %c0_25 = arith.constant 0 : index
    %c0_26 = arith.constant 0 : index
    %43 = vector.load %arg10[%c0_24, %c0_25, %c0_26] : memref<1x1x128xf32, #tpu.memory_space<vmem>>, vector<1x1x128xf32>
    %44 = vector.shape_cast %43 : vector<1x1x128xf32> to vector<1x128xf32>
    %45 = vector.shape_cast %42 : vector<1x128xf32> to vector<1x1x128xf32>
    tpu.vector_store %arg10[%c0_24, %c0_25, %c0_26], %45 {strides = array<i32>} : memref<1x1x128xf32, #tpu.memory_space<vmem>>, vector<1x1x128xf32>,
    return
  }
  func.func @transform_0(%arg0: i32) -> (i32, i32) {
    %c0_i32 = arith.constant 0 : i32
    %c0_i32_0 = arith.constant 0 : i32
    return %arg0, %c0_i32 : i32, i32
  }
  func.func @transform_1(%arg0: i32) -> (i32, i32) {
    %c0_i32 = arith.constant 0 : i32
    %c0_i32_0 = arith.constant 0 : i32
    return %arg0, %c0_i32 : i32, i32
  }
  func.func @transform_2(%arg0: i32) -> (i32, i32) {
    %c0_i32 = arith.constant 0 : i32
    %c0_i32_0 = arith.constant 0 : i32
    %c0_i32_1 = arith.constant 0 : i32
    return %c0_i32, %c0_i32_0 : i32, i32
  }
  func.func @transform_3(%arg0: i32) -> (i32, i32) {
    %c0_i32 = arith.constant 0 : i32
    %c0_i32_0 = arith.constant 0 : i32
    %c0_i32_1 = arith.constant 0 : i32
    return %c0_i32, %c0_i32_0 : i32, i32
  }
  func.func @transform_4(%arg0: i32) -> (i32, i32) {
    %c0_i32 = arith.constant 0 : i32
    %c0_i32_0 = arith.constant 0 : i32
    %c0_i32_1 = arith.constant 0 : i32
    return %c0_i32, %c0_i32_0 : i32, i32
  }
  func.func @transform_5(%arg0: i32) -> (i32, i32) {
    %c0_i32 = arith.constant 0 : i32
    %c0_i32_0 = arith.constant 0 : i32
    %c0_i32_1 = arith.constant 0 : i32
    return %c0_i32, %c0_i32_0 : i32, i32
  }
  func.func @transform_6(%arg0: i32) -> (i32, i32) {
    %c0_i32 = arith.constant 0 : i32
    %c0_i32_0 = arith.constant 0 : i32
    %c0_i32_1 = arith.constant 0 : i32
    return %c0_i32, %c0_i32_0 : i32, i32
  }
  func.func @transform_7(%arg0: i32) -> (i32, i32) {
    %c0_i32 = arith.constant 0 : i32
    %c0_i32_0 = arith.constant 0 : i32
    return %arg0, %c0_i32 : i32, i32
  }
  func.func @transform_8(%arg0: i32) -> (i32, i32, i32) {
    %c0_i32 = arith.constant 0 : i32
    %c0_i32_0 = arith.constant 0 : i32
    %c0_i32_1 = arith.constant 0 : i32
    return %arg0, %c0_i32, %c0_i32_0 : i32, i32, i32
  }
  func.func @transform_9(%arg0: i32) -> (i32, i32, i32) {
    %c0_i32 = arith.constant 0 : i32
    %c0_i32_0 = arith.constant 0 : i32
    %c0_i32_1 = arith.constant 0 : i32
    return %arg0, %c0_i32, %c0_i32_0 : i32, i32, i32
  }
}

module attributes {stable_mosaic.version = 11 : i64} {
  func.func @_pool_linear_kernel(%arg0: i32, %arg1: memref<1x64x128xbf16, #tpu.memory_space<vmem>>, %arg2: memref<1x128xf32, #tpu.memory_space<vmem>>, %arg3: memref<1x128xf32, #tpu.memory_space<vmem>>, %arg4: memref<128x32xf32, #tpu.memory_space<vmem>>, %arg5: memref<1x32xf32, #tpu.memory_space<vmem>>, %arg6: memref<1x1x32xf32, #tpu.memory_space<vmem>>) attributes {dimension_semantics = [#tpu.dimension_semantics<parallel>], iteration_bounds = array<i64: 4>, scalar_prefetch = 0 : i64, scratch_operands = 0 : i64, tpu.core_type = #tpu.core_type<tc>, window_params = [{transform_indices = @transform_0, window_bounds = array<i64: 1, 64, 128>}, {pipeline_mode = #tpu.pipeline_mode<synchronous>, transform_indices = @transform_1, window_bounds = array<i64: 1, 128>}, {pipeline_mode = #tpu.pipeline_mode<synchronous>, transform_indices = @transform_2, window_bounds = array<i64: 1, 128>}, {pipeline_mode = #tpu.pipeline_mode<synchronous>, transform_indices = @transform_3, window_bounds = array<i64: 128, 32>}, {pipeline_mode = #tpu.pipeline_mode<synchronous>, transform_indices = @transform_4, window_bounds = array<i64: 1, 32>}, {transform_indices = @transform_5, window_bounds = array<i64: 1, 1, 32>}]} {
    %c0 = arith.constant 0 : index
    %c0_0 = arith.constant 0 : index
    %c0_1 = arith.constant 0 : index
    %0 = vector.load %arg1[%c0, %c0_0, %c0_1] : memref<1x64x128xbf16, #tpu.memory_space<vmem>>, vector<1x64x128xbf16>
    %1 = vector.shape_cast %0 : vector<1x64x128xbf16> to vector<64x128xbf16>
    %2 = arith.extf %1 : vector<64x128xbf16> to vector<64x128xf32>
    %cst = arith.constant dense<0.000000e+00> : vector<128xf32>
    %3 = vector.multi_reduction <add>, %2, %cst [0] : vector<64x128xf32> to vector<128xf32>
    %4 = vector.shape_cast %3 : vector<128xf32> to vector<1x128xf32>
    %cst_2 = arith.constant 6.400000e+01 : f32
    %5 = vector.broadcast %cst_2 : f32 to vector<1x128xf32>
    %6 = arith.divf %4, %5 : vector<1x128xf32>
    %c0_3 = arith.constant 0 : index
    %c0_4 = arith.constant 0 : index
    %7 = vector.load %arg2[%c0_3, %c0_4] : memref<1x128xf32, #tpu.memory_space<vmem>>, vector<1x128xf32>
    %8 = arith.mulf %6, %7 : vector<1x128xf32>
    %c0_5 = arith.constant 0 : index
    %c0_6 = arith.constant 0 : index
    %9 = vector.load %arg3[%c0_5, %c0_6] : memref<1x128xf32, #tpu.memory_space<vmem>>, vector<1x128xf32>
    %10 = arith.addf %8, %9 : vector<1x128xf32>
    %11 = vector.shape_cast %10 : vector<1x128xf32> to vector<1x128xf32>
    %12 = vector.broadcast %11 : vector<1x128xf32> to vector<8x128xf32>
    %c0_7 = arith.constant 0 : index
    %c0_8 = arith.constant 0 : index
    %13 = vector.load %arg4[%c0_7, %c0_8] : memref<128x32xf32, #tpu.memory_space<vmem>>, vector<128x32xf32>
    %cst_9 = arith.constant dense<0.000000e+00> : vector<8x32xf32>
    %14 = tpu.matmul %12, %13, %cst_9 {dimension_numbers = #tpu.dot_dimension_numbers<[1], [0], [0], [1], [0, 0, 1, 1], [], []>} : vector<8x128xf32>, vector<128x32xf32>, vector<8x32xf32> -> vector<8x32xf32>
    %c0_10 = arith.constant 0 : index
    %c0_11 = arith.constant 0 : index
    %15 = vector.load %arg5[%c0_10, %c0_11] : memref<1x32xf32, #tpu.memory_space<vmem>>, vector<1x32xf32>
    %16 = vector.broadcast %15 : vector<1x32xf32> to vector<8x32xf32>
    %17 = arith.addf %14, %16 : vector<8x32xf32>
    %18 = vector.extract_strided_slice %17 {offsets = [0, 0], sizes = [1, 32], strides = [1, 1]} : vector<8x32xf32> to vector<1x32xf32>
    %c0_12 = arith.constant 0 : index
    %c0_13 = arith.constant 0 : index
    %c0_14 = arith.constant 0 : index
    %19 = vector.load %arg6[%c0_12, %c0_13, %c0_14] : memref<1x1x32xf32, #tpu.memory_space<vmem>>, vector<1x1x32xf32>
    %20 = vector.shape_cast %19 : vector<1x1x32xf32> to vector<1x32xf32>
    %21 = vector.shape_cast %18 : vector<1x32xf32> to vector<1x1x32xf32>
    tpu.vector_store %arg6[%c0_12, %c0_13, %c0_14], %21 {strides = array<i32>} : memref<1x1x32xf32, #tpu.memory_space<vmem>>, vector<1x1x32xf32>,
    return
  }
  func.func @transform_0(%arg0: i32) -> (i32, i32, i32) {
    %c0_i32 = arith.constant 0 : i32
    %c0_i32_0 = arith.constant 0 : i32
    %c0_i32_1 = arith.constant 0 : i32
    return %arg0, %c0_i32, %c0_i32_0 : i32, i32, i32
  }
  func.func @transform_1(%arg0: i32) -> (i32, i32) {
    %c0_i32 = arith.constant 0 : i32
    %c0_i32_0 = arith.constant 0 : i32
    %c0_i32_1 = arith.constant 0 : i32
    return %c0_i32, %c0_i32_0 : i32, i32
  }
  func.func @transform_2(%arg0: i32) -> (i32, i32) {
    %c0_i32 = arith.constant 0 : i32
    %c0_i32_0 = arith.constant 0 : i32
    %c0_i32_1 = arith.constant 0 : i32
    return %c0_i32, %c0_i32_0 : i32, i32
  }
  func.func @transform_3(%arg0: i32) -> (i32, i32) {
    %c0_i32 = arith.constant 0 : i32
    %c0_i32_0 = arith.constant 0 : i32
    %c0_i32_1 = arith.constant 0 : i32
    return %c0_i32, %c0_i32_0 : i32, i32
  }
  func.func @transform_4(%arg0: i32) -> (i32, i32) {
    %c0_i32 = arith.constant 0 : i32
    %c0_i32_0 = arith.constant 0 : i32
    %c0_i32_1 = arith.constant 0 : i32
    return %c0_i32, %c0_i32_0 : i32, i32
  }
  func.func @transform_5(%arg0: i32) -> (i32, i32, i32) {
    %c0_i32 = arith.constant 0 : i32
    %c0_i32_0 = arith.constant 0 : i32
    %c0_i32_1 = arith.constant 0 : i32
    return %arg0, %c0_i32, %c0_i32_0 : i32, i32, i32
  }
}

</mosaic_0001>

<llo_original>
// kernel: convmixer_adapt_forward.7
$region0: #{convmixer_adapt_forward.7}
  #allocation0 [shape = 'u32[]', space=smem, size = 0x4, offset = 0x4, fixed_abs, tag = 'smem constant byte address 0x4 - core index']
  #allocation1 [shape = 'u32[144,128]{1,0:T(1,128)}', space=vmem, size = 0x12000, scoped, tag = 'internal scratch']
  #allocation2 [shape = 'f32[10,10,128]{2,1,0:T(8,128)}', space=vmem, size = 0x14000, scoped, tag = 'scratch operand']
  %s0 = inlined_call_operand.vmem [shape: bf16[4,8,8,128], index: 0, kind: input, shape index: {}]
  %s1 = inlined_call_operand.vmem [shape: f32[9,128], index: 1, kind: input, shape index: {}]
  %s2 = inlined_call_operand.vmem [shape: f32[1,128], index: 2, kind: input, shape index: {}]
  %s3 = inlined_call_operand.vmem [shape: bf16[4,8,8,128], index: 3, kind: output, shape index: {0}]
  %s4 = inlined_call_operand.vmem [shape: f32[4,1,128], index: 4, kind: output, shape index: {1}]
  %s5 = inlined_call_operand.vmem [shape: f32[4,1,128], index: 5, kind: output, shape index: {2}]
  %6 = xla_tuple %s3, %s4, %s5
  %s7 = sld [smem:[#allocation0]]
  $region61: #{convmixer_adapt_forward.7} parent=0
    _
  %s9 = ssub.s32 1, %s7
  %s10 = scalar_select 0, %s9, %s7
  loop: start=0, step=1, limit=6
  $region2: #{convmixer_adapt_forward.7} parent=0 // loop_pre_header
    _
  $region3: #{convmixer_adapt_forward.7} parent=0 // loop_header
    %s12 = sphi 0, %s16
    %p13 = scmp.ge.s32.totalorder %s12, 6
    %s22 = sphi 0, %s24
    %s25 = sphi 0, %s22
    %s26 = sphi 0, %s25
    %s42 = sphi 0, %s26
    %s46 = sphi 0, %s46
    %s48 = sphi 0, %s46
    %s49 = sphi 0, %s48
    %s63 = sphi 0, %s49
    %s67 = sphi 0, %s67
    %s69 = sphi 0, %s67
    %s70 = sphi 0, %s69
    %s84 = sphi 0, %s70
    %s90 = sphi 0, %s92
    %s93 = sphi 0, %s90
    %s94 = sphi 0, %s93
    %s110 = sphi 0, %s94
    %s116 = sphi 0, %s118
    %s119 = sphi 0, %s116
    %s120 = sphi 0, %s119
    %s136 = sphi 0, %s120
    %s142 = sphi 0, %s144
    %s145 = sphi 0, %s142
    %s146 = sphi 0, %s145
    %s162 = sphi 0, %s146
  $region4: #{convmixer_adapt_forward.7} parent=0 // loop_header_branch
    %15 = sbr.rel (%p13) target = $region8
  $region5: #{convmixer_adapt_forward.7} parent=0 // loop_body
    %s17 = ssub.s32 %s12, 1
    %s18 = ssub.s32 %s12, 2
    %s19 = sadd.s32 %s12, 1
    %s20 = ssub.s32 %s12, %s19
    %p21 = scmp.eq.s32.totalorder %s20, 0
    %s23 = sadd.s32 %s22, 1
    %s24 = scalar_select %p21, %s22, %s23
    %p27 = pneg %p21
    %p28 = scmp.eq.s32.totalorder %s12, 3
    %p29 = por %p27, %p28
    %p30 = scmp.ne.s32.totalorder %s22, %s25
    %p31 = scmp.eq.s32.totalorder %s12, 0
    %p32 = por %p30, %p31
    %p33 = scmp.ne.s32.totalorder %s22, %s25
    %p34 = scmp.eq.s32.totalorder %s17, 3
    %p35 = por %p33, %p34
    %p36 = scmp.ne.s32.totalorder %s25, %s26
    %p37 = scmp.eq.s32.totalorder %s17, 0
    %p38 = por %p36, %p37
    %p39 = scmp.ne.s32.totalorder %s25, %s26
    %p40 = scmp.eq.s32.totalorder %s18, 3
    %p41 = por %p39, %p40
    %p43 = scmp.ne.s32.totalorder %s26, %s42
    %p44 = scmp.eq.s32.totalorder %s18, 0
    %p45 = por %p43, %p44
    %s47 = sadd.s32 %s46, 1
    %p50 = scmp.eq.s32.totalorder %s12, 3
    %p51 = scmp.ne.s32.totalorder %s46, %s48
    %p52 = scmp.eq.s32.totalorder %s12, 0
    %p53 = por %p51, %p52
    %p54 = scmp.ne.s32.totalorder %s46, %s48
    %p55 = scmp.eq.s32.totalorder %s17, 3
    %p56 = por %p54, %p55
    %p57 = scmp.ne.s32.totalorder %s48, %s49
    %p58 = scmp.eq.s32.totalorder %s17, 0
    %p59 = por %p57, %p58
    %p60 = scmp.ne.s32.totalorder %s48, %s49
    %p61 = scmp.eq.s32.totalorder %s18, 3
    %p62 = por %p60, %p61
    %p64 = scmp.ne.s32.totalorder %s49, %s63
    %p65 = scmp.eq.s32.totalorder %s18, 0
    %p66 = por %p64, %p65
    %s68 = sadd.s32 %s67, 1
    %p71 = scmp.eq.s32.totalorder %s12, 3
    %p72 = scmp.ne.s32.totalorder %s67, %s69
    %p73 = scmp.eq.s32.totalorder %s12, 0
    %p74 = por %p72, %p73
    %p75 = scmp.ne.s32.totalorder %s67, %s69
    %p76 = scmp.eq.s32.totalorder %s17, 3
    %p77 = por %p75, %p76
    %p78 = scmp.ne.s32.totalorder %s69, %s70
    %p79 = scmp.eq.s32.totalorder %s17, 0
    %p80 = por %p78, %p79
    %p81 = scmp.ne.s32.totalorder %s69, %s70
    %p82 = scmp.eq.s32.totalorder %s18, 3
    %p83 = por %p81, %p82
    %p85 = scmp.ne.s32.totalorder %s70, %s84
    %p86 = scmp.eq.s32.totalorder %s18, 0
    %p87 = por %p85, %p86
    %s88 = ssub.s32 %s12, %s19
    %p89 = scmp.eq.s32.totalorder %s88, 0
    %s91 = sadd.s32 %s90, 1
    %s92 = scalar_select %p89, %s90, %s91
    %p95 = pneg %p89
    %p96 = scmp.eq.s32.totalorder %s12, 3
    %p97 = por %p95, %p96
    %p98 = scmp.ne.s32.totalorder %s90, %s93
    %p99 = scmp.eq.s32.totalorder %s12, 0
    %p100 = por %p98, %p99
    %p101 = scmp.ne.s32.totalorder %s90, %s93
    %p102 = scmp.eq.s32.totalorder %s17, 3
    %p103 = por %p101, %p102
    %p104 = scmp.ne.s32.totalorder %s93, %s94
    %p105 = scmp.eq.s32.totalorder %s17, 0
    %p106 = por %p104, %p105
    %p107 = scmp.ne.s32.totalorder %s93, %s94
    %p108 = scmp.eq.s32.totalorder %s18, 3
    %p109 = por %p107, %p108
    %p111 = scmp.ne.s32.totalorder %s94, %s110
    %p112 = scmp.eq.s32.totalorder %s18, 0
    %p113 = por %p111, %p112
    %s114 = ssub.s32 %s12, %s19
    %p115 = scmp.eq.s32.totalorder %s114, 0
    %s117 = sadd.s32 %s116, 1
    %s118 = scalar_select %p115, %s116, %s117
    %p121 = pneg %p115
    %p122 = scmp.eq.s32.totalorder %s12, 3
    %p123 = por %p121, %p122
    %p124 = scmp.ne.s32.totalorder %s116, %s119
    %p125 = scmp.eq.s32.totalorder %s12, 0
    %p126 = por %p124, %p125
    %p127 = scmp.ne.s32.totalorder %s116, %s119
    %p128 = scmp.eq.s32.totalorder %s17, 3
    %p129 = por %p127, %p128
    %p130 = scmp.ne.s32.totalorder %s119, %s120
    %p131 = scmp.eq.s32.totalorder %s17, 0
    %p132 = por %p130, %p131
    %p133 = scmp.ne.s32.totalorder %s119, %s120
    %p134 = scmp.eq.s32.totalorder %s18, 3
    %p135 = por %p133, %p134
    %p137 = scmp.ne.s32.totalorder %s120, %s136
    %p138 = scmp.eq.s32.totalorder %s18, 0
    %p139 = por %p137, %p138
    %s140 = ssub.s32 %s12, %s19
    %p141 = scmp.eq.s32.totalorder %s140, 0
    %s143 = sadd.s32 %s142, 1
    %s144 = scalar_select %p141, %s142, %s143
    %p147 = pneg %p141
    %p148 = scmp.eq.s32.totalorder %s12, 3
    %p149 = por %p147, %p148
    %p150 = scmp.ne.s32.totalorder %s142, %s145
    %p151 = scmp.eq.s32.totalorder %s12, 0
    %p152 = por %p150, %p151
    %p153 = scmp.ne.s32.totalorder %s142, %s145
    %p154 = scmp.eq.s32.totalorder %s17, 3
    %p155 = por %p153, %p154
    %p156 = scmp.ne.s32.totalorder %s145, %s146
    %p157 = scmp.eq.s32.totalorder %s17, 0
    %p158 = por %p156, %p157
    %p159 = scmp.ne.s32.totalorder %s145, %s146
    %p160 = scmp.eq.s32.totalorder %s18, 3
    %p161 = por %p159, %p160
    %p163 = scmp.ne.s32.totalorder %s146, %s162
    %p164 = scmp.eq.s32.totalorder %s18, 0
    %p165 = por %p163, %p164
    %p166 = scmp.le.s32.totalorder 1, %s12
    %p167 = scmp.lt.s32.totalorder %s12, 5
    %p168 = pnand %p166, %p167
    %p169 = pneg %p168
    // Predicated region
    $region9: #{convmixer_adapt_forward.7} parent=5 // pred_check
      _
    $region10: #{convmixer_adapt_forward.7} parent=5 // pred_check_branch
      %171 = sbr.rel (%p168) target = $region12
    $region11: #{convmixer_adapt_forward.7} parent=5 // pred_region
      %s172 = ssub.s32 %s12, 1
      // Predicated region
      $region13: #{convmixer_adapt_forward.7} parent=11 // pred_check
        %p173 = pneg %p59
      $region14: #{convmixer_adapt_forward.7} parent=11 // pred_check_branch
        %175 = sbr.rel (%p173) target = $region16
      $region15: #{convmixer_adapt_forward.7} parent=11 // pred_region
        _
      $region16: #{convmixer_adapt_forward.7} parent=11 // pred_fallthru
        _
      // Predicated region
      $region17: #{convmixer_adapt_forward.7} parent=11 // pred_check
        %p176 = pneg %p80
      $region18: #{convmixer_adapt_forward.7} parent=11 // pred_check_branch
        %178 = sbr.rel (%p176) target = $region20
      $region19: #{convmixer_adapt_forward.7} parent=11 // pred_region
        _
      $region20: #{convmixer_adapt_forward.7} parent=11 // pred_fallthru
        _
    $region12: #{convmixer_adapt_forward.7} parent=5 // pred_fallthru
      _
    %p179 = scmp.lt.s32.totalorder %s12, 4
    // Predicated region
    $region21: #{convmixer_adapt_forward.7} parent=5 // pred_check
      %p180 = pneg %p179
    $region22: #{convmixer_adapt_forward.7} parent=5 // pred_check_branch
      %182 = sbr.rel (%p180) target = $region24
    $region23: #{convmixer_adapt_forward.7} parent=5 // pred_region
      // Predicated region
      $region25: #{convmixer_adapt_forward.7} parent=23 // pred_check
        %p183 = pneg %p32
      $region26: #{convmixer_adapt_forward.7} parent=23 // pred_check_branch
        %185 = sbr.rel (%p183) target = $region28
      $region27: #{convmixer_adapt_forward.7} parent=23 // pred_region
        %p186 = scmp.lt.s32.totalorder %s12, 3
        %s187 = scalar_select %p186, %s12, 3
        %s188 = smul.addr %s187, 8
        %s189 = smul.addr %s188, 4
        %s190 = scalar_lea.vmem %s0, %s189
      $region28: #{convmixer_adapt_forward.7} parent=23 // pred_fallthru
        _
    $region24: #{convmixer_adapt_forward.7} parent=5 // pred_fallthru
      _
    %p191 = scmp.le.s32.totalorder 1, %s12
    %p192 = scmp.lt.s32.totalorder %s12, 5
    %p193 = pnand %p191, %p192
    %p194 = pneg %p193
    // Predicated region
    $region29: #{convmixer_adapt_forward.7} parent=5 // pred_check
      _
    $region30: #{convmixer_adapt_forward.7} parent=5 // pred_check_branch
      %196 = sbr.rel (%p193) target = $region32
    $region31: #{convmixer_adapt_forward.7} parent=5 // pred_region
      %s197 = ssub.s32 %s12, 1
      %p198 = scmp.lt.s32.totalorder %s17, 3
      %s199 = scalar_select %p198, %s17, 3
      %s200 = smul.addr %s199, 8
      %s201 = smul.addr %s200, 4
      %s202 = scalar_lea.vmem %s0, %s201
      %p203 = pneg %p38
      %p204 = pneg %p35
      %p205 = pneg %p59
      %p206 = pneg %p56
      %p207 = pneg %p80
      %p208 = pneg %p77
      %p209 = pneg %p106
      %p210 = pneg %p103
      %p211 = scmp.lt.s32.totalorder %s17, 3
      %s212 = scalar_select %p211, %s17, 3
      %s213 = smul.addr %s212, 8
      %s214 = smul.addr %s213, 4
      %s215 = scalar_lea.vmem %s3, %s214
      %p216 = pneg %p132
      %p217 = pneg %p129
      %p218 = scmp.lt.s32.totalorder %s17, 3
      %s219 = scalar_select %p218, %s17, 3
      %s220 = scalar_lea.vmem %s4, %s219
      %p221 = pneg %p158
      %p222 = pneg %p155
      %p223 = scmp.lt.s32.totalorder %s17, 3
      %s224 = scalar_select %p223, %s17, 3
      %s225 = scalar_lea.vmem %s5, %s224
      %p226 = scmp.lt.s32.totalorder %s17, 3
      %s227 = scalar_select %p226, %s17, 3
      %s228 = smul.addr %s227, 8
      %s229 = smul.addr %s228, 4
      %s230 = scalar_lea.vmem %s0, %s229
      %p231 = scmp.lt.s32.totalorder %s17, 3
      %s232 = scalar_select %p231, %s17, 3
      %s233 = smul.addr %s232, 8
      %s234 = smul.addr %s233, 4
      %s235 = scalar_lea.vmem %s3, %s234
      %p236 = scmp.lt.s32.totalorder %s17, 3
      %s237 = scalar_select %p236, %s17, 3
      %s238 = scalar_lea.vmem %s4, %s237
      %p239 = scmp.lt.s32.totalorder %s17, 3
      %s240 = scalar_select %p239, %s17, 3
      %s241 = scalar_lea.vmem %s5, %s240
      %242 = vst [vmem:[#allocation2] sm:$0xff] 0.0
      %243 = vst [vmem:[#allocation2 + $0x8] sm:$0x3] 0.0
      %s244 = scalar_lea.vmem [#allocation2], 144
      %245 = vst [vmem:[%s244] sm:$0xff] 0.0
      %246 = vst [vmem:[%s244 + $0x8] sm:$0x3] 0.0
      %247 = vst [vmem:[#allocation2] sm:$0x1] 0.0
      %248 = vst [vmem:[#allocation2 + $0x10] sm:$0x1] 0.0
      %249 = vst [vmem:[#allocation2 + $0x20] sm:$0x1] 0.0
      %250 = vst [vmem:[#allocation2 + $0x30] sm:$0x1] 0.0
      %251 = vst [vmem:[#allocation2 + $0x40] sm:$0x1] 0.0
      %252 = vst [vmem:[#allocation2 + $0x50] sm:$0x1] 0.0
      %253 = vst [vmem:[#allocation2 + $0x60] sm:$0x1] 0.0
      %254 = vst [vmem:[#allocation2 + $0x70] sm:$0x1] 0.0
      %255 = vst [vmem:[#allocation2 + $0x80] sm:$0x1] 0.0
      %256 = vst [vmem:[#allocation2 + $0x90] sm:$0x1] 0.0
      %257 = vst [vmem:[#allocation2 + $0x9] sm:$0x1] 0.0
      %258 = vst [vmem:[#allocation2 + $0x19] sm:$0x1] 0.0
      %259 = vst [vmem:[#allocation2 + $0x29] sm:$0x1] 0.0
      %260 = vst [vmem:[#allocation2 + $0x39] sm:$0x1] 0.0
      %261 = vst [vmem:[#allocation2 + $0x49] sm:$0x1] 0.0
      %262 = vst [vmem:[#allocation2 + $0x59] sm:$0x1] 0.0
      %263 = vst [vmem:[#allocation2 + $0x69] sm:$0x1] 0.0
      %264 = vst [vmem:[#allocation2 + $0x79] sm:$0x1] 0.0
      %265 = vst [vmem:[#allocation2 + $0x89] sm:$0x1] 0.0
      %266 = vst [vmem:[#allocation2 + $0x99] sm:$0x1] 0.0
      %v267 = vld [vmem:[%s230] sm:$0xf]
      %v268 = vld [vmem:[%s230 + $0x4] sm:$0xf]
      %v269 = vld [vmem:[%s230 + $0x8] sm:$0xf]
      %v270 = vld [vmem:[%s230 + $0xc] sm:$0xf]
      %v271 = vld [vmem:[%s230 + $0x10] sm:$0xf]
      %v272 = vld [vmem:[%s230 + $0x14] sm:$0xf]
      %v273 = vld [vmem:[%s230 + $0x18] sm:$0xf]
      %v274 = vld [vmem:[%s230 + $0x1c] sm:$0xf]
      %v275 = vunpack.c.l.bf16 %v267
      %v276 = vunpack.c.l.bf16 %v268
      %v277 = vunpack.c.l.bf16 %v269
      %v278 = vunpack.c.l.bf16 %v270
      %v279 = vunpack.c.l.bf16 %v271
      %v280 = vunpack.c.l.bf16 %v272
      %v281 = vunpack.c.l.bf16 %v273
      %v282 = vunpack.c.l.bf16 %v274
      %s283 = scalar_lea.vmem [#allocation2], 16
      %284 = vst [vmem:[%s283 + $0x1] sm:$0xff] %v275
      %285 = vst [vmem:[%s283 + $0x11] sm:$0xff] %v276
      %286 = vst [vmem:[%s283 + $0x21] sm:$0xff] %v277
      %287 = vst [vmem:[%s283 + $0x31] sm:$0xff] %v278
      %288 = vst [vmem:[%s283 + $0x41] sm:$0xff] %v279
      %289 = vst [vmem:[%s283 + $0x51] sm:$0xff] %v280
      %290 = vst [vmem:[%s283 + $0x61] sm:$0xff] %v281
      %291 = vst [vmem:[%s283 + $0x71] sm:$0xff] %v282
      %v292 = vld [vmem:[%s1] sm:$0xff]
      %v293 = vld [vmem:[%s1 + $0x8] sm:$0x1]
      %v294 = vld [vmem:[#allocation2] sm:$0xff]
      %v295 = vld [vmem:[#allocation2 + $0x10] sm:$0xff]
      %v296 = vld [vmem:[#allocation2 + $0x20] sm:$0xff]
      %v297 = vld [vmem:[#allocation2 + $0x30] sm:$0xff]
      %v298 = vld [vmem:[#allocation2 + $0x40] sm:$0xff]
      %v299 = vld [vmem:[#allocation2 + $0x50] sm:$0xff]
      %v300 = vld [vmem:[#allocation2 + $0x60] sm:$0xff]
      %v301 = vld [vmem:[#allocation2 + $0x70] sm:$0xff]
      %v302 = vld [vmem:[#allocation2 + $0x80] sm:$0xff]
      %v303 = vld [vmem:[#allocation2 + $0x90] sm:$0xff]
      %v304 = vlaneseq
      %v305 = vshrl.u32 %v304, 7
      %v306 = vsub.s32 0, %v305
      %v307 = vrot.slane %v292, %v306
      %v308 = vmul.f32 %v294, %v307
      %v309 = vmul.f32 %v295, %v307
      %v310 = vmul.f32 %v296, %v307
      %v311 = vmul.f32 %v297, %v307
      %v312 = vmul.f32 %v298, %v307
      %v313 = vmul.f32 %v299, %v307
      %v314 = vmul.f32 %v300, %v307
      %v315 = vmul.f32 %v301, %v307
      %v316 = vadd.f32 %v308, 0.0
      %v317 = vadd.f32 %v309, 0.0
      %v318 = vadd.f32 %v310, 0.0
      %v319 = vadd.f32 %v311, 0.0
      %v320 = vadd.f32 %v312, 0.0
      %v321 = vadd.f32 %v313, 0.0
      %v322 = vadd.f32 %v314, 0.0
      %v323 = vadd.f32 %v315, 0.0
      %v324 = vlaneseq
      %v325 = vshrl.u32 %v324, 7
      %v326 = vsub.s32 3, %v325
      %v327 = vrot.slane %v292, %v326
      %v328 = vmul.f32 %v295, %v327
      %v329 = vmul.f32 %v296, %v327
      %v330 = vmul.f32 %v297, %v327
      %v331 = vmul.f32 %v298, %v327
      %v332 = vmul.f32 %v299, %v327
      %v333 = vmul.f32 %v300, %v327
      %v334 = vmul.f32 %v301, %v327
      %v335 = vmul.f32 %v302, %v327
      %v336 = vadd.f32 %v316, %v328
      %v337 = vadd.f32 %v317, %v329
      %v338 = vadd.f32 %v318, %v330
      %v339 = vadd.f32 %v319, %v331
      %v340 = vadd.f32 %v320, %v332
      %v341 = vadd.f32 %v321, %v333
      %v342 = vadd.f32 %v322, %v334
      %v343 = vadd.f32 %v323, %v335
      %v344 = vlaneseq
      %v345 = vshrl.u32 %v344, 7
      %v346 = vsub.s32 6, %v345
      %v347 = vrot.slane %v292, %v346
      %v348 = vmul.f32 %v296, %v347
      %v349 = vmul.f32 %v297, %v347
      %v350 = vmul.f32 %v298, %v347
      %v351 = vmul.f32 %v299, %v347
      %v352 = vmul.f32 %v300, %v347
      %v353 = vmul.f32 %v301, %v347
      %v354 = vmul.f32 %v302, %v347
      %v355 = vmul.f32 %v303, %v347
      %v356 = vadd.f32 %v336, %v348
      %v357 = vadd.f32 %v337, %v349
      %v358 = vadd.f32 %v338, %v350
      %v359 = vadd.f32 %v339, %v351
      %v360 = vadd.f32 %v340, %v352
      %v361 = vadd.f32 %v341, %v353
      %v362 = vadd.f32 %v342, %v354
      %v363 = vadd.f32 %v343, %v355
      %v364 = vld [vmem:[#allocation2 + $0x1] sm:$0xff]
      %v365 = vld [vmem:[#allocation2 + $0x11] sm:$0xff]
      %v366 = vld [vmem:[#allocation2 + $0x21] sm:$0xff]
      %v367 = vld [vmem:[#allocation2 + $0x31] sm:$0xff]
      %v368 = vld [vmem:[#allocation2 + $0x41] sm:$0xff]
      %v369 = vld [vmem:[#allocation2 + $0x51] sm:$0xff]
      %v370 = vld [vmem:[#allocation2 + $0x61] sm:$0xff]
      %v371 = vld [vmem:[#allocation2 + $0x71] sm:$0xff]
      %v372 = vld [vmem:[#allocation2 + $0x81] sm:$0xff]
      %v373 = vld [vmem:[#allocation2 + $0x91] sm:$0xff]
      %v374 = vlaneseq
      %v375 = vshrl.u32 %v374, 7
      %v376 = vsub.s32 1, %v375
      %v377 = vrot.slane %v292, %v376
      %v378 = vmul.f32 %v364, %v377
      %v379 = vmul.f32 %v365, %v377
      %v380 = vmul.f32 %v366, %v377
      %v381 = vmul.f32 %v367, %v377
      %v382 = vmul.f32 %v368, %v377
      %v383 = vmul.f32 %v369, %v377
      %v384 = vmul.f32 %v370, %v377
      %v385 = vmul.f32 %v371, %v377
      %v386 = vadd.f32 %v356, %v378
      %v387 = vadd.f32 %v357, %v379
      %v388 = vadd.f32 %v358, %v380
      %v389 = vadd.f32 %v359, %v381
      %v390 = vadd.f32 %v360, %v382
      %v391 = vadd.f32 %v361, %v383
      %v392 = vadd.f32 %v362, %v384
      %v393 = vadd.f32 %v363, %v385
      %v394 = vlaneseq
      %v395 = vshrl.u32 %v394, 7
      %v396 = vsub.s32 4, %v395
      %v397 = vrot.slane %v292, %v396
      %v398 = vmul.f32 %v365, %v397
      %v399 = vmul.f32 %v366, %v397
      %v400 = vmul.f32 %v367, %v397
      %v401 = vmul.f32 %v368, %v397
      %v402 = vmul.f32 %v369, %v397
      %v403 = vmul.f32 %v370, %v397
      %v404 = vmul.f32 %v371, %v397
      %v405 = vmul.f32 %v372, %v397
      %v406 = vadd.f32 %v386, %v398
      %v407 = vadd.f32 %v387, %v399
      %v408 = vadd.f32 %v388, %v400
      %v409 = vadd.f32 %v389, %v401
      %v410 = vadd.f32 %v390, %v402
      %v411 = vadd.f32 %v391, %v403
      %v412 = vadd.f32 %v392, %v404
      %v413 = vadd.f32 %v393, %v405
      %v414 = vlaneseq
      %v415 = vshrl.u32 %v414, 7
      %v416 = vsub.s32 7, %v415
      %v417 = vrot.slane %v292, %v416
      %v418 = vmul.f32 %v366, %v417
      %v419 = vmul.f32 %v367, %v417
      %v420 = vmul.f32 %v368, %v417
      %v421 = vmul.f32 %v369, %v417
      %v422 = vmul.f32 %v370, %v417
      %v423 = vmul.f32 %v371, %v417
      %v424 = vmul.f32 %v372, %v417
      %v425 = vmul.f32 %v373, %v417
      %v426 = vadd.f32 %v406, %v418
      %v427 = vadd.f32 %v407, %v419
      %v428 = vadd.f32 %v408, %v420
      %v429 = vadd.f32 %v409, %v421
      %v430 = vadd.f32 %v410, %v422
      %v431 = vadd.f32 %v411, %v423
      %v432 = vadd.f32 %v412, %v424
      %v433 = vadd.f32 %v413, %v425
      %v434 = vld [vmem:[#allocation2 + $0x2] sm:$0xff]
      %v435 = vld [vmem:[#allocation2 + $0x12] sm:$0xff]
      %v436 = vld [vmem:[#allocation2 + $0x22] sm:$0xff]
      %v437 = vld [vmem:[#allocation2 + $0x32] sm:$0xff]
      %v438 = vld [vmem:[#allocation2 + $0x42] sm:$0xff]
      %v439 = vld [vmem:[#allocation2 + $0x52] sm:$0xff]
      %v440 = vld [vmem:[#allocation2 + $0x62] sm:$0xff]
      %v441 = vld [vmem:[#allocation2 + $0x72] sm:$0xff]
      %v442 = vld [vmem:[#allocation2 + $0x82] sm:$0xff]
      %v443 = vld [vmem:[#allocation2 + $0x92] sm:$0xff]
      %v444 = vlaneseq
      %v445 = vshrl.u32 %v444, 7
      %v446 = vsub.s32 2, %v445
      %v447 = vrot.slane %v292, %v446
      %v448 = vmul.f32 %v434, %v447
      %v449 = vmul.f32 %v435, %v447
      %v450 = vmul.f32 %v436, %v447
      %v451 = vmul.f32 %v437, %v447
      %v452 = vmul.f32 %v438, %v447
      %v453 = vmul.f32 %v439, %v447
      %v454 = vmul.f32 %v440, %v447
      %v455 = vmul.f32 %v441, %v447
      %v456 = vadd.f32 %v426, %v448
      %v457 = vadd.f32 %v427, %v449
      %v458 = vadd.f32 %v428, %v450
      %v459 = vadd.f32 %v429, %v451
      %v460 = vadd.f32 %v430, %v452
      %v461 = vadd.f32 %v431, %v453
      %v462 = vadd.f32 %v432, %v454
      %v463 = vadd.f32 %v433, %v455
      %v464 = vlaneseq
      %v465 = vshrl.u32 %v464, 7
      %v466 = vsub.s32 5, %v465
      %v467 = vrot.slane %v292, %v466
      %v468 = vmul.f32 %v435, %v467
      %v469 = vmul.f32 %v436, %v467
      %v470 = vmul.f32 %v437, %v467
      %v471 = vmul.f32 %v438, %v467
      %v472 = vmul.f32 %v439, %v467
      %v473 = vmul.f32 %v440, %v467
      %v474 = vmul.f32 %v441, %v467
      %v475 = vmul.f32 %v442, %v467
      %v476 = vadd.f32 %v456, %v468
      %v477 = vadd.f32 %v457, %v469
      %v478 = vadd.f32 %v458, %v470
      %v479 = vadd.f32 %v459, %v471
      %v480 = vadd.f32 %v460, %v472
      %v481 = vadd.f32 %v461, %v473
      %v482 = vadd.f32 %v462, %v474
      %v483 = vadd.f32 %v463, %v475
      %v484 = vlaneseq
      %v485 = vshrl.u32 %v484, 7
      %v486 = vsub.s32 0, %v485
      %v487 = vrot.slane %v293, %v486
      %v488 = vmul.f32 %v436, %v487
      %v489 = vmul.f32 %v437, %v487
      %v490 = vmul.f32 %v438, %v487
      %v491 = vmul.f32 %v439, %v487
      %v492 = vmul.f32 %v440, %v487
      %v493 = vmul.f32 %v441, %v487
      %v494 = vmul.f32 %v442, %v487
      %v495 = vmul.f32 %v443, %v487
      %v496 = vadd.f32 %v476, %v488
      %v497 = vadd.f32 %v477, %v489
      %v498 = vadd.f32 %v478, %v490
      %v499 = vadd.f32 %v479, %v491
      %v500 = vadd.f32 %v480, %v492
      %v501 = vadd.f32 %v481, %v493
      %v502 = vadd.f32 %v482, %v494
      %v503 = vadd.f32 %v483, %v495
      %v504 = vld [vmem:[%s2] sm:$0x1]
      %v506 = vlaneseq
      %v507 = vshrl.u32 %v506, 7
      %v508 = vsub.s32 0, %v507
      %v509 = vrot.slane %v504, %v508
      %v511 = vadd.f32 %v496, %v509
      %v512 = vadd.f32 %v497, %v509
      %v513 = vadd.f32 %v498, %v509
      %v514 = vadd.f32 %v499, %v509
      %v515 = vadd.f32 %v500, %v509
      %v516 = vadd.f32 %v501, %v509
      %v517 = vadd.f32 %v502, %v509
      %v518 = vadd.f32 %v503, %v509
      %v519 = vmul.f32 %v511, 0.5
      %v520 = vmul.f32 %v512, 0.5
      %v521 = vmul.f32 %v513, 0.5
      %v522 = vmul.f32 %v514, 0.5
      %v523 = vmul.f32 %v515, 0.5
      %v524 = vmul.f32 %v516, 0.5
      %v525 = vmul.f32 %v517, 0.5
      %v526 = vmul.f32 %v518, 0.5
      %v527 = vmul.f32 %v511, 0.044715
      %v528 = vmul.f32 %v512, 0.044715
      %v529 = vmul.f32 %v513, 0.044715
      %v530 = vmul.f32 %v514, 0.044715
      %v531 = vmul.f32 %v515, 0.044715
      %v532 = vmul.f32 %v516, 0.044715
      %v533 = vmul.f32 %v517, 0.044715
      %v534 = vmul.f32 %v518, 0.044715
      %v535 = vmul.f32 %v527, %v511
      %v536 = vmul.f32 %v528, %v512
      %v537 = vmul.f32 %v529, %v513
      %v538 = vmul.f32 %v530, %v514
      %v539 = vmul.f32 %v531, %v515
      %v540 = vmul.f32 %v532, %v516
      %v541 = vmul.f32 %v533, %v517
      %v542 = vmul.f32 %v534, %v518
      %v543 = vmul.f32 %v535, %v511
      %v544 = vmul.f32 %v536, %v512
      %v545 = vmul.f32 %v537, %v513
      %v546 = vmul.f32 %v538, %v514
      %v547 = vmul.f32 %v539, %v515
      %v548 = vmul.f32 %v540, %v516
      %v549 = vmul.f32 %v541, %v517
      %v550 = vmul.f32 %v542, %v518
      %v551 = vadd.f32 %v511, %v543
      %v552 = vadd.f32 %v512, %v544
      %v553 = vadd.f32 %v513, %v545
      %v554 = vadd.f32 %v514, %v546
      %v555 = vadd.f32 %v515, %v547
      %v556 = vadd.f32 %v516, %v548
      %v557 = vadd.f32 %v517, %v549
      %v558 = vadd.f32 %v518, %v550
      %v559 = vmul.f32 %v551, 0.7978846
      %v560 = vmul.f32 %v552, 0.7978846
      %v561 = vmul.f32 %v553, 0.7978846
      %v562 = vmul.f32 %v554, 0.7978846
      %v563 = vmul.f32 %v555, 0.7978846
      %v564 = vmul.f32 %v556, 0.7978846
      %v565 = vmul.f32 %v557, 0.7978846
      %v566 = vmul.f32 %v558, 0.7978846
      %v567 = vtanh.pop %v559
      %v568 = vtanh.pop %v560
      %v569 = vtanh.pop %v561
      %v570 = vtanh.pop %v562
      %v571 = vtanh.pop %v563
      %v572 = vtanh.pop %v564
      %v573 = vtanh.pop %v565
      %v574 = vtanh.pop %v566
      %v575 = vadd.f32 %v567, 1.0
      %v576 = vadd.f32 %v568, 1.0
      %v577 = vadd.f32 %v569, 1.0
      %v578 = vadd.f32 %v570, 1.0
      %v579 = vadd.f32 %v571, 1.0
      %v580 = vadd.f32 %v572, 1.0
      %v581 = vadd.f32 %v573, 1.0
      %v582 = vadd.f32 %v574, 1.0
      %v583 = vmul.f32 %v519, %v575
      %v584 = vmul.f32 %v520, %v576
      %v585 = vmul.f32 %v521, %v577
      %v586 = vmul.f32 %v522, %v578
      %v587 = vmul.f32 %v523, %v579
      %v588 = vmul.f32 %v524, %v580
      %v589 = vmul.f32 %v525, %v581
      %v590 = vmul.f32 %v526, %v582
      %v591 = vpack.c.bf16 %v583, %v583
      %v592 = vpack.c.bf16 %v584, %v584
      %v593 = vpack.c.bf16 %v585, %v585
      %v594 = vpack.c.bf16 %v586, %v586
      %v595 = vpack.c.bf16 %v587, %v587
      %v596 = vpack.c.bf16 %v588, %v588
      %v597 = vpack.c.bf16 %v589, %v589
      %v598 = vpack.c.bf16 %v590, %v590
      %599 = vst [vmem:[%s235] sm:$0xf] %v591
      %600 = vst [vmem:[%s235 + $0x4] sm:$0xf] %v592
      %601 = vst [vmem:[%s235 + $0x8] sm:$0xf] %v593
      %602 = vst [vmem:[%s235 + $0xc] sm:$0xf] %v594
      %603 = vst [vmem:[%s235 + $0x10] sm:$0xf] %v595
      %604 = vst [vmem:[%s235 + $0x14] sm:$0xf] %v596
      %605 = vst [vmem:[%s235 + $0x18] sm:$0xf] %v597
      %606 = vst [vmem:[%s235 + $0x1c] sm:$0xf] %v598
      %v607 = vadd.f32 %v583, %v584
      %v608 = vadd.f32 %v607, %v585
      %v609 = vadd.f32 %v608, %v586
      %v610 = vadd.f32 %v609, %v587
      %v611 = vadd.f32 %v610, %v588
      %v612 = vadd.f32 %v611, %v589
      %v613 = vadd.f32 %v612, %v590
      %v614 = vrot.slane %v613, 4
      %v615 = vadd.f32 %v613, %v614
      %v616 = vrot.slane %v615, 2
      %v617 = vadd.f32 %v615, %v616
      %v618 = vrot.slane %v617, 1
      %v619 = vadd.f32 %v617, %v618
      %620 = vst [vmem:[%s238] sm:$0x1] %v619
      %v621 = vmul.f32 %v583, %v583
      %v622 = vmul.f32 %v584, %v584
      %v623 = vmul.f32 %v585, %v585
      %v624 = vmul.f32 %v586, %v586
      %v625 = vmul.f32 %v587, %v587
      %v626 = vmul.f32 %v588, %v588
      %v627 = vmul.f32 %v589, %v589
      %v628 = vmul.f32 %v590, %v590
      %v629 = vadd.f32 %v621, %v622
      %v630 = vadd.f32 %v629, %v623
      %v631 = vadd.f32 %v630, %v624
      %v632 = vadd.f32 %v631, %v625
      %v633 = vadd.f32 %v632, %v626
      %v634 = vadd.f32 %v633, %v627
      %v635 = vadd.f32 %v634, %v628
      %v636 = vrot.slane %v635, 4
      %v637 = vadd.f32 %v635, %v636
      %v638 = vrot.slane %v637, 2
      %v639 = vadd.f32 %v637, %v638
      %v640 = vrot.slane %v639, 1
      %v641 = vadd.f32 %v639, %v640
      %642 = vst [vmem:[%s241] sm:$0x1] %v641
      %p643 = scmp.lt.s32.totalorder %s17, 3
      %s644 = scalar_select %p643, %s17, 3
      %s645 = smul.addr %s644, 8
      %s646 = smul.addr %s645, 4
      %s647 = scalar_lea.vmem %s3, %s646
      %p648 = scmp.lt.s32.totalorder %s17, 3
      %s649 = scalar_select %p648, %s17, 3
      %s650 = scalar_lea.vmem %s4, %s649
      %p651 = scmp.lt.s32.totalorder %s17, 3
      %s652 = scalar_select %p651, %s17, 3
      %s653 = scalar_lea.vmem %s5, %s652
      // Predicated region
      $region33: #{convmixer_adapt_forward.7} parent=31 // pred_check
        %p654 = pneg %p103
      $region34: #{convmixer_adapt_forward.7} parent=31 // pred_check_branch
        %656 = sbr.rel (%p654) target = $region36
      $region35: #{convmixer_adapt_forward.7} parent=31 // pred_region
        _
      $region36: #{convmixer_adapt_forward.7} parent=31 // pred_fallthru
        _
      // Predicated region
      $region37: #{convmixer_adapt_forward.7} parent=31 // pred_check
        %p657 = pneg %p129
      $region38: #{convmixer_adapt_forward.7} parent=31 // pred_check_branch
        %659 = sbr.rel (%p657) target = $region40
      $region39: #{convmixer_adapt_forward.7} parent=31 // pred_region
        _
      $region40: #{convmixer_adapt_forward.7} parent=31 // pred_fallthru
        _
      // Predicated region
      $region41: #{convmixer_adapt_forward.7} parent=31 // pred_check
        %p660 = pneg %p155
      $region42: #{convmixer_adapt_forward.7} parent=31 // pred_check_branch
        %662 = sbr.rel (%p660) target = $region44
      $region43: #{convmixer_adapt_forward.7} parent=31 // pred_region
        _
      $region44: #{convmixer_adapt_forward.7} parent=31 // pred_fallthru
        _
    $region32: #{convmixer_adapt_forward.7} parent=5 // pred_fallthru
      _
    %p663 = scmp.le.s32.totalorder 2, %s12
    // Predicated region
    $region45: #{convmixer_adapt_forward.7} parent=5 // pred_check
      %p664 = pneg %p663
    $region46: #{convmixer_adapt_forward.7} parent=5 // pred_check_branch
      %666 = sbr.rel (%p664) target = $region48
    $region47: #{convmixer_adapt_forward.7} parent=5 // pred_region
      %s667 = ssub.s32 %s12, 2
      // Predicated region
      $region49: #{convmixer_adapt_forward.7} parent=47 // pred_check
        %p668 = pneg %p109
      $region50: #{convmixer_adapt_forward.7} parent=47 // pred_check_branch
        %670 = sbr.rel (%p668) target = $region52
      $region51: #{convmixer_adapt_forward.7} parent=47 // pred_region
        %p671 = scmp.lt.s32.totalorder %s18, 3
        %s672 = scalar_select %p671, %s18, 3
        %s673 = smul.addr %s672, 8
        %s674 = smul.addr %s673, 4
        %s675 = scalar_lea.vmem %s3, %s674
      $region52: #{convmixer_adapt_forward.7} parent=47 // pred_fallthru
        _
      // Predicated region
      $region53: #{convmixer_adapt_forward.7} parent=47 // pred_check
        %p676 = pneg %p135
      $region54: #{convmixer_adapt_forward.7} parent=47 // pred_check_branch
        %678 = sbr.rel (%p676) target = $region56
      $region55: #{convmixer_adapt_forward.7} parent=47 // pred_region
        %p679 = scmp.lt.s32.totalorder %s18, 3
        %s680 = scalar_select %p679, %s18, 3
        %s681 = scalar_lea.vmem %s4, %s680
      $region56: #{convmixer_adapt_forward.7} parent=47 // pred_fallthru
        _
      // Predicated region
      $region57: #{convmixer_adapt_forward.7} parent=47 // pred_check
        %p682 = pneg %p161
      $region58: #{convmixer_adapt_forward.7} parent=47 // pred_check_branch
        %684 = sbr.rel (%p682) target = $region60
      $region59: #{convmixer_adapt_forward.7} parent=47 // pred_region
        %p685 = scmp.lt.s32.totalorder %s18, 3
        %s686 = scalar_select %p685, %s18, 3
        %s687 = scalar_lea.vmem %s5, %s686
      $region60: #{convmixer_adapt_forward.7} parent=47 // pred_fallthru
        _
    $region48: #{convmixer_adapt_forward.7} parent=5 // pred_fallthru
      _
  $region6: #{convmixer_adapt_forward.7} parent=0 // loop_footer
    %s16 = sadd.s32 1, %s12
  $region7: #{convmixer_adapt_forward.7} parent=0 // loop_footer_branch
    %11 = sbr.rel target = $region3
  $region8: #{convmixer_adapt_forward.7} parent=0 // loop_exit
    _

// kernel: convmixer_adapt_forward.6
$region0: #{convmixer_adapt_forward.6}
  #allocation0 [shape = 'u32[]', space=smem, size = 0x4, offset = 0x4, fixed_abs, tag = 'smem constant byte address 0x4 - core index']
  #allocation1 [shape = 'u32[144,128]{1,0:T(1,128)}', space=vmem, size = 0x12000, scoped, tag = 'internal scratch']
  %s0 = inlined_call_operand.vmem [shape: bf16[256,128], index: 0, kind: input, shape index: {}]
  %s1 = inlined_call_operand.vmem [shape: bf16[128,128], index: 1, kind: input, shape index: {}]
  %s2 = inlined_call_operand.vmem [shape: f32[1,128], index: 2, kind: input, shape index: {}]
  %s3 = inlined_call_operand.vmem [shape: bf16[256,128], index: 3, kind: output, shape index: {0}]
  %s4 = inlined_call_operand.vmem [shape: f32[1,1,128], index: 4, kind: output, shape index: {1}]
  %s5 = inlined_call_operand.vmem [shape: f32[1,1,128], index: 5, kind: output, shape index: {2}]
  %6 = xla_tuple %s3, %s4, %s5
  %s7 = sld [smem:[#allocation0]]
  $region38: #{convmixer_adapt_forward.6} parent=0
    _
  %s9 = ssub.s32 1, %s7
  %s10 = scalar_select 0, %s9, %s7
  // Predicated region
  $region2: #{convmixer_adapt_forward.6} parent=0 // pred_check
    _
  $region3: #{convmixer_adapt_forward.6} parent=0 // pred_check_branch
    %12 = sbr.rel (0) target = $region5
  $region4: #{convmixer_adapt_forward.6} parent=0 // pred_region
    _
  $region5: #{convmixer_adapt_forward.6} parent=0 // pred_fallthru
    _
  // Predicated region
  $region6: #{convmixer_adapt_forward.6} parent=0 // pred_check
    _
  $region7: #{convmixer_adapt_forward.6} parent=0 // pred_check_branch
    %14 = sbr.rel (0) target = $region9
  $region8: #{convmixer_adapt_forward.6} parent=0 // pred_region
    _
  $region9: #{convmixer_adapt_forward.6} parent=0 // pred_fallthru
    _
  // Predicated region
  $region10: #{convmixer_adapt_forward.6} parent=0 // pred_check
    _
  $region11: #{convmixer_adapt_forward.6} parent=0 // pred_check_branch
    %16 = sbr.rel (0) target = $region13
  $region12: #{convmixer_adapt_forward.6} parent=0 // pred_region
    _
  $region13: #{convmixer_adapt_forward.6} parent=0 // pred_fallthru
    _
  %v18 = vld [vmem:[%s0] sm:$0xf]
  %v19 = vld [vmem:[%s0 + $0x4] sm:$0xf]
  %v20 = vld [vmem:[%s0 + $0x8] sm:$0xf]
  %v21 = vld [vmem:[%s0 + $0xc] sm:$0xf]
  %v22 = vld [vmem:[%s0 + $0x10] sm:$0xf]
  %v23 = vld [vmem:[%s0 + $0x14] sm:$0xf]
  %v24 = vld [vmem:[%s0 + $0x18] sm:$0xf]
  %v25 = vld [vmem:[%s0 + $0x1c] sm:$0xf]
  %v26 = vld [vmem:[%s0 + $0x20] sm:$0xf]
  %v27 = vld [vmem:[%s0 + $0x24] sm:$0xf]
  %v28 = vld [vmem:[%s0 + $0x28] sm:$0xf]
  %v29 = vld [vmem:[%s0 + $0x2c] sm:$0xf]
  %v30 = vld [vmem:[%s0 + $0x30] sm:$0xf]
  %v31 = vld [vmem:[%s0 + $0x34] sm:$0xf]
  %v32 = vld [vmem:[%s0 + $0x38] sm:$0xf]
  %v33 = vld [vmem:[%s0 + $0x3c] sm:$0xf]
  %v34 = vld [vmem:[%s0 + $0x40] sm:$0xf]
  %v35 = vld [vmem:[%s0 + $0x44] sm:$0xf]
  %v36 = vld [vmem:[%s0 + $0x48] sm:$0xf]
  %v37 = vld [vmem:[%s0 + $0x4c] sm:$0xf]
  %v38 = vld [vmem:[%s0 + $0x50] sm:$0xf]
  %v39 = vld [vmem:[%s0 + $0x54] sm:$0xf]
  %v40 = vld [vmem:[%s0 + $0x58] sm:$0xf]
  %v41 = vld [vmem:[%s0 + $0x5c] sm:$0xf]
  %v42 = vld [vmem:[%s0 + $0x60] sm:$0xf]
  %v43 = vld [vmem:[%s0 + $0x64] sm:$0xf]
  %v44 = vld [vmem:[%s0 + $0x68] sm:$0xf]
  %v45 = vld [vmem:[%s0 + $0x6c] sm:$0xf]
  %v46 = vld [vmem:[%s0 + $0x70] sm:$0xf]
  %v47 = vld [vmem:[%s0 + $0x74] sm:$0xf]
  %v48 = vld [vmem:[%s0 + $0x78] sm:$0xf]
  %v49 = vld [vmem:[%s0 + $0x7c] sm:$0xf]
  %v50 = vld [vmem:[%s1] sm:$0xf]
  %v51 = vld [vmem:[%s1 + $0x4] sm:$0xf]
  %v52 = vld [vmem:[%s1 + $0x8] sm:$0xf]
  %v53 = vld [vmem:[%s1 + $0xc] sm:$0xf]
  %v54 = vld [vmem:[%s1 + $0x10] sm:$0xf]
  %v55 = vld [vmem:[%s1 + $0x14] sm:$0xf]
  %v56 = vld [vmem:[%s1 + $0x18] sm:$0xf]
  %v57 = vld [vmem:[%s1 + $0x1c] sm:$0xf]
  %v58 = vld [vmem:[%s1 + $0x20] sm:$0xf]
  %v59 = vld [vmem:[%s1 + $0x24] sm:$0xf]
  %v60 = vld [vmem:[%s1 + $0x28] sm:$0xf]
  %v61 = vld [vmem:[%s1 + $0x2c] sm:$0xf]
  %v62 = vld [vmem:[%s1 + $0x30] sm:$0xf]
  %v63 = vld [vmem:[%s1 + $0x34] sm:$0xf]
  %v64 = vld [vmem:[%s1 + $0x38] sm:$0xf]
  %v65 = vld [vmem:[%s1 + $0x3c] sm:$0xf]
  %v66 = vld [vmem:[%s2] sm:$0x1]
  %v68 = vlaneseq
  %v69 = vshrl.u32 %v68, 7
  %v70 = vsub.s32 0, %v69
  %v71 = vrot.slane %v66, %v70
  %v105 = vunpack.c.l.b16 %v18
  %v106 = vunpack.c.l.b16 %v19
  %v107 = vunpack.c.l.b16 %v20
  %v108 = vunpack.c.l.b16 %v21
  %v109 = vunpack.c.l.b16 %v22
  %v110 = vunpack.c.l.b16 %v23
  %v111 = vunpack.c.l.b16 %v24
  %v112 = vunpack.c.l.b16 %v25
  %v113 = vunpack.c.l.b16 %v26
  %v114 = vunpack.c.l.b16 %v27
  %v115 = vunpack.c.l.b16 %v28
  %v116 = vunpack.c.l.b16 %v29
  %v117 = vunpack.c.l.b16 %v30
  %v118 = vunpack.c.l.b16 %v31
  %v119 = vunpack.c.l.b16 %v32
  %v120 = vunpack.c.l.b16 %v33
  %v121 = vunpack.c.l.b16 %v34
  %v122 = vunpack.c.l.b16 %v35
  %v123 = vunpack.c.l.b16 %v36
  %v124 = vunpack.c.l.b16 %v37
  %v125 = vunpack.c.l.b16 %v38
  %v126 = vunpack.c.l.b16 %v39
  %v127 = vunpack.c.l.b16 %v40
  %v128 = vunpack.c.l.b16 %v41
  %v129 = vunpack.c.l.b16 %v42
  %v130 = vunpack.c.l.b16 %v43
  %v131 = vunpack.c.l.b16 %v44
  %v132 = vunpack.c.l.b16 %v45
  %v133 = vunpack.c.l.b16 %v46
  %v134 = vunpack.c.l.b16 %v47
  %v135 = vunpack.c.l.b16 %v48
  %v136 = vunpack.c.l.b16 %v49
  %v137 = vpack.c.b16 %v106, %v105
  %v138 = vpack.c.b16 %v108, %v107
  %v139 = vpack.c.b16 %v110, %v109
  %v140 = vpack.c.b16 %v112, %v111
  %v141 = vpack.c.b16 %v114, %v113
  %v142 = vpack.c.b16 %v116, %v115
  %v143 = vpack.c.b16 %v118, %v117
  %v144 = vpack.c.b16 %v120, %v119
  %v145 = vpack.c.b16 %v122, %v121
  %v146 = vpack.c.b16 %v124, %v123
  %v147 = vpack.c.b16 %v126, %v125
  %v148 = vpack.c.b16 %v128, %v127
  %v149 = vpack.c.b16 %v130, %v129
  %v150 = vpack.c.b16 %v132, %v131
  %v151 = vpack.c.b16 %v134, %v133
  %v152 = vpack.c.b16 %v136, %v135
  %v185 = vunpack.c.l.b16 %v50
  %v186 = vunpack.c.l.b16 %v51
  %v187 = vunpack.c.l.b16 %v52
  %v188 = vunpack.c.l.b16 %v53
  %v189 = vunpack.c.l.b16 %v54
  %v190 = vunpack.c.l.b16 %v55
  %v191 = vunpack.c.l.b16 %v56
  %v192 = vunpack.c.l.b16 %v57
  %v193 = vunpack.c.l.b16 %v58
  %v194 = vunpack.c.l.b16 %v59
  %v195 = vunpack.c.l.b16 %v60
  %v196 = vunpack.c.l.b16 %v61
  %v197 = vunpack.c.l.b16 %v62
  %v198 = vunpack.c.l.b16 %v63
  %v199 = vunpack.c.l.b16 %v64
  %v200 = vunpack.c.l.b16 %v65
  %v201 = vpack.c.b16 %v186, %v185
  %v202 = vpack.c.b16 %v188, %v187
  %v203 = vpack.c.b16 %v190, %v189
  %v204 = vpack.c.b16 %v192, %v191
  %v205 = vpack.c.b16 %v194, %v193
  %v206 = vpack.c.b16 %v196, %v195
  %v207 = vpack.c.b16 %v198, %v197
  %v208 = vpack.c.b16 %v200, %v199
  %217 = vmatprep.subr.bf16.mxu0 0
  %218 = vmatpush1.bf16.msra.mxu0 %v201
  %219 = vmatprep.subr.bf16.mxu0 0
  %220 = vmatpush1.bf16.msra.mxu0 %v202
  %221 = vmatprep.subr.bf16.mxu0 0
  %222 = vmatpush1.bf16.msra.mxu0 %v203
  %223 = vmatprep.subr.bf16.mxu0 0
  %224 = vmatpush1.bf16.msra.mxu0 %v204
  %225 = vmatprep.subr.bf16.mxu0 0
  %226 = vmatpush1.bf16.msra.mxu0 %v205
  %227 = vmatprep.subr.bf16.mxu0 0
  %228 = vmatpush1.bf16.msra.mxu0 %v206
  %229 = vmatprep.subr.bf16.mxu0 0
  %230 = vmatpush1.bf16.msra.mxu0 %v207
  %231 = vmatprep.subr.bf16.mxu0 0
  %232 = vmatpush1.bf16.msra.mxu0 %v208
  %233 = vmatprep.subr.bf16.mxu0 0
  %234 = vmatpush1.bf16.msra.mxu0 0
  %235 = vmatprep.subr.bf16.mxu0 0
  %236 = vmatpush1.bf16.msra.mxu0 0
  %237 = vmatprep.subr.bf16.mxu0 0
  %238 = vmatpush1.bf16.msra.mxu0 0
  %239 = vmatprep.subr.bf16.mxu0 0
  %240 = vmatpush1.bf16.msra.mxu0 0
  %241 = vmatprep.subr.bf16.mxu0 0
  %242 = vmatpush1.bf16.msra.mxu0 0
  %243 = vmatprep.subr.bf16.mxu0 0
  %244 = vmatpush1.bf16.msra.mxu0 0
  %245 = vmatprep.subr.bf16.mxu0 0
  %246 = vmatpush1.bf16.msra.mxu0 0
  %247 = vmatprep.subr.bf16.mxu0 0
  %248 = vmatpush1.bf16.msra.mxu0 0
  %249 = vmatprep.mubr.bf16.mxu0 0
  %250 = vmatmul.mubr.bf16.gmra.mrb[0].mxu0 %v137
  %v251 = vpop.f32.mrb[0].mxu0
  %v252 = vadd.f32 %v71, %v251
  %v253 = vpop.f32.mrb[0].mxu0
  %v254 = vpop.f32.mrb[0].mxu0
  %v255 = vadd.f32 %v71, %v254
  %v256 = vpop.f32.mrb[0].mxu0
  %257 = vmatprep.mubr.bf16.mxu0 0
  %258 = vmatmul.mubr.bf16.gmra.mrb[0].mxu0 %v138
  %v259 = vpop.f32.mrb[0].mxu0
  %v260 = vadd.f32 %v71, %v259
  %v261 = vpop.f32.mrb[0].mxu0
  %v262 = vpop.f32.mrb[0].mxu0
  %v263 = vadd.f32 %v71, %v262
  %v264 = vpop.f32.mrb[0].mxu0
  %265 = vmatprep.mubr.bf16.mxu0 0
  %266 = vmatmul.mubr.bf16.gmra.mrb[0].mxu0 %v139
  %v267 = vpop.f32.mrb[0].mxu0
  %v268 = vadd.f32 %v71, %v267
  %v269 = vpop.f32.mrb[0].mxu0
  %v270 = vpop.f32.mrb[0].mxu0
  %v271 = vadd.f32 %v71, %v270
  %v272 = vpop.f32.mrb[0].mxu0
  %273 = vmatprep.mubr.bf16.mxu0 0
  %274 = vmatmul.mubr.bf16.gmra.mrb[0].mxu0 %v140
  %v275 = vpop.f32.mrb[0].mxu0
  %v276 = vadd.f32 %v71, %v275
  %v277 = vpop.f32.mrb[0].mxu0
  %v278 = vpop.f32.mrb[0].mxu0
  %v279 = vadd.f32 %v71, %v278
  %v280 = vpop.f32.mrb[0].mxu0
  %281 = vmatprep.mubr.bf16.mxu0 0
  %282 = vmatmul.mubr.bf16.gmra.mrb[0].mxu0 %v141
  %v283 = vpop.f32.mrb[0].mxu0
  %v284 = vadd.f32 %v71, %v283
  %v285 = vpop.f32.mrb[0].mxu0
  %v286 = vpop.f32.mrb[0].mxu0
  %v287 = vadd.f32 %v71, %v286
  %v288 = vpop.f32.mrb[0].mxu0
  %289 = vmatprep.mubr.bf16.mxu0 0
  %290 = vmatmul.mubr.bf16.gmra.mrb[0].mxu0 %v142
  %v291 = vpop.f32.mrb[0].mxu0
  %v292 = vadd.f32 %v71, %v291
  %v293 = vpop.f32.mrb[0].mxu0
  %v294 = vpop.f32.mrb[0].mxu0
  %v295 = vadd.f32 %v71, %v294
  %v296 = vpop.f32.mrb[0].mxu0
  %297 = vmatprep.mubr.bf16.mxu0 0
  %298 = vmatmul.mubr.bf16.gmra.mrb[0].mxu0 %v143
  %v299 = vpop.f32.mrb[0].mxu0
  %v300 = vadd.f32 %v71, %v299
  %v301 = vpop.f32.mrb[0].mxu0
  %v302 = vpop.f32.mrb[0].mxu0
  %v303 = vadd.f32 %v71, %v302
  %v304 = vpop.f32.mrb[0].mxu0
  %305 = vmatprep.mubr.bf16.mxu0 0
  %306 = vmatmul.mubr.bf16.gmra.mrb[0].mxu0 %v144
  %v307 = vpop.f32.mrb[0].mxu0
  %v308 = vadd.f32 %v71, %v307
  %v309 = vpop.f32.mrb[0].mxu0
  %v310 = vpop.f32.mrb[0].mxu0
  %v311 = vadd.f32 %v71, %v310
  %v312 = vpop.f32.mrb[0].mxu0
  %313 = vmatprep.mubr.bf16.mxu0 0
  %314 = vmatmul.mubr.bf16.gmra.mrb[0].mxu0 %v145
  %v315 = vpop.f32.mrb[0].mxu0
  %v316 = vadd.f32 %v71, %v315
  %v317 = vpop.f32.mrb[0].mxu0
  %v318 = vpop.f32.mrb[0].mxu0
  %v319 = vadd.f32 %v71, %v318
  %v320 = vpop.f32.mrb[0].mxu0
  %321 = vmatprep.mubr.bf16.mxu0 0
  %322 = vmatmul.mubr.bf16.gmra.mrb[0].mxu0 %v146
  %v323 = vpop.f32.mrb[0].mxu0
  %v324 = vadd.f32 %v71, %v323
  %v325 = vpop.f32.mrb[0].mxu0
  %v326 = vpop.f32.mrb[0].mxu0
  %v327 = vadd.f32 %v71, %v326
  %v328 = vpop.f32.mrb[0].mxu0
  %329 = vmatprep.mubr.bf16.mxu0 0
  %330 = vmatmul.mubr.bf16.gmra.mrb[0].mxu0 %v147
  %v331 = vpop.f32.mrb[0].mxu0
  %v332 = vadd.f32 %v71, %v331
  %v333 = vpop.f32.mrb[0].mxu0
  %v334 = vpop.f32.mrb[0].mxu0
  %v335 = vadd.f32 %v71, %v334
  %v336 = vpop.f32.mrb[0].mxu0
  %337 = vmatprep.mubr.bf16.mxu0 0
  %338 = vmatmul.mubr.bf16.gmra.mrb[0].mxu0 %v148
  %v339 = vpop.f32.mrb[0].mxu0
  %v340 = vadd.f32 %v71, %v339
  %v341 = vpop.f32.mrb[0].mxu0
  %v342 = vpop.f32.mrb[0].mxu0
  %v343 = vadd.f32 %v71, %v342
  %v344 = vpop.f32.mrb[0].mxu0
  %345 = vmatprep.mubr.bf16.mxu0 0
  %346 = vmatmul.mubr.bf16.gmra.mrb[0].mxu0 %v149
  %v347 = vpop.f32.mrb[0].mxu0
  %v348 = vadd.f32 %v71, %v347
  %v349 = vpop.f32.mrb[0].mxu0
  %v350 = vpop.f32.mrb[0].mxu0
  %v351 = vadd.f32 %v71, %v350
  %v352 = vpop.f32.mrb[0].mxu0
  %353 = vmatprep.mubr.bf16.mxu0 0
  %354 = vmatmul.mubr.bf16.gmra.mrb[0].mxu0 %v150
  %v355 = vpop.f32.mrb[0].mxu0
  %v356 = vadd.f32 %v71, %v355
  %v357 = vpop.f32.mrb[0].mxu0
  %v358 = vpop.f32.mrb[0].mxu0
  %v359 = vadd.f32 %v71, %v358
  %v360 = vpop.f32.mrb[0].mxu0
  %361 = vmatprep.mubr.bf16.mxu0 0
  %362 = vmatmul.mubr.bf16.gmra.mrb[0].mxu0 %v151
  %v363 = vpop.f32.mrb[0].mxu0
  %v364 = vadd.f32 %v71, %v363
  %v365 = vpop.f32.mrb[0].mxu0
  %v366 = vpop.f32.mrb[0].mxu0
  %v367 = vadd.f32 %v71, %v366
  %v368 = vpop.f32.mrb[0].mxu0
  %369 = vmatprep.mubr.bf16.mxu0 0
  %370 = vmatmul.mubr.bf16.gmra.mrb[0].mxu0 %v152
  %v371 = vpop.f32.mrb[0].mxu0
  %v372 = vadd.f32 %v71, %v371
  %v373 = vpop.f32.mrb[0].mxu0
  %v374 = vpop.f32.mrb[0].mxu0
  %v375 = vadd.f32 %v71, %v374
  %v376 = vpop.f32.mrb[0].mxu0
  %377 = vdwg.mxu0
  %v378 = vmul.f32 %v252, 0.5
  %v379 = vmul.f32 %v255, 0.5
  %v380 = vmul.f32 %v260, 0.5
  %v381 = vmul.f32 %v263, 0.5
  %v382 = vmul.f32 %v268, 0.5
  %v383 = vmul.f32 %v271, 0.5
  %v384 = vmul.f32 %v276, 0.5
  %v385 = vmul.f32 %v279, 0.5
  %v386 = vmul.f32 %v284, 0.5
  %v387 = vmul.f32 %v287, 0.5
  %v388 = vmul.f32 %v292, 0.5
  %v389 = vmul.f32 %v295, 0.5
  %v390 = vmul.f32 %v300, 0.5
  %v391 = vmul.f32 %v303, 0.5
  %v392 = vmul.f32 %v308, 0.5
  %v393 = vmul.f32 %v311, 0.5
  %v394 = vmul.f32 %v316, 0.5
  %v395 = vmul.f32 %v319, 0.5
  %v396 = vmul.f32 %v324, 0.5
  %v397 = vmul.f32 %v327, 0.5
  %v398 = vmul.f32 %v332, 0.5
  %v399 = vmul.f32 %v335, 0.5
  %v400 = vmul.f32 %v340, 0.5
  %v401 = vmul.f32 %v343, 0.5
  %v402 = vmul.f32 %v348, 0.5
  %v403 = vmul.f32 %v351, 0.5
  %v404 = vmul.f32 %v356, 0.5
  %v405 = vmul.f32 %v359, 0.5
  %v406 = vmul.f32 %v364, 0.5
  %v407 = vmul.f32 %v367, 0.5
  %v408 = vmul.f32 %v372, 0.5
  %v409 = vmul.f32 %v375, 0.5
  %v410 = vmul.f32 %v252, 0.044715
  %v411 = vmul.f32 %v255, 0.044715
  %v412 = vmul.f32 %v260, 0.044715
  %v413 = vmul.f32 %v263, 0.044715
  %v414 = vmul.f32 %v268, 0.044715
  %v415 = vmul.f32 %v271, 0.044715
  %v416 = vmul.f32 %v276, 0.044715
  %v417 = vmul.f32 %v279, 0.044715
  %v418 = vmul.f32 %v284, 0.044715
  %v419 = vmul.f32 %v287, 0.044715
  %v420 = vmul.f32 %v292, 0.044715
  %v421 = vmul.f32 %v295, 0.044715
  %v422 = vmul.f32 %v300, 0.044715
  %v423 = vmul.f32 %v303, 0.044715
  %v424 = vmul.f32 %v308, 0.044715
  %v425 = vmul.f32 %v311, 0.044715
  %v426 = vmul.f32 %v316, 0.044715
  %v427 = vmul.f32 %v319, 0.044715
  %v428 = vmul.f32 %v324, 0.044715
  %v429 = vmul.f32 %v327, 0.044715
  %v430 = vmul.f32 %v332, 0.044715
  %v431 = vmul.f32 %v335, 0.044715
  %v432 = vmul.f32 %v340, 0.044715
  %v433 = vmul.f32 %v343, 0.044715
  %v434 = vmul.f32 %v348, 0.044715
  %v435 = vmul.f32 %v351, 0.044715
  %v436 = vmul.f32 %v356, 0.044715
  %v437 = vmul.f32 %v359, 0.044715
  %v438 = vmul.f32 %v364, 0.044715
  %v439 = vmul.f32 %v367, 0.044715
  %v440 = vmul.f32 %v372, 0.044715
  %v441 = vmul.f32 %v375, 0.044715
  %v442 = vmul.f32 %v410, %v252
  %v443 = vmul.f32 %v411, %v255
  %v444 = vmul.f32 %v412, %v260
  %v445 = vmul.f32 %v413, %v263
  %v446 = vmul.f32 %v414, %v268
  %v447 = vmul.f32 %v415, %v271
  %v448 = vmul.f32 %v416, %v276
  %v449 = vmul.f32 %v417, %v279
  %v450 = vmul.f32 %v418, %v284
  %v451 = vmul.f32 %v419, %v287
  %v452 = vmul.f32 %v420, %v292
  %v453 = vmul.f32 %v421, %v295
  %v454 = vmul.f32 %v422, %v300
  %v455 = vmul.f32 %v423, %v303
  %v456 = vmul.f32 %v424, %v308
  %v457 = vmul.f32 %v425, %v311
  %v458 = vmul.f32 %v426, %v316
  %v459 = vmul.f32 %v427, %v319
  %v460 = vmul.f32 %v428, %v324
  %v461 = vmul.f32 %v429, %v327
  %v462 = vmul.f32 %v430, %v332
  %v463 = vmul.f32 %v431, %v335
  %v464 = vmul.f32 %v432, %v340
  %v465 = vmul.f32 %v433, %v343
  %v466 = vmul.f32 %v434, %v348
  %v467 = vmul.f32 %v435, %v351
  %v468 = vmul.f32 %v436, %v356
  %v469 = vmul.f32 %v437, %v359
  %v470 = vmul.f32 %v438, %v364
  %v471 = vmul.f32 %v439, %v367
  %v472 = vmul.f32 %v440, %v372
  %v473 = vmul.f32 %v441, %v375
  %v474 = vmul.f32 %v442, %v252
  %v475 = vmul.f32 %v443, %v255
  %v476 = vmul.f32 %v444, %v260
  %v477 = vmul.f32 %v445, %v263
  %v478 = vmul.f32 %v446, %v268
  %v479 = vmul.f32 %v447, %v271
  %v480 = vmul.f32 %v448, %v276
  %v481 = vmul.f32 %v449, %v279
  %v482 = vmul.f32 %v450, %v284
  %v483 = vmul.f32 %v451, %v287
  %v484 = vmul.f32 %v452, %v292
  %v485 = vmul.f32 %v453, %v295
  %v486 = vmul.f32 %v454, %v300
  %v487 = vmul.f32 %v455, %v303
  %v488 = vmul.f32 %v456, %v308
  %v489 = vmul.f32 %v457, %v311
  %v490 = vmul.f32 %v458, %v316
  %v491 = vmul.f32 %v459, %v319
  %v492 = vmul.f32 %v460, %v324
  %v493 = vmul.f32 %v461, %v327
  %v494 = vmul.f32 %v462, %v332
  %v495 = vmul.f32 %v463, %v335
  %v496 = vmul.f32 %v464, %v340
  %v497 = vmul.f32 %v465, %v343
  %v498 = vmul.f32 %v466, %v348
  %v499 = vmul.f32 %v467, %v351
  %v500 = vmul.f32 %v468, %v356
  %v501 = vmul.f32 %v469, %v359
  %v502 = vmul.f32 %v470, %v364
  %v503 = vmul.f32 %v471, %v367
  %v504 = vmul.f32 %v472, %v372
  %v505 = vmul.f32 %v473, %v375
  %v506 = vadd.f32 %v252, %v474
  %v507 = vadd.f32 %v255, %v475
  %v508 = vadd.f32 %v260, %v476
  %v509 = vadd.f32 %v263, %v477
  %v510 = vadd.f32 %v268, %v478
  %v511 = vadd.f32 %v271, %v479
  %v512 = vadd.f32 %v276, %v480
  %v513 = vadd.f32 %v279, %v481
  %v514 = vadd.f32 %v284, %v482
  %v515 = vadd.f32 %v287, %v483
  %v516 = vadd.f32 %v292, %v484
  %v517 = vadd.f32 %v295, %v485
  %v518 = vadd.f32 %v300, %v486
  %v519 = vadd.f32 %v303, %v487
  %v520 = vadd.f32 %v308, %v488
  %v521 = vadd.f32 %v311, %v489
  %v522 = vadd.f32 %v316, %v490
  %v523 = vadd.f32 %v319, %v491
  %v524 = vadd.f32 %v324, %v492
  %v525 = vadd.f32 %v327, %v493
  %v526 = vadd.f32 %v332, %v494
  %v527 = vadd.f32 %v335, %v495
  %v528 = vadd.f32 %v340, %v496
  %v529 = vadd.f32 %v343, %v497
  %v530 = vadd.f32 %v348, %v498
  %v531 = vadd.f32 %v351, %v499
  %v532 = vadd.f32 %v356, %v500
  %v533 = vadd.f32 %v359, %v501
  %v534 = vadd.f32 %v364, %v502
  %v535 = vadd.f32 %v367, %v503
  %v536 = vadd.f32 %v372, %v504
  %v537 = vadd.f32 %v375, %v505
  %v538 = vmul.f32 %v506, 0.7978846
  %v539 = vmul.f32 %v507, 0.7978846
  %v540 = vmul.f32 %v508, 0.7978846
  %v541 = vmul.f32 %v509, 0.7978846
  %v542 = vmul.f32 %v510, 0.7978846
  %v543 = vmul.f32 %v511, 0.7978846
  %v544 = vmul.f32 %v512, 0.7978846
  %v545 = vmul.f32 %v513, 0.7978846
  %v546 = vmul.f32 %v514, 0.7978846
  %v547 = vmul.f32 %v515, 0.7978846
  %v548 = vmul.f32 %v516, 0.7978846
  %v549 = vmul.f32 %v517, 0.7978846
  %v550 = vmul.f32 %v518, 0.7978846
  %v551 = vmul.f32 %v519, 0.7978846
  %v552 = vmul.f32 %v520, 0.7978846
  %v553 = vmul.f32 %v521, 0.7978846
  %v554 = vmul.f32 %v522, 0.7978846
  %v555 = vmul.f32 %v523, 0.7978846
  %v556 = vmul.f32 %v524, 0.7978846
  %v557 = vmul.f32 %v525, 0.7978846
  %v558 = vmul.f32 %v526, 0.7978846
  %v559 = vmul.f32 %v527, 0.7978846
  %v560 = vmul.f32 %v528, 0.7978846
  %v561 = vmul.f32 %v529, 0.7978846
  %v562 = vmul.f32 %v530, 0.7978846
  %v563 = vmul.f32 %v531, 0.7978846
  %v564 = vmul.f32 %v532, 0.7978846
  %v565 = vmul.f32 %v533, 0.7978846
  %v566 = vmul.f32 %v534, 0.7978846
  %v567 = vmul.f32 %v535, 0.7978846
  %v568 = vmul.f32 %v536, 0.7978846
  %v569 = vmul.f32 %v537, 0.7978846
  %v570 = vtanh.pop %v538
  %v571 = vtanh.pop %v539
  %v572 = vtanh.pop %v540
  %v573 = vtanh.pop %v541
  %v574 = vtanh.pop %v542
  %v575 = vtanh.pop %v543
  %v576 = vtanh.pop %v544
  %v577 = vtanh.pop %v545
  %v578 = vtanh.pop %v546
  %v579 = vtanh.pop %v547
  %v580 = vtanh.pop %v548
  %v581 = vtanh.pop %v549
  %v582 = vtanh.pop %v550
  %v583 = vtanh.pop %v551
  %v584 = vtanh.pop %v552
  %v585 = vtanh.pop %v553
  %v586 = vtanh.pop %v554
  %v587 = vtanh.pop %v555
  %v588 = vtanh.pop %v556
  %v589 = vtanh.pop %v557
  %v590 = vtanh.pop %v558
  %v591 = vtanh.pop %v559
  %v592 = vtanh.pop %v560
  %v593 = vtanh.pop %v561
  %v594 = vtanh.pop %v562
  %v595 = vtanh.pop %v563
  %v596 = vtanh.pop %v564
  %v597 = vtanh.pop %v565
  %v598 = vtanh.pop %v566
  %v599 = vtanh.pop %v567
  %v600 = vtanh.pop %v568
  %v601 = vtanh.pop %v569
  %v602 = vadd.f32 %v570, 1.0
  %v603 = vadd.f32 %v571, 1.0
  %v604 = vadd.f32 %v572, 1.0
  %v605 = vadd.f32 %v573, 1.0
  %v606 = vadd.f32 %v574, 1.0
  %v607 = vadd.f32 %v575, 1.0
  %v608 = vadd.f32 %v576, 1.0
  %v609 = vadd.f32 %v577, 1.0
  %v610 = vadd.f32 %v578, 1.0
  %v611 = vadd.f32 %v579, 1.0
  %v612 = vadd.f32 %v580, 1.0
  %v613 = vadd.f32 %v581, 1.0
  %v614 = vadd.f32 %v582, 1.0
  %v615 = vadd.f32 %v583, 1.0
  %v616 = vadd.f32 %v584, 1.0
  %v617 = vadd.f32 %v585, 1.0
  %v618 = vadd.f32 %v586, 1.0
  %v619 = vadd.f32 %v587, 1.0
  %v620 = vadd.f32 %v588, 1.0
  %v621 = vadd.f32 %v589, 1.0
  %v622 = vadd.f32 %v590, 1.0
  %v623 = vadd.f32 %v591, 1.0
  %v624 = vadd.f32 %v592, 1.0
  %v625 = vadd.f32 %v593, 1.0
  %v626 = vadd.f32 %v594, 1.0
  %v627 = vadd.f32 %v595, 1.0
  %v628 = vadd.f32 %v596, 1.0
  %v629 = vadd.f32 %v597, 1.0
  %v630 = vadd.f32 %v598, 1.0
  %v631 = vadd.f32 %v599, 1.0
  %v632 = vadd.f32 %v600, 1.0
  %v633 = vadd.f32 %v601, 1.0
  %v634 = vmul.f32 %v378, %v602
  %v635 = vmul.f32 %v379, %v603
  %v636 = vmul.f32 %v380, %v604
  %v637 = vmul.f32 %v381, %v605
  %v638 = vmul.f32 %v382, %v606
  %v639 = vmul.f32 %v383, %v607
  %v640 = vmul.f32 %v384, %v608
  %v641 = vmul.f32 %v385, %v609
  %v642 = vmul.f32 %v386, %v610
  %v643 = vmul.f32 %v387, %v611
  %v644 = vmul.f32 %v388, %v612
  %v645 = vmul.f32 %v389, %v613
  %v646 = vmul.f32 %v390, %v614
  %v647 = vmul.f32 %v391, %v615
  %v648 = vmul.f32 %v392, %v616
  %v649 = vmul.f32 %v393, %v617
  %v650 = vmul.f32 %v394, %v618
  %v651 = vmul.f32 %v395, %v619
  %v652 = vmul.f32 %v396, %v620
  %v653 = vmul.f32 %v397, %v621
  %v654 = vmul.f32 %v398, %v622
  %v655 = vmul.f32 %v399, %v623
  %v656 = vmul.f32 %v400, %v624
  %v657 = vmul.f32 %v401, %v625
  %v658 = vmul.f32 %v402, %v626
  %v659 = vmul.f32 %v403, %v627
  %v660 = vmul.f32 %v404, %v628
  %v661 = vmul.f32 %v405, %v629
  %v662 = vmul.f32 %v406, %v630
  %v663 = vmul.f32 %v407, %v631
  %v664 = vmul.f32 %v408, %v632
  %v665 = vmul.f32 %v409, %v633
  %v666 = vpack.c.bf16 %v635, %v634
  %v667 = vpack.c.bf16 %v637, %v636
  %v668 = vpack.c.bf16 %v639, %v638
  %v669 = vpack.c.bf16 %v641, %v640
  %v670 = vpack.c.bf16 %v643, %v642
  %v671 = vpack.c.bf16 %v645, %v644
  %v672 = vpack.c.bf16 %v647, %v646
  %v673 = vpack.c.bf16 %v649, %v648
  %v674 = vpack.c.bf16 %v651, %v650
  %v675 = vpack.c.bf16 %v653, %v652
  %v676 = vpack.c.bf16 %v655, %v654
  %v677 = vpack.c.bf16 %v657, %v656
  %v678 = vpack.c.bf16 %v659, %v658
  %v679 = vpack.c.bf16 %v661, %v660
  %v680 = vpack.c.bf16 %v663, %v662
  %v681 = vpack.c.bf16 %v665, %v664
  %v698 = vunpack.c.l.b16 %v666
  %v699 = vunpack.c.h.b16 %v666
  %v700 = vunpack.c.l.b16 %v667
  %v701 = vunpack.c.h.b16 %v667
  %v702 = vunpack.c.l.b16 %v668
  %v703 = vunpack.c.h.b16 %v668
  %v704 = vunpack.c.l.b16 %v669
  %v705 = vunpack.c.h.b16 %v669
  %v706 = vunpack.c.l.b16 %v670
  %v707 = vunpack.c.h.b16 %v670
  %v708 = vunpack.c.l.b16 %v671
  %v709 = vunpack.c.h.b16 %v671
  %v710 = vunpack.c.l.b16 %v672
  %v711 = vunpack.c.h.b16 %v672
  %v712 = vunpack.c.l.b16 %v673
  %v713 = vunpack.c.h.b16 %v673
  %v714 = vunpack.c.l.b16 %v674
  %v715 = vunpack.c.h.b16 %v674
  %v716 = vunpack.c.l.b16 %v675
  %v717 = vunpack.c.h.b16 %v675
  %v718 = vunpack.c.l.b16 %v676
  %v719 = vunpack.c.h.b16 %v676
  %v720 = vunpack.c.l.b16 %v677
  %v721 = vunpack.c.h.b16 %v677
  %v722 = vunpack.c.l.b16 %v678
  %v723 = vunpack.c.h.b16 %v678
  %v724 = vunpack.c.l.b16 %v679
  %v725 = vunpack.c.h.b16 %v679
  %v726 = vunpack.c.l.b16 %v680
  %v727 = vunpack.c.h.b16 %v680
  %v728 = vunpack.c.l.b16 %v681
  %v729 = vunpack.c.h.b16 %v681
  %v730 = vpack.c.b16 %v698, %v698
  %v731 = vpack.c.b16 %v699, %v699
  %v732 = vpack.c.b16 %v700, %v700
  %v733 = vpack.c.b16 %v701, %v701
  %v734 = vpack.c.b16 %v702, %v702
  %v735 = vpack.c.b16 %v703, %v703
  %v736 = vpack.c.b16 %v704, %v704
  %v737 = vpack.c.b16 %v705, %v705
  %v738 = vpack.c.b16 %v706, %v706
  %v739 = vpack.c.b16 %v707, %v707
  %v740 = vpack.c.b16 %v708, %v708
  %v741 = vpack.c.b16 %v709, %v709
  %v742 = vpack.c.b16 %v710, %v710
  %v743 = vpack.c.b16 %v711, %v711
  %v744 = vpack.c.b16 %v712, %v712
  %v745 = vpack.c.b16 %v713, %v713
  %v746 = vpack.c.b16 %v714, %v714
  %v747 = vpack.c.b16 %v715, %v715
  %v748 = vpack.c.b16 %v716, %v716
  %v749 = vpack.c.b16 %v717, %v717
  %v750 = vpack.c.b16 %v718, %v718
  %v751 = vpack.c.b16 %v719, %v719
  %v752 = vpack.c.b16 %v720, %v720
  %v753 = vpack.c.b16 %v721, %v721
  %v754 = vpack.c.b16 %v722, %v722
  %v755 = vpack.c.b16 %v723, %v723
  %v756 = vpack.c.b16 %v724, %v724
  %v757 = vpack.c.b16 %v725, %v725
  %v758 = vpack.c.b16 %v726, %v726
  %v759 = vpack.c.b16 %v727, %v727
  %v760 = vpack.c.b16 %v728, %v728
  %v761 = vpack.c.b16 %v729, %v729
  %794 = vst [vmem:[%s3] sm:$0xf] %v730
  %795 = vst [vmem:[%s3 + $0x4] sm:$0xf] %v731
  %796 = vst [vmem:[%s3 + $0x8] sm:$0xf] %v732
  %797 = vst [vmem:[%s3 + $0xc] sm:$0xf] %v733
  %798 = vst [vmem:[%s3 + $0x10] sm:$0xf] %v734
  %799 = vst [vmem:[%s3 + $0x14] sm:$0xf] %v735
  %800 = vst [vmem:[%s3 + $0x18] sm:$0xf] %v736
  %801 = vst [vmem:[%s3 + $0x1c] sm:$0xf] %v737
  %802 = vst [vmem:[%s3 + $0x20] sm:$0xf] %v738
  %803 = vst [vmem:[%s3 + $0x24] sm:$0xf] %v739
  %804 = vst [vmem:[%s3 + $0x28] sm:$0xf] %v740
  %805 = vst [vmem:[%s3 + $0x2c] sm:$0xf] %v741
  %806 = vst [vmem:[%s3 + $0x30] sm:$0xf] %v742
  %807 = vst [vmem:[%s3 + $0x34] sm:$0xf] %v743
  %808 = vst [vmem:[%s3 + $0x38] sm:$0xf] %v744
  %809 = vst [vmem:[%s3 + $0x3c] sm:$0xf] %v745
  %810 = vst [vmem:[%s3 + $0x40] sm:$0xf] %v746
  %811 = vst [vmem:[%s3 + $0x44] sm:$0xf] %v747
  %812 = vst [vmem:[%s3 + $0x48] sm:$0xf] %v748
  %813 = vst [vmem:[%s3 + $0x4c] sm:$0xf] %v749
  %814 = vst [vmem:[%s3 + $0x50] sm:$0xf] %v750
  %815 = vst [vmem:[%s3 + $0x54] sm:$0xf] %v751
  %816 = vst [vmem:[%s3 + $0x58] sm:$0xf] %v752
  %817 = vst [vmem:[%s3 + $0x5c] sm:$0xf] %v753
  %818 = vst [vmem:[%s3 + $0x60] sm:$0xf] %v754
  %819 = vst [vmem:[%s3 + $0x64] sm:$0xf] %v755
  %820 = vst [vmem:[%s3 + $0x68] sm:$0xf] %v756
  %821 = vst [vmem:[%s3 + $0x6c] sm:$0xf] %v757
  %822 = vst [vmem:[%s3 + $0x70] sm:$0xf] %v758
  %823 = vst [vmem:[%s3 + $0x74] sm:$0xf] %v759
  %824 = vst [vmem:[%s3 + $0x78] sm:$0xf] %v760
  %825 = vst [vmem:[%s3 + $0x7c] sm:$0xf] %v761
  %v826 = vadd.f32 %v634, %v635
  %v827 = vadd.f32 %v826, %v636
  %v828 = vadd.f32 %v827, %v637
  %v829 = vadd.f32 %v828, %v638
  %v830 = vadd.f32 %v829, %v639
  %v831 = vadd.f32 %v830, %v640
  %v832 = vadd.f32 %v831, %v641
  %v833 = vadd.f32 %v832, %v642
  %v834 = vadd.f32 %v833, %v643
  %v835 = vadd.f32 %v834, %v644
  %v836 = vadd.f32 %v835, %v645
  %v837 = vadd.f32 %v836, %v646
  %v838 = vadd.f32 %v837, %v647
  %v839 = vadd.f32 %v838, %v648
  %v840 = vadd.f32 %v839, %v649
  %v841 = vadd.f32 %v840, %v650
  %v842 = vadd.f32 %v841, %v651
  %v843 = vadd.f32 %v842, %v652
  %v844 = vadd.f32 %v843, %v653
  %v845 = vadd.f32 %v844, %v654
  %v846 = vadd.f32 %v845, %v655
  %v847 = vadd.f32 %v846, %v656
  %v848 = vadd.f32 %v847, %v657
  %v849 = vadd.f32 %v848, %v658
  %v850 = vadd.f32 %v849, %v659
  %v851 = vadd.f32 %v850, %v660
  %v852 = vadd.f32 %v851, %v661
  %v853 = vadd.f32 %v852, %v662
  %v854 = vadd.f32 %v853, %v663
  %v855 = vadd.f32 %v854, %v664
  %v856 = vadd.f32 %v855, %v665
  %v857 = vrot.slane %v856, 4
  %v858 = vadd.f32 %v856, %v857
  %v859 = vrot.slane %v858, 2
  %v860 = vadd.f32 %v858, %v859
  %v861 = vrot.slane %v860, 1
  %v862 = vadd.f32 %v860, %v861
  %863 = vst [vmem:[%s4] sm:$0x1] %v862
  %v864 = vmul.f32 %v634, %v634
  %v865 = vmul.f32 %v635, %v635
  %v866 = vmul.f32 %v636, %v636
  %v867 = vmul.f32 %v637, %v637
  %v868 = vmul.f32 %v638, %v638
  %v869 = vmul.f32 %v639, %v639
  %v870 = vmul.f32 %v640, %v640
  %v871 = vmul.f32 %v641, %v641
  %v872 = vmul.f32 %v642, %v642
  %v873 = vmul.f32 %v643, %v643
  %v874 = vmul.f32 %v644, %v644
  %v875 = vmul.f32 %v645, %v645
  %v876 = vmul.f32 %v646, %v646
  %v877 = vmul.f32 %v647, %v647
  %v878 = vmul.f32 %v648, %v648
  %v879 = vmul.f32 %v649, %v649
  %v880 = vmul.f32 %v650, %v650
  %v881 = vmul.f32 %v651, %v651
  %v882 = vmul.f32 %v652, %v652
  %v883 = vmul.f32 %v653, %v653
  %v884 = vmul.f32 %v654, %v654
  %v885 = vmul.f32 %v655, %v655
  %v886 = vmul.f32 %v656, %v656
  %v887 = vmul.f32 %v657, %v657
  %v888 = vmul.f32 %v658, %v658
  %v889 = vmul.f32 %v659, %v659
  %v890 = vmul.f32 %v660, %v660
  %v891 = vmul.f32 %v661, %v661
  %v892 = vmul.f32 %v662, %v662
  %v893 = vmul.f32 %v663, %v663
  %v894 = vmul.f32 %v664, %v664
  %v895 = vmul.f32 %v665, %v665
  %v896 = vadd.f32 %v864, %v865
  %v897 = vadd.f32 %v896, %v866
  %v898 = vadd.f32 %v897, %v867
  %v899 = vadd.f32 %v898, %v868
  %v900 = vadd.f32 %v899, %v869
  %v901 = vadd.f32 %v900, %v870
  %v902 = vadd.f32 %v901, %v871
  %v903 = vadd.f32 %v902, %v872
  %v904 = vadd.f32 %v903, %v873
  %v905 = vadd.f32 %v904, %v874
  %v906 = vadd.f32 %v905, %v875
  %v907 = vadd.f32 %v906, %v876
  %v908 = vadd.f32 %v907, %v877
  %v909 = vadd.f32 %v908, %v878
  %v910 = vadd.f32 %v909, %v879
  %v911 = vadd.f32 %v910, %v880
  %v912 = vadd.f32 %v911, %v881
  %v913 = vadd.f32 %v912, %v882
  %v914 = vadd.f32 %v913, %v883
  %v915 = vadd.f32 %v914, %v884
  %v916 = vadd.f32 %v915, %v885
  %v917 = vadd.f32 %v916, %v886
  %v918 = vadd.f32 %v917, %v887
  %v919 = vadd.f32 %v918, %v888
  %v920 = vadd.f32 %v919, %v889
  %v921 = vadd.f32 %v920, %v890
  %v922 = vadd.f32 %v921, %v891
  %v923 = vadd.f32 %v922, %v892
  %v924 = vadd.f32 %v923, %v893
  %v925 = vadd.f32 %v924, %v894
  %v926 = vadd.f32 %v925, %v895
  %v927 = vrot.slane %v926, 4
  %v928 = vadd.f32 %v926, %v927
  %v929 = vrot.slane %v928, 2
  %v930 = vadd.f32 %v928, %v929
  %v931 = vrot.slane %v930, 1
  %v932 = vadd.f32 %v930, %v931
  %933 = vst [vmem:[%s5] sm:$0x1] %v932
  // Predicated region
  $region14: #{convmixer_adapt_forward.6} parent=0 // pred_check
    _
  $region15: #{convmixer_adapt_forward.6} parent=0 // pred_check_branch
    %935 = sbr.rel (0) target = $region17
  $region16: #{convmixer_adapt_forward.6} parent=0 // pred_region
    _
  $region17: #{convmixer_adapt_forward.6} parent=0 // pred_fallthru
    _
  // Predicated region
  $region18: #{convmixer_adapt_forward.6} parent=0 // pred_check
    _
  $region19: #{convmixer_adapt_forward.6} parent=0 // pred_check_branch
    %937 = sbr.rel (0) target = $region21
  $region20: #{convmixer_adapt_forward.6} parent=0 // pred_region
    _
  $region21: #{convmixer_adapt_forward.6} parent=0 // pred_fallthru
    _
  // Predicated region
  $region22: #{convmixer_adapt_forward.6} parent=0 // pred_check
    _
  $region23: #{convmixer_adapt_forward.6} parent=0 // pred_check_branch
    %939 = sbr.rel (0) target = $region25
  $region24: #{convmixer_adapt_forward.6} parent=0 // pred_region
    _
  $region25: #{convmixer_adapt_forward.6} parent=0 // pred_fallthru
    _
  // Predicated region
  $region26: #{convmixer_adapt_forward.6} parent=0 // pred_check
    _
  $region27: #{convmixer_adapt_forward.6} parent=0 // pred_check_branch
    %941 = sbr.rel (0) target = $region29
  $region28: #{convmixer_adapt_forward.6} parent=0 // pred_region
    _
  $region29: #{convmixer_adapt_forward.6} parent=0 // pred_fallthru
    _
  // Predicated region
  $region30: #{convmixer_adapt_forward.6} parent=0 // pred_check
    _
  $region31: #{convmixer_adapt_forward.6} parent=0 // pred_check_branch
    %943 = sbr.rel (0) target = $region33
  $region32: #{convmixer_adapt_forward.6} parent=0 // pred_region
    _
  $region33: #{convmixer_adapt_forward.6} parent=0 // pred_fallthru
    _
  // Predicated region
  $region34: #{convmixer_adapt_forward.6} parent=0 // pred_check
    _
  $region35: #{convmixer_adapt_forward.6} parent=0 // pred_check_branch
    %945 = sbr.rel (0) target = $region37
  $region36: #{convmixer_adapt_forward.6} parent=0 // pred_region
    _
  $region37: #{convmixer_adapt_forward.6} parent=0 // pred_fallthru
    _

// kernel: convmixer_adapt_forward.11
$region0: #{convmixer_adapt_forward.11}
  #allocation0 [shape = 'u32[]', space=smem, size = 0x4, offset = 0x4, fixed_abs, tag = 'smem constant byte address 0x4 - core index']
  #allocation1 [shape = 'u32[144,128]{1,0:T(1,128)}', space=vmem, size = 0x12000, scoped, tag = 'internal scratch']
  %s0 = inlined_call_operand.vmem [shape: bf16[4,64,128], index: 0, kind: input, shape index: {}]
  %s1 = inlined_call_operand.vmem [shape: f32[1,128], index: 1, kind: input, shape index: {}]
  %s2 = inlined_call_operand.vmem [shape: f32[1,128], index: 2, kind: input, shape index: {}]
  %s3 = inlined_call_operand.vmem [shape: f32[128,32], index: 3, kind: input, shape index: {}]
  %s4 = inlined_call_operand.vmem [shape: f32[1,32], index: 4, kind: input, shape index: {}]
  %s5 = inlined_call_operand.vmem [shape: f32[4,1,32], index: 5, kind: output, shape index: {}]
  %s6 = sld [smem:[#allocation0]]
  $region53: #{convmixer_adapt_forward.11} parent=0
    _
  %s8 = ssub.s32 1, %s6
  %s9 = scalar_select 0, %s8, %s6
  loop: start=0, step=1, limit=6
  $region2: #{convmixer_adapt_forward.11} parent=0 // loop_pre_header
    _
  $region3: #{convmixer_adapt_forward.11} parent=0 // loop_header
    %s11 = sphi 0, %s15
    %p12 = scmp.ge.s32.totalorder %s11, 6
    %s21 = sphi 0, %s23
    %s24 = sphi 0, %s21
    %s25 = sphi 0, %s24
    %s41 = sphi 0, %s25
    %s45 = sphi 0, %s45
    %s47 = sphi 0, %s45
    %s48 = sphi 0, %s47
    %s62 = sphi 0, %s48
    %s66 = sphi 0, %s66
    %s68 = sphi 0, %s66
    %s69 = sphi 0, %s68
    %s83 = sphi 0, %s69
    %s87 = sphi 0, %s87
    %s89 = sphi 0, %s87
    %s90 = sphi 0, %s89
    %s104 = sphi 0, %s90
    %s108 = sphi 0, %s108
    %s110 = sphi 0, %s108
    %s111 = sphi 0, %s110
    %s125 = sphi 0, %s111
    %s131 = sphi 0, %s133
    %s134 = sphi 0, %s131
    %s135 = sphi 0, %s134
    %s151 = sphi 0, %s135
  $region4: #{convmixer_adapt_forward.11} parent=0 // loop_header_branch
    %14 = sbr.rel (%p12) target = $region8
  $region5: #{convmixer_adapt_forward.11} parent=0 // loop_body
    %s16 = ssub.s32 %s11, 1
    %s17 = ssub.s32 %s11, 2
    %s18 = sadd.s32 %s11, 1
    %s19 = ssub.s32 %s11, %s18
    %p20 = scmp.eq.s32.totalorder %s19, 0
    %s22 = sadd.s32 %s21, 1
    %s23 = scalar_select %p20, %s21, %s22
    %p26 = pneg %p20
    %p27 = scmp.eq.s32.totalorder %s11, 3
    %p28 = por %p26, %p27
    %p29 = scmp.ne.s32.totalorder %s21, %s24
    %p30 = scmp.eq.s32.totalorder %s11, 0
    %p31 = por %p29, %p30
    %p32 = scmp.ne.s32.totalorder %s21, %s24
    %p33 = scmp.eq.s32.totalorder %s16, 3
    %p34 = por %p32, %p33
    %p35 = scmp.ne.s32.totalorder %s24, %s25
    %p36 = scmp.eq.s32.totalorder %s16, 0
    %p37 = por %p35, %p36
    %p38 = scmp.ne.s32.totalorder %s24, %s25
    %p39 = scmp.eq.s32.totalorder %s17, 3
    %p40 = por %p38, %p39
    %p42 = scmp.ne.s32.totalorder %s25, %s41
    %p43 = scmp.eq.s32.totalorder %s17, 0
    %p44 = por %p42, %p43
    %s46 = sadd.s32 %s45, 1
    %p49 = scmp.eq.s32.totalorder %s11, 3
    %p50 = scmp.ne.s32.totalorder %s45, %s47
    %p51 = scmp.eq.s32.totalorder %s11, 0
    %p52 = por %p50, %p51
    %p53 = scmp.ne.s32.totalorder %s45, %s47
    %p54 = scmp.eq.s32.totalorder %s16, 3
    %p55 = por %p53, %p54
    %p56 = scmp.ne.s32.totalorder %s47, %s48
    %p57 = scmp.eq.s32.totalorder %s16, 0
    %p58 = por %p56, %p57
    %p59 = scmp.ne.s32.totalorder %s47, %s48
    %p60 = scmp.eq.s32.totalorder %s17, 3
    %p61 = por %p59, %p60
    %p63 = scmp.ne.s32.totalorder %s48, %s62
    %p64 = scmp.eq.s32.totalorder %s17, 0
    %p65 = por %p63, %p64
    %s67 = sadd.s32 %s66, 1
    %p70 = scmp.eq.s32.totalorder %s11, 3
    %p71 = scmp.ne.s32.totalorder %s66, %s68
    %p72 = scmp.eq.s32.totalorder %s11, 0
    %p73 = por %p71, %p72
    %p74 = scmp.ne.s32.totalorder %s66, %s68
    %p75 = scmp.eq.s32.totalorder %s16, 3
    %p76 = por %p74, %p75
    %p77 = scmp.ne.s32.totalorder %s68, %s69
    %p78 = scmp.eq.s32.totalorder %s16, 0
    %p79 = por %p77, %p78
    %p80 = scmp.ne.s32.totalorder %s68, %s69
    %p81 = scmp.eq.s32.totalorder %s17, 3
    %p82 = por %p80, %p81
    %p84 = scmp.ne.s32.totalorder %s69, %s83
    %p85 = scmp.eq.s32.totalorder %s17, 0
    %p86 = por %p84, %p85
    %s88 = sadd.s32 %s87, 1
    %p91 = scmp.eq.s32.totalorder %s11, 3
    %p92 = scmp.ne.s32.totalorder %s87, %s89
    %p93 = scmp.eq.s32.totalorder %s11, 0
    %p94 = por %p92, %p93
    %p95 = scmp.ne.s32.totalorder %s87, %s89
    %p96 = scmp.eq.s32.totalorder %s16, 3
    %p97 = por %p95, %p96
    %p98 = scmp.ne.s32.totalorder %s89, %s90
    %p99 = scmp.eq.s32.totalorder %s16, 0
    %p100 = por %p98, %p99
    %p101 = scmp.ne.s32.totalorder %s89, %s90
    %p102 = scmp.eq.s32.totalorder %s17, 3
    %p103 = por %p101, %p102
    %p105 = scmp.ne.s32.totalorder %s90, %s104
    %p106 = scmp.eq.s32.totalorder %s17, 0
    %p107 = por %p105, %p106
    %s109 = sadd.s32 %s108, 1
    %p112 = scmp.eq.s32.totalorder %s11, 3
    %p113 = scmp.ne.s32.totalorder %s108, %s110
    %p114 = scmp.eq.s32.totalorder %s11, 0
    %p115 = por %p113, %p114
    %p116 = scmp.ne.s32.totalorder %s108, %s110
    %p117 = scmp.eq.s32.totalorder %s16, 3
    %p118 = por %p116, %p117
    %p119 = scmp.ne.s32.totalorder %s110, %s111
    %p120 = scmp.eq.s32.totalorder %s16, 0
    %p121 = por %p119, %p120
    %p122 = scmp.ne.s32.totalorder %s110, %s111
    %p123 = scmp.eq.s32.totalorder %s17, 3
    %p124 = por %p122, %p123
    %p126 = scmp.ne.s32.totalorder %s111, %s125
    %p127 = scmp.eq.s32.totalorder %s17, 0
    %p128 = por %p126, %p127
    %s129 = ssub.s32 %s11, %s18
    %p130 = scmp.eq.s32.totalorder %s129, 0
    %s132 = sadd.s32 %s131, 1
    %s133 = scalar_select %p130, %s131, %s132
    %p136 = pneg %p130
    %p137 = scmp.eq.s32.totalorder %s11, 3
    %p138 = por %p136, %p137
    %p139 = scmp.ne.s32.totalorder %s131, %s134
    %p140 = scmp.eq.s32.totalorder %s11, 0
    %p141 = por %p139, %p140
    %p142 = scmp.ne.s32.totalorder %s131, %s134
    %p143 = scmp.eq.s32.totalorder %s16, 3
    %p144 = por %p142, %p143
    %p145 = scmp.ne.s32.totalorder %s134, %s135
    %p146 = scmp.eq.s32.totalorder %s16, 0
    %p147 = por %p145, %p146
    %p148 = scmp.ne.s32.totalorder %s134, %s135
    %p149 = scmp.eq.s32.totalorder %s17, 3
    %p150 = por %p148, %p149
    %p152 = scmp.ne.s32.totalorder %s135, %s151
    %p153 = scmp.eq.s32.totalorder %s17, 0
    %p154 = por %p152, %p153
    %p155 = scmp.le.s32.totalorder 1, %s11
    %p156 = scmp.lt.s32.totalorder %s11, 5
    %p157 = pnand %p155, %p156
    %p158 = pneg %p157
    // Predicated region
    $region9: #{convmixer_adapt_forward.11} parent=5 // pred_check
      _
    $region10: #{convmixer_adapt_forward.11} parent=5 // pred_check_branch
      %160 = sbr.rel (%p157) target = $region12
    $region11: #{convmixer_adapt_forward.11} parent=5 // pred_region
      %s161 = ssub.s32 %s11, 1
      // Predicated region
      $region13: #{convmixer_adapt_forward.11} parent=11 // pred_check
        %p162 = pneg %p58
      $region14: #{convmixer_adapt_forward.11} parent=11 // pred_check_branch
        %164 = sbr.rel (%p162) target = $region16
      $region15: #{convmixer_adapt_forward.11} parent=11 // pred_region
        _
      $region16: #{convmixer_adapt_forward.11} parent=11 // pred_fallthru
        _
      // Predicated region
      $region17: #{convmixer_adapt_forward.11} parent=11 // pred_check
        %p165 = pneg %p79
      $region18: #{convmixer_adapt_forward.11} parent=11 // pred_check_branch
        %167 = sbr.rel (%p165) target = $region20
      $region19: #{convmixer_adapt_forward.11} parent=11 // pred_region
        _
      $region20: #{convmixer_adapt_forward.11} parent=11 // pred_fallthru
        _
      // Predicated region
      $region21: #{convmixer_adapt_forward.11} parent=11 // pred_check
        %p168 = pneg %p100
      $region22: #{convmixer_adapt_forward.11} parent=11 // pred_check_branch
        %170 = sbr.rel (%p168) target = $region24
      $region23: #{convmixer_adapt_forward.11} parent=11 // pred_region
        _
      $region24: #{convmixer_adapt_forward.11} parent=11 // pred_fallthru
        _
      // Predicated region
      $region25: #{convmixer_adapt_forward.11} parent=11 // pred_check
        %p171 = pneg %p121
      $region26: #{convmixer_adapt_forward.11} parent=11 // pred_check_branch
        %173 = sbr.rel (%p171) target = $region28
      $region27: #{convmixer_adapt_forward.11} parent=11 // pred_region
        _
      $region28: #{convmixer_adapt_forward.11} parent=11 // pred_fallthru
        _
    $region12: #{convmixer_adapt_forward.11} parent=5 // pred_fallthru
      _
    %p174 = scmp.lt.s32.totalorder %s11, 4
    // Predicated region
    $region29: #{convmixer_adapt_forward.11} parent=5 // pred_check
      %p175 = pneg %p174
    $region30: #{convmixer_adapt_forward.11} parent=5 // pred_check_branch
      %177 = sbr.rel (%p175) target = $region32
    $region31: #{convmixer_adapt_forward.11} parent=5 // pred_region
      // Predicated region
      $region33: #{convmixer_adapt_forward.11} parent=31 // pred_check
        %p178 = pneg %p31
      $region34: #{convmixer_adapt_forward.11} parent=31 // pred_check_branch
        %180 = sbr.rel (%p178) target = $region36
      $region35: #{convmixer_adapt_forward.11} parent=31 // pred_region
        %p181 = scmp.lt.s32.totalorder %s11, 3
        %s182 = scalar_select %p181, %s11, 3
        %s183 = smul.addr %s182, 8
        %s184 = smul.addr %s183, 4
        %s185 = scalar_lea.vmem %s0, %s184
      $region36: #{convmixer_adapt_forward.11} parent=31 // pred_fallthru
        _
    $region32: #{convmixer_adapt_forward.11} parent=5 // pred_fallthru
      _
    %p186 = scmp.le.s32.totalorder 1, %s11
    %p187 = scmp.lt.s32.totalorder %s11, 5
    %p188 = pnand %p186, %p187
    %p189 = pneg %p188
    // Predicated region
    $region37: #{convmixer_adapt_forward.11} parent=5 // pred_check
      _
    $region38: #{convmixer_adapt_forward.11} parent=5 // pred_check_branch
      %191 = sbr.rel (%p188) target = $region40
    $region39: #{convmixer_adapt_forward.11} parent=5 // pred_region
      %s192 = ssub.s32 %s11, 1
      %p193 = scmp.lt.s32.totalorder %s16, 3
      %s194 = scalar_select %p193, %s16, 3
      %s195 = smul.addr %s194, 8
      %s196 = smul.addr %s195, 4
      %s197 = scalar_lea.vmem %s0, %s196
      %p198 = pneg %p37
      %p199 = pneg %p34
      %p200 = pneg %p58
      %p201 = pneg %p55
      %p202 = pneg %p79
      %p203 = pneg %p76
      %p204 = pneg %p100
      %p205 = pneg %p97
      %p206 = pneg %p121
      %p207 = pneg %p118
      %p208 = pneg %p147
      %p209 = pneg %p144
      %p210 = scmp.lt.s32.totalorder %s16, 3
      %s211 = scalar_select %p210, %s16, 3
      %s212 = scalar_lea.vmem %s5, %s211
      %p213 = scmp.lt.s32.totalorder %s16, 3
      %s214 = scalar_select %p213, %s16, 3
      %s215 = smul.addr %s214, 8
      %s216 = smul.addr %s215, 4
      %s217 = scalar_lea.vmem %s0, %s216
      %p218 = scmp.lt.s32.totalorder %s16, 3
      %s219 = scalar_select %p218, %s16, 3
      %s220 = scalar_lea.vmem %s5, %s219
      %v221 = vld [vmem:[%s217] sm:$0xf]
      %v222 = vld [vmem:[%s217 + $0x4] sm:$0xf]
      %v223 = vld [vmem:[%s217 + $0x8] sm:$0xf]
      %v224 = vld [vmem:[%s217 + $0xc] sm:$0xf]
      %v225 = vld [vmem:[%s217 + $0x10] sm:$0xf]
      %v226 = vld [vmem:[%s217 + $0x14] sm:$0xf]
      %v227 = vld [vmem:[%s217 + $0x18] sm:$0xf]
      %v228 = vld [vmem:[%s217 + $0x1c] sm:$0xf]
      %v229 = vunpack.c.l.bf16 %v221
      %v230 = vunpack.c.l.bf16 %v222
      %v231 = vunpack.c.l.bf16 %v223
      %v232 = vunpack.c.l.bf16 %v224
      %v233 = vunpack.c.l.bf16 %v225
      %v234 = vunpack.c.l.bf16 %v226
      %v235 = vunpack.c.l.bf16 %v227
      %v236 = vunpack.c.l.bf16 %v228
      %v237 = vadd.f32 %v229, %v230
      %v238 = vadd.f32 %v237, %v231
      %v239 = vadd.f32 %v238, %v232
      %v240 = vadd.f32 %v239, %v233
      %v241 = vadd.f32 %v240, %v234
      %v242 = vadd.f32 %v241, %v235
      %v243 = vadd.f32 %v242, %v236
      %v244 = vrot.slane %v243, 4
      %v245 = vadd.f32 %v243, %v244
      %v246 = vrot.slane %v245, 2
      %v247 = vadd.f32 %v245, %v246
      %v248 = vrot.slane %v247, 1
      %v249 = vadd.f32 %v247, %v248
      %v250 = vrcp.pop 64.0
      %v251 = vmul.f32 %v249, %v250
      %v252 = vld [vmem:[%s1] sm:$0x1]
      %v253 = vmul.f32 %v251, %v252
      %v254 = vld [vmem:[%s2] sm:$0x1]
      %v255 = vadd.f32 %v253, %v254
      %v256 = vlaneseq
      %v257 = vshrl.u32 %v256, 7
      %v258 = vsub.s32 0, %v257
      %v259 = vrot.slane %v255, %v258
      %v260 = vld [vmem:[%s3] sm:$0xff]
      %v261 = vld [vmem:[%s3 + $0x8] sm:$0xff]
      %v262 = vld [vmem:[%s3 + $0x10] sm:$0xff]
      %v263 = vld [vmem:[%s3 + $0x18] sm:$0xff]
      %v264 = vld [vmem:[%s3 + $0x20] sm:$0xff]
      %v265 = vld [vmem:[%s3 + $0x28] sm:$0xff]
      %v266 = vld [vmem:[%s3 + $0x30] sm:$0xff]
      %v267 = vld [vmem:[%s3 + $0x38] sm:$0xff]
      %v268 = vld [vmem:[%s3 + $0x40] sm:$0xff]
      %v269 = vld [vmem:[%s3 + $0x48] sm:$0xff]
      %v270 = vld [vmem:[%s3 + $0x50] sm:$0xff]
      %v271 = vld [vmem:[%s3 + $0x58] sm:$0xff]
      %v272 = vld [vmem:[%s3 + $0x60] sm:$0xff]
      %v273 = vld [vmem:[%s3 + $0x68] sm:$0xff]
      %v274 = vld [vmem:[%s3 + $0x70] sm:$0xff]
      %v275 = vld [vmem:[%s3 + $0x78] sm:$0xff]
      %v276 = vld [vmem:[%s4] sm:$0x1]
      %v278 = vlaneseq
      %v279 = vshrl.u32 %v278, 7
      %v280 = vsub.s32 0, %v279
      %v281 = vrot.slane %v276, %v280
      %283 = vmatprep.subr.mxu0 0.0
      %284 = vmatpush1.msra.mxu0 %v260
      %285 = vmatprep.subr.mxu0 0.0
      %286 = vmatpush1.msra.mxu0 %v261
      %287 = vmatprep.subr.mxu0 0.0
      %288 = vmatpush1.msra.mxu0 %v262
      %289 = vmatprep.subr.mxu0 0.0
      %290 = vmatpush1.msra.mxu0 %v263
      %291 = vmatprep.subr.mxu0 0.0
      %292 = vmatpush1.msra.mxu0 %v264
      %293 = vmatprep.subr.mxu0 0.0
      %294 = vmatpush1.msra.mxu0 %v265
      %295 = vmatprep.subr.mxu0 0.0
      %296 = vmatpush1.msra.mxu0 %v266
      %297 = vmatprep.subr.mxu0 0.0
      %298 = vmatpush1.msra.mxu0 %v267
      %299 = vmatprep.subr.mxu0 0.0
      %300 = vmatpush1.msra.mxu0 %v268
      %301 = vmatprep.subr.mxu0 0.0
      %302 = vmatpush1.msra.mxu0 %v269
      %303 = vmatprep.subr.mxu0 0.0
      %304 = vmatpush1.msra.mxu0 %v270
      %305 = vmatprep.subr.mxu0 0.0
      %306 = vmatpush1.msra.mxu0 %v271
      %307 = vmatprep.subr.mxu0 0.0
      %308 = vmatpush1.msra.mxu0 %v272
      %309 = vmatprep.subr.mxu0 0.0
      %310 = vmatpush1.msra.mxu0 %v273
      %311 = vmatprep.subr.mxu0 0.0
      %312 = vmatpush1.msra.mxu0 %v274
      %313 = vmatprep.subr.mxu0 0.0
      %314 = vmatpush1.msra.mxu0 %v275
      %315 = vmatprep.subr.mxu0 0.0
      %316 = vmatpush1.msra.mxu0 0.0
      %317 = vmatprep.subr.mxu0 0.0
      %318 = vmatpush1.msra.mxu0 0.0
      %319 = vmatprep.subr.mxu0 0.0
      %320 = vmatpush1.msra.mxu0 0.0
      %321 = vmatprep.subr.mxu0 0.0
      %322 = vmatpush1.msra.mxu0 0.0
      %323 = vmatprep.subr.mxu0 0.0
      %324 = vmatpush1.msra.mxu0 0.0
      %325 = vmatprep.subr.mxu0 0.0
      %326 = vmatpush1.msra.mxu0 0.0
      %327 = vmatprep.subr.mxu0 0.0
      %328 = vmatpush1.msra.mxu0 0.0
      %329 = vmatprep.subr.mxu0 0.0
      %330 = vmatpush1.msra.mxu0 0.0
      %331 = vmatprep.subr.mxu0 0.0
      %332 = vmatpush1.msra.mxu0 0.0
      %333 = vmatprep.subr.mxu0 0.0
      %334 = vmatpush1.msra.mxu0 0.0
      %335 = vmatprep.subr.mxu0 0.0
      %336 = vmatpush1.msra.mxu0 0.0
      %337 = vmatprep.subr.mxu0 0.0
      %338 = vmatpush1.msra.mxu0 0.0
      %339 = vmatprep.subr.mxu0 0.0
      %340 = vmatpush1.msra.mxu0 0.0
      %341 = vmatprep.subr.mxu0 0.0
      %342 = vmatpush1.msra.mxu0 0.0
      %343 = vmatprep.subr.mxu0 0.0
      %344 = vmatpush1.msra.mxu0 0.0
      %345 = vmatprep.subr.mxu0 0.0
      %346 = vmatpush1.msra.mxu0 0.0
      %347 = vmatprep.mubr.f32.mxu0 0.0
      %348 = vmatmul.mubr.f32.gmra.mrb[0].mxu0 %v259
      %v349 = vpop.f32.mrb[0].mxu0
      %v350 = vadd.f32 %v281, %v349
      %v351 = vpop.f32.mrb[0].mxu0
      %352 = vdwg.mxu0
      %vm353 = vcmask 253952
      %354 = vst.msk [vmem:[%s220] sm:$0x1] %vm353, %v350
      %p355 = scmp.lt.s32.totalorder %s16, 3
      %s356 = scalar_select %p355, %s16, 3
      %s357 = scalar_lea.vmem %s5, %s356
      // Predicated region
      $region41: #{convmixer_adapt_forward.11} parent=39 // pred_check
        %p358 = pneg %p144
      $region42: #{convmixer_adapt_forward.11} parent=39 // pred_check_branch
        %360 = sbr.rel (%p358) target = $region44
      $region43: #{convmixer_adapt_forward.11} parent=39 // pred_region
        _
      $region44: #{convmixer_adapt_forward.11} parent=39 // pred_fallthru
        _
    $region40: #{convmixer_adapt_forward.11} parent=5 // pred_fallthru
      _
    %p361 = scmp.le.s32.totalorder 2, %s11
    // Predicated region
    $region45: #{convmixer_adapt_forward.11} parent=5 // pred_check
      %p362 = pneg %p361
    $region46: #{convmixer_adapt_forward.11} parent=5 // pred_check_branch
      %364 = sbr.rel (%p362) target = $region48
    $region47: #{convmixer_adapt_forward.11} parent=5 // pred_region
      %s365 = ssub.s32 %s11, 2
      // Predicated region
      $region49: #{convmixer_adapt_forward.11} parent=47 // pred_check
        %p366 = pneg %p150
      $region50: #{convmixer_adapt_forward.11} parent=47 // pred_check_branch
        %368 = sbr.rel (%p366) target = $region52
      $region51: #{convmixer_adapt_forward.11} parent=47 // pred_region
        %p369 = scmp.lt.s32.totalorder %s17, 3
        %s370 = scalar_select %p369, %s17, 3
        %s371 = scalar_lea.vmem %s5, %s370
      $region52: #{convmixer_adapt_forward.11} parent=47 // pred_fallthru
        _
    $region48: #{convmixer_adapt_forward.11} parent=5 // pred_fallthru
      _
  $region6: #{convmixer_adapt_forward.11} parent=0 // loop_footer
    %s15 = sadd.s32 1, %s11
  $region7: #{convmixer_adapt_forward.11} parent=0 // loop_footer_branch
    %10 = sbr.rel target = $region3
  $region8: #{convmixer_adapt_forward.11} parent=0 // loop_exit
    _

// kernel: convmixer_adapt_forward.8
$region0: #{convmixer_adapt_forward.8}
  #allocation0 [shape = 'u32[]', space=smem, size = 0x4, offset = 0x4, fixed_abs, tag = 'smem constant byte address 0x4 - core index']
  #allocation1 [shape = 'u32[144,128]{1,0:T(1,128)}', space=vmem, size = 0x12000, scoped, tag = 'internal scratch']
  %s0 = inlined_call_operand.vmem [shape: bf16[256,128], index: 0, kind: input, shape index: {}]
  %s1 = inlined_call_operand.vmem [shape: bf16[256,128], index: 1, kind: input, shape index: {}]
  %s2 = inlined_call_operand.vmem [shape: f32[1,128], index: 2, kind: input, shape index: {}]
  %s3 = inlined_call_operand.vmem [shape: f32[1,128], index: 3, kind: input, shape index: {}]
  %s4 = inlined_call_operand.vmem [shape: f32[1,128], index: 4, kind: input, shape index: {}]
  %s5 = inlined_call_operand.vmem [shape: bf16[128,128], index: 5, kind: input, shape index: {}]
  %s6 = inlined_call_operand.vmem [shape: f32[1,128], index: 6, kind: input, shape index: {}]
  %s7 = inlined_call_operand.vmem [shape: bf16[256,128], index: 7, kind: output, shape index: {0}]
  %s8 = inlined_call_operand.vmem [shape: f32[1,1,128], index: 8, kind: output, shape index: {1}]
  %s9 = inlined_call_operand.vmem [shape: f32[1,1,128], index: 9, kind: output, shape index: {2}]
  %10 = xla_tuple %s7, %s8, %s9
  %s11 = sld [smem:[#allocation0]]
  $region54: #{convmixer_adapt_forward.8} parent=0
    _
  %s13 = ssub.s32 1, %s11
  %s14 = scalar_select 0, %s13, %s11
  // Predicated region
  $region2: #{convmixer_adapt_forward.8} parent=0 // pred_check
    _
  $region3: #{convmixer_adapt_forward.8} parent=0 // pred_check_branch
    %16 = sbr.rel (0) target = $region5
  $region4: #{convmixer_adapt_forward.8} parent=0 // pred_region
    _
  $region5: #{convmixer_adapt_forward.8} parent=0 // pred_fallthru
    _
  // Predicated region
  $region6: #{convmixer_adapt_forward.8} parent=0 // pred_check
    _
  $region7: #{convmixer_adapt_forward.8} parent=0 // pred_check_branch
    %18 = sbr.rel (0) target = $region9
  $region8: #{convmixer_adapt_forward.8} parent=0 // pred_region
    _
  $region9: #{convmixer_adapt_forward.8} parent=0 // pred_fallthru
    _
  // Predicated region
  $region10: #{convmixer_adapt_forward.8} parent=0 // pred_check
    _
  $region11: #{convmixer_adapt_forward.8} parent=0 // pred_check_branch
    %20 = sbr.rel (0) target = $region13
  $region12: #{convmixer_adapt_forward.8} parent=0 // pred_region
    _
  $region13: #{convmixer_adapt_forward.8} parent=0 // pred_fallthru
    _
  // Predicated region
  $region14: #{convmixer_adapt_forward.8} parent=0 // pred_check
    _
  $region15: #{convmixer_adapt_forward.8} parent=0 // pred_check_branch
    %22 = sbr.rel (0) target = $region17
  $region16: #{convmixer_adapt_forward.8} parent=0 // pred_region
    _
  $region17: #{convmixer_adapt_forward.8} parent=0 // pred_fallthru
    _
  // Predicated region
  $region18: #{convmixer_adapt_forward.8} parent=0 // pred_check
    _
  $region19: #{convmixer_adapt_forward.8} parent=0 // pred_check_branch
    %24 = sbr.rel (0) target = $region21
  $region20: #{convmixer_adapt_forward.8} parent=0 // pred_region
    _
  $region21: #{convmixer_adapt_forward.8} parent=0 // pred_fallthru
    _
  // Predicated region
  $region22: #{convmixer_adapt_forward.8} parent=0 // pred_check
    _
  $region23: #{convmixer_adapt_forward.8} parent=0 // pred_check_branch
    %26 = sbr.rel (0) target = $region25
  $region24: #{convmixer_adapt_forward.8} parent=0 // pred_region
    _
  $region25: #{convmixer_adapt_forward.8} parent=0 // pred_fallthru
    _
  // Predicated region
  $region26: #{convmixer_adapt_forward.8} parent=0 // pred_check
    _
  $region27: #{convmixer_adapt_forward.8} parent=0 // pred_check_branch
    %28 = sbr.rel (0) target = $region29
  $region28: #{convmixer_adapt_forward.8} parent=0 // pred_region
    _
  $region29: #{convmixer_adapt_forward.8} parent=0 // pred_fallthru
    _
  %v30 = vld [vmem:[%s0] sm:$0xf]
  %v31 = vld [vmem:[%s0 + $0x4] sm:$0xf]
  %v32 = vld [vmem:[%s0 + $0x8] sm:$0xf]
  %v33 = vld [vmem:[%s0 + $0xc] sm:$0xf]
  %v34 = vld [vmem:[%s0 + $0x10] sm:$0xf]
  %v35 = vld [vmem:[%s0 + $0x14] sm:$0xf]
  %v36 = vld [vmem:[%s0 + $0x18] sm:$0xf]
  %v37 = vld [vmem:[%s0 + $0x1c] sm:$0xf]
  %v38 = vld [vmem:[%s0 + $0x20] sm:$0xf]
  %v39 = vld [vmem:[%s0 + $0x24] sm:$0xf]
  %v40 = vld [vmem:[%s0 + $0x28] sm:$0xf]
  %v41 = vld [vmem:[%s0 + $0x2c] sm:$0xf]
  %v42 = vld [vmem:[%s0 + $0x30] sm:$0xf]
  %v43 = vld [vmem:[%s0 + $0x34] sm:$0xf]
  %v44 = vld [vmem:[%s0 + $0x38] sm:$0xf]
  %v45 = vld [vmem:[%s0 + $0x3c] sm:$0xf]
  %v46 = vld [vmem:[%s0 + $0x40] sm:$0xf]
  %v47 = vld [vmem:[%s0 + $0x44] sm:$0xf]
  %v48 = vld [vmem:[%s0 + $0x48] sm:$0xf]
  %v49 = vld [vmem:[%s0 + $0x4c] sm:$0xf]
  %v50 = vld [vmem:[%s0 + $0x50] sm:$0xf]
  %v51 = vld [vmem:[%s0 + $0x54] sm:$0xf]
  %v52 = vld [vmem:[%s0 + $0x58] sm:$0xf]
  %v53 = vld [vmem:[%s0 + $0x5c] sm:$0xf]
  %v54 = vld [vmem:[%s0 + $0x60] sm:$0xf]
  %v55 = vld [vmem:[%s0 + $0x64] sm:$0xf]
  %v56 = vld [vmem:[%s0 + $0x68] sm:$0xf]
  %v57 = vld [vmem:[%s0 + $0x6c] sm:$0xf]
  %v58 = vld [vmem:[%s0 + $0x70] sm:$0xf]
  %v59 = vld [vmem:[%s0 + $0x74] sm:$0xf]
  %v60 = vld [vmem:[%s0 + $0x78] sm:$0xf]
  %v61 = vld [vmem:[%s0 + $0x7c] sm:$0xf]
  %v62 = vunpack.c.l.bf16 %v30
  %v63 = vunpack.c.l.bf16 %v31
  %v64 = vunpack.c.l.bf16 %v32
  %v65 = vunpack.c.l.bf16 %v33
  %v66 = vunpack.c.l.bf16 %v34
  %v67 = vunpack.c.l.bf16 %v35
  %v68 = vunpack.c.l.bf16 %v36
  %v69 = vunpack.c.l.bf16 %v37
  %v70 = vunpack.c.l.bf16 %v38
  %v71 = vunpack.c.l.bf16 %v39
  %v72 = vunpack.c.l.bf16 %v40
  %v73 = vunpack.c.l.bf16 %v41
  %v74 = vunpack.c.l.bf16 %v42
  %v75 = vunpack.c.l.bf16 %v43
  %v76 = vunpack.c.l.bf16 %v44
  %v77 = vunpack.c.l.bf16 %v45
  %v78 = vunpack.c.l.bf16 %v46
  %v79 = vunpack.c.l.bf16 %v47
  %v80 = vunpack.c.l.bf16 %v48
  %v81 = vunpack.c.l.bf16 %v49
  %v82 = vunpack.c.l.bf16 %v50
  %v83 = vunpack.c.l.bf16 %v51
  %v84 = vunpack.c.l.bf16 %v52
  %v85 = vunpack.c.l.bf16 %v53
  %v86 = vunpack.c.l.bf16 %v54
  %v87 = vunpack.c.l.bf16 %v55
  %v88 = vunpack.c.l.bf16 %v56
  %v89 = vunpack.c.l.bf16 %v57
  %v90 = vunpack.c.l.bf16 %v58
  %v91 = vunpack.c.l.bf16 %v59
  %v92 = vunpack.c.l.bf16 %v60
  %v93 = vunpack.c.l.bf16 %v61
  %v94 = vld [vmem:[%s2] sm:$0x1]
  %v96 = vlaneseq
  %v97 = vshrl.u32 %v96, 7
  %v98 = vsub.s32 0, %v97
  %v99 = vrot.slane %v94, %v98
  %v101 = vmul.f32 %v62, %v99
  %v102 = vmul.f32 %v63, %v99
  %v103 = vmul.f32 %v64, %v99
  %v104 = vmul.f32 %v65, %v99
  %v105 = vmul.f32 %v66, %v99
  %v106 = vmul.f32 %v67, %v99
  %v107 = vmul.f32 %v68, %v99
  %v108 = vmul.f32 %v69, %v99
  %v109 = vmul.f32 %v70, %v99
  %v110 = vmul.f32 %v71, %v99
  %v111 = vmul.f32 %v72, %v99
  %v112 = vmul.f32 %v73, %v99
  %v113 = vmul.f32 %v74, %v99
  %v114 = vmul.f32 %v75, %v99
  %v115 = vmul.f32 %v76, %v99
  %v116 = vmul.f32 %v77, %v99
  %v117 = vmul.f32 %v78, %v99
  %v118 = vmul.f32 %v79, %v99
  %v119 = vmul.f32 %v80, %v99
  %v120 = vmul.f32 %v81, %v99
  %v121 = vmul.f32 %v82, %v99
  %v122 = vmul.f32 %v83, %v99
  %v123 = vmul.f32 %v84, %v99
  %v124 = vmul.f32 %v85, %v99
  %v125 = vmul.f32 %v86, %v99
  %v126 = vmul.f32 %v87, %v99
  %v127 = vmul.f32 %v88, %v99
  %v128 = vmul.f32 %v89, %v99
  %v129 = vmul.f32 %v90, %v99
  %v130 = vmul.f32 %v91, %v99
  %v131 = vmul.f32 %v92, %v99
  %v132 = vmul.f32 %v93, %v99
  %v133 = vld [vmem:[%s1] sm:$0xf]
  %v134 = vld [vmem:[%s1 + $0x4] sm:$0xf]
  %v135 = vld [vmem:[%s1 + $0x8] sm:$0xf]
  %v136 = vld [vmem:[%s1 + $0xc] sm:$0xf]
  %v137 = vld [vmem:[%s1 + $0x10] sm:$0xf]
  %v138 = vld [vmem:[%s1 + $0x14] sm:$0xf]
  %v139 = vld [vmem:[%s1 + $0x18] sm:$0xf]
  %v140 = vld [vmem:[%s1 + $0x1c] sm:$0xf]
  %v141 = vld [vmem:[%s1 + $0x20] sm:$0xf]
  %v142 = vld [vmem:[%s1 + $0x24] sm:$0xf]
  %v143 = vld [vmem:[%s1 + $0x28] sm:$0xf]
  %v144 = vld [vmem:[%s1 + $0x2c] sm:$0xf]
  %v145 = vld [vmem:[%s1 + $0x30] sm:$0xf]
  %v146 = vld [vmem:[%s1 + $0x34] sm:$0xf]
  %v147 = vld [vmem:[%s1 + $0x38] sm:$0xf]
  %v148 = vld [vmem:[%s1 + $0x3c] sm:$0xf]
  %v149 = vld [vmem:[%s1 + $0x40] sm:$0xf]
  %v150 = vld [vmem:[%s1 + $0x44] sm:$0xf]
  %v151 = vld [vmem:[%s1 + $0x48] sm:$0xf]
  %v152 = vld [vmem:[%s1 + $0x4c] sm:$0xf]
  %v153 = vld [vmem:[%s1 + $0x50] sm:$0xf]
  %v154 = vld [vmem:[%s1 + $0x54] sm:$0xf]
  %v155 = vld [vmem:[%s1 + $0x58] sm:$0xf]
  %v156 = vld [vmem:[%s1 + $0x5c] sm:$0xf]
  %v157 = vld [vmem:[%s1 + $0x60] sm:$0xf]
  %v158 = vld [vmem:[%s1 + $0x64] sm:$0xf]
  %v159 = vld [vmem:[%s1 + $0x68] sm:$0xf]
  %v160 = vld [vmem:[%s1 + $0x6c] sm:$0xf]
  %v161 = vld [vmem:[%s1 + $0x70] sm:$0xf]
  %v162 = vld [vmem:[%s1 + $0x74] sm:$0xf]
  %v163 = vld [vmem:[%s1 + $0x78] sm:$0xf]
  %v164 = vld [vmem:[%s1 + $0x7c] sm:$0xf]
  %v165 = vunpack.c.l.bf16 %v133
  %v166 = vunpack.c.l.bf16 %v134
  %v167 = vunpack.c.l.bf16 %v135
  %v168 = vunpack.c.l.bf16 %v136
  %v169 = vunpack.c.l.bf16 %v137
  %v170 = vunpack.c.l.bf16 %v138
  %v171 = vunpack.c.l.bf16 %v139
  %v172 = vunpack.c.l.bf16 %v140
  %v173 = vunpack.c.l.bf16 %v141
  %v174 = vunpack.c.l.bf16 %v142
  %v175 = vunpack.c.l.bf16 %v143
  %v176 = vunpack.c.l.bf16 %v144
  %v177 = vunpack.c.l.bf16 %v145
  %v178 = vunpack.c.l.bf16 %v146
  %v179 = vunpack.c.l.bf16 %v147
  %v180 = vunpack.c.l.bf16 %v148
  %v181 = vunpack.c.l.bf16 %v149
  %v182 = vunpack.c.l.bf16 %v150
  %v183 = vunpack.c.l.bf16 %v151
  %v184 = vunpack.c.l.bf16 %v152
  %v185 = vunpack.c.l.bf16 %v153
  %v186 = vunpack.c.l.bf16 %v154
  %v187 = vunpack.c.l.bf16 %v155
  %v188 = vunpack.c.l.bf16 %v156
  %v189 = vunpack.c.l.bf16 %v157
  %v190 = vunpack.c.l.bf16 %v158
  %v191 = vunpack.c.l.bf16 %v159
  %v192 = vunpack.c.l.bf16 %v160
  %v193 = vunpack.c.l.bf16 %v161
  %v194 = vunpack.c.l.bf16 %v162
  %v195 = vunpack.c.l.bf16 %v163
  %v196 = vunpack.c.l.bf16 %v164
  %v197 = vld [vmem:[%s3] sm:$0x1]
  %v199 = vlaneseq
  %v200 = vshrl.u32 %v199, 7
  %v201 = vsub.s32 0, %v200
  %v202 = vrot.slane %v197, %v201
  %v204 = vmul.f32 %v165, %v202
  %v205 = vmul.f32 %v166, %v202
  %v206 = vmul.f32 %v167, %v202
  %v207 = vmul.f32 %v168, %v202
  %v208 = vmul.f32 %v169, %v202
  %v209 = vmul.f32 %v170, %v202
  %v210 = vmul.f32 %v171, %v202
  %v211 = vmul.f32 %v172, %v202
  %v212 = vmul.f32 %v173, %v202
  %v213 = vmul.f32 %v174, %v202
  %v214 = vmul.f32 %v175, %v202
  %v215 = vmul.f32 %v176, %v202
  %v216 = vmul.f32 %v177, %v202
  %v217 = vmul.f32 %v178, %v202
  %v218 = vmul.f32 %v179, %v202
  %v219 = vmul.f32 %v180, %v202
  %v220 = vmul.f32 %v181, %v202
  %v221 = vmul.f32 %v182, %v202
  %v222 = vmul.f32 %v183, %v202
  %v223 = vmul.f32 %v184, %v202
  %v224 = vmul.f32 %v185, %v202
  %v225 = vmul.f32 %v186, %v202
  %v226 = vmul.f32 %v187, %v202
  %v227 = vmul.f32 %v188, %v202
  %v228 = vmul.f32 %v189, %v202
  %v229 = vmul.f32 %v190, %v202
  %v230 = vmul.f32 %v191, %v202
  %v231 = vmul.f32 %v192, %v202
  %v232 = vmul.f32 %v193, %v202
  %v233 = vmul.f32 %v194, %v202
  %v234 = vmul.f32 %v195, %v202
  %v235 = vmul.f32 %v196, %v202
  %v236 = vadd.f32 %v101, %v204
  %v237 = vadd.f32 %v102, %v205
  %v238 = vadd.f32 %v103, %v206
  %v239 = vadd.f32 %v104, %v207
  %v240 = vadd.f32 %v105, %v208
  %v241 = vadd.f32 %v106, %v209
  %v242 = vadd.f32 %v107, %v210
  %v243 = vadd.f32 %v108, %v211
  %v244 = vadd.f32 %v109, %v212
  %v245 = vadd.f32 %v110, %v213
  %v246 = vadd.f32 %v111, %v214
  %v247 = vadd.f32 %v112, %v215
  %v248 = vadd.f32 %v113, %v216
  %v249 = vadd.f32 %v114, %v217
  %v250 = vadd.f32 %v115, %v218
  %v251 = vadd.f32 %v116, %v219
  %v252 = vadd.f32 %v117, %v220
  %v253 = vadd.f32 %v118, %v221
  %v254 = vadd.f32 %v119, %v222
  %v255 = vadd.f32 %v120, %v223
  %v256 = vadd.f32 %v121, %v224
  %v257 = vadd.f32 %v122, %v225
  %v258 = vadd.f32 %v123, %v226
  %v259 = vadd.f32 %v124, %v227
  %v260 = vadd.f32 %v125, %v228
  %v261 = vadd.f32 %v126, %v229
  %v262 = vadd.f32 %v127, %v230
  %v263 = vadd.f32 %v128, %v231
  %v264 = vadd.f32 %v129, %v232
  %v265 = vadd.f32 %v130, %v233
  %v266 = vadd.f32 %v131, %v234
  %v267 = vadd.f32 %v132, %v235
  %v268 = vld [vmem:[%s4] sm:$0x1]
  %v270 = vlaneseq
  %v271 = vshrl.u32 %v270, 7
  %v272 = vsub.s32 0, %v271
  %v273 = vrot.slane %v268, %v272
  %v275 = vadd.f32 %v236, %v273
  %v276 = vadd.f32 %v237, %v273
  %v277 = vadd.f32 %v238, %v273
  %v278 = vadd.f32 %v239, %v273
  %v279 = vadd.f32 %v240, %v273
  %v280 = vadd.f32 %v241, %v273
  %v281 = vadd.f32 %v242, %v273
  %v282 = vadd.f32 %v243, %v273
  %v283 = vadd.f32 %v244, %v273
  %v284 = vadd.f32 %v245, %v273
  %v285 = vadd.f32 %v246, %v273
  %v286 = vadd.f32 %v247, %v273
  %v287 = vadd.f32 %v248, %v273
  %v288 = vadd.f32 %v249, %v273
  %v289 = vadd.f32 %v250, %v273
  %v290 = vadd.f32 %v251, %v273
  %v291 = vadd.f32 %v252, %v273
  %v292 = vadd.f32 %v253, %v273
  %v293 = vadd.f32 %v254, %v273
  %v294 = vadd.f32 %v255, %v273
  %v295 = vadd.f32 %v256, %v273
  %v296 = vadd.f32 %v257, %v273
  %v297 = vadd.f32 %v258, %v273
  %v298 = vadd.f32 %v259, %v273
  %v299 = vadd.f32 %v260, %v273
  %v300 = vadd.f32 %v261, %v273
  %v301 = vadd.f32 %v262, %v273
  %v302 = vadd.f32 %v263, %v273
  %v303 = vadd.f32 %v264, %v273
  %v304 = vadd.f32 %v265, %v273
  %v305 = vadd.f32 %v266, %v273
  %v306 = vadd.f32 %v267, %v273
  %v307 = vpack.c.bf16 %v276, %v275
  %v308 = vpack.c.bf16 %v278, %v277
  %v309 = vpack.c.bf16 %v280, %v279
  %v310 = vpack.c.bf16 %v282, %v281
  %v311 = vpack.c.bf16 %v284, %v283
  %v312 = vpack.c.bf16 %v286, %v285
  %v313 = vpack.c.bf16 %v288, %v287
  %v314 = vpack.c.bf16 %v290, %v289
  %v315 = vpack.c.bf16 %v292, %v291
  %v316 = vpack.c.bf16 %v294, %v293
  %v317 = vpack.c.bf16 %v296, %v295
  %v318 = vpack.c.bf16 %v298, %v297
  %v319 = vpack.c.bf16 %v300, %v299
  %v320 = vpack.c.bf16 %v302, %v301
  %v321 = vpack.c.bf16 %v304, %v303
  %v322 = vpack.c.bf16 %v306, %v305
  %v323 = vld [vmem:[%s5] sm:$0xf]
  %v324 = vld [vmem:[%s5 + $0x4] sm:$0xf]
  %v325 = vld [vmem:[%s5 + $0x8] sm:$0xf]
  %v326 = vld [vmem:[%s5 + $0xc] sm:$0xf]
  %v327 = vld [vmem:[%s5 + $0x10] sm:$0xf]
  %v328 = vld [vmem:[%s5 + $0x14] sm:$0xf]
  %v329 = vld [vmem:[%s5 + $0x18] sm:$0xf]
  %v330 = vld [vmem:[%s5 + $0x1c] sm:$0xf]
  %v331 = vld [vmem:[%s5 + $0x20] sm:$0xf]
  %v332 = vld [vmem:[%s5 + $0x24] sm:$0xf]
  %v333 = vld [vmem:[%s5 + $0x28] sm:$0xf]
  %v334 = vld [vmem:[%s5 + $0x2c] sm:$0xf]
  %v335 = vld [vmem:[%s5 + $0x30] sm:$0xf]
  %v336 = vld [vmem:[%s5 + $0x34] sm:$0xf]
  %v337 = vld [vmem:[%s5 + $0x38] sm:$0xf]
  %v338 = vld [vmem:[%s5 + $0x3c] sm:$0xf]
  %v339 = vld [vmem:[%s6] sm:$0x1]
  %v341 = vlaneseq
  %v342 = vshrl.u32 %v341, 7
  %v343 = vsub.s32 0, %v342
  %v344 = vrot.slane %v339, %v343
  %v362 = vunpack.c.l.b16 %v323
  %v363 = vunpack.c.l.b16 %v324
  %v364 = vunpack.c.l.b16 %v325
  %v365 = vunpack.c.l.b16 %v326
  %v366 = vunpack.c.l.b16 %v327
  %v367 = vunpack.c.l.b16 %v328
  %v368 = vunpack.c.l.b16 %v329
  %v369 = vunpack.c.l.b16 %v330
  %v370 = vunpack.c.l.b16 %v331
  %v371 = vunpack.c.l.b16 %v332
  %v372 = vunpack.c.l.b16 %v333
  %v373 = vunpack.c.l.b16 %v334
  %v374 = vunpack.c.l.b16 %v335
  %v375 = vunpack.c.l.b16 %v336
  %v376 = vunpack.c.l.b16 %v337
  %v377 = vunpack.c.l.b16 %v338
  %v378 = vpack.c.b16 %v363, %v362
  %v379 = vpack.c.b16 %v365, %v364
  %v380 = vpack.c.b16 %v367, %v366
  %v381 = vpack.c.b16 %v369, %v368
  %v382 = vpack.c.b16 %v371, %v370
  %v383 = vpack.c.b16 %v373, %v372
  %v384 = vpack.c.b16 %v375, %v374
  %v385 = vpack.c.b16 %v377, %v376
  %394 = vmatprep.subr.bf16.mxu0 0
  %395 = vmatpush1.bf16.msra.mxu0 %v378
  %396 = vmatprep.subr.bf16.mxu0 0
  %397 = vmatpush1.bf16.msra.mxu0 %v379
  %398 = vmatprep.subr.bf16.mxu0 0
  %399 = vmatpush1.bf16.msra.mxu0 %v380
  %400 = vmatprep.subr.bf16.mxu0 0
  %401 = vmatpush1.bf16.msra.mxu0 %v381
  %402 = vmatprep.subr.bf16.mxu0 0
  %403 = vmatpush1.bf16.msra.mxu0 %v382
  %404 = vmatprep.subr.bf16.mxu0 0
  %405 = vmatpush1.bf16.msra.mxu0 %v383
  %406 = vmatprep.subr.bf16.mxu0 0
  %407 = vmatpush1.bf16.msra.mxu0 %v384
  %408 = vmatprep.subr.bf16.mxu0 0
  %409 = vmatpush1.bf16.msra.mxu0 %v385
  %410 = vmatprep.subr.bf16.mxu0 0
  %411 = vmatpush1.bf16.msra.mxu0 0
  %412 = vmatprep.subr.bf16.mxu0 0
  %413 = vmatpush1.bf16.msra.mxu0 0
  %414 = vmatprep.subr.bf16.mxu0 0
  %415 = vmatpush1.bf16.msra.mxu0 0
  %416 = vmatprep.subr.bf16.mxu0 0
  %417 = vmatpush1.bf16.msra.mxu0 0
  %418 = vmatprep.subr.bf16.mxu0 0
  %419 = vmatpush1.bf16.msra.mxu0 0
  %420 = vmatprep.subr.bf16.mxu0 0
  %421 = vmatpush1.bf16.msra.mxu0 0
  %422 = vmatprep.subr.bf16.mxu0 0
  %423 = vmatpush1.bf16.msra.mxu0 0
  %424 = vmatprep.subr.bf16.mxu0 0
  %425 = vmatpush1.bf16.msra.mxu0 0
  %426 = vmatprep.mubr.bf16.mxu0 0
  %427 = vmatmul.mubr.bf16.gmra.mrb[0].mxu0 %v307
  %v428 = vpop.f32.mrb[0].mxu0
  %v429 = vadd.f32 %v344, %v428
  %v430 = vpop.f32.mrb[0].mxu0
  %v431 = vpop.f32.mrb[0].mxu0
  %v432 = vadd.f32 %v344, %v431
  %v433 = vpop.f32.mrb[0].mxu0
  %434 = vmatprep.mubr.bf16.mxu0 0
  %435 = vmatmul.mubr.bf16.gmra.mrb[0].mxu0 %v308
  %v436 = vpop.f32.mrb[0].mxu0
  %v437 = vadd.f32 %v344, %v436
  %v438 = vpop.f32.mrb[0].mxu0
  %v439 = vpop.f32.mrb[0].mxu0
  %v440 = vadd.f32 %v344, %v439
  %v441 = vpop.f32.mrb[0].mxu0
  %442 = vmatprep.mubr.bf16.mxu0 0
  %443 = vmatmul.mubr.bf16.gmra.mrb[0].mxu0 %v309
  %v444 = vpop.f32.mrb[0].mxu0
  %v445 = vadd.f32 %v344, %v444
  %v446 = vpop.f32.mrb[0].mxu0
  %v447 = vpop.f32.mrb[0].mxu0
  %v448 = vadd.f32 %v344, %v447
  %v449 = vpop.f32.mrb[0].mxu0
  %450 = vmatprep.mubr.bf16.mxu0 0
  %451 = vmatmul.mubr.bf16.gmra.mrb[0].mxu0 %v310
  %v452 = vpop.f32.mrb[0].mxu0
  %v453 = vadd.f32 %v344, %v452
  %v454 = vpop.f32.mrb[0].mxu0
  %v455 = vpop.f32.mrb[0].mxu0
  %v456 = vadd.f32 %v344, %v455
  %v457 = vpop.f32.mrb[0].mxu0
  %458 = vmatprep.mubr.bf16.mxu0 0
  %459 = vmatmul.mubr.bf16.gmra.mrb[0].mxu0 %v311
  %v460 = vpop.f32.mrb[0].mxu0
  %v461 = vadd.f32 %v344, %v460
  %v462 = vpop.f32.mrb[0].mxu0
  %v463 = vpop.f32.mrb[0].mxu0
  %v464 = vadd.f32 %v344, %v463
  %v465 = vpop.f32.mrb[0].mxu0
  %466 = vmatprep.mubr.bf16.mxu0 0
  %467 = vmatmul.mubr.bf16.gmra.mrb[0].mxu0 %v312
  %v468 = vpop.f32.mrb[0].mxu0
  %v469 = vadd.f32 %v344, %v468
  %v470 = vpop.f32.mrb[0].mxu0
  %v471 = vpop.f32.mrb[0].mxu0
  %v472 = vadd.f32 %v344, %v471
  %v473 = vpop.f32.mrb[0].mxu0
  %474 = vmatprep.mubr.bf16.mxu0 0
  %475 = vmatmul.mubr.bf16.gmra.mrb[0].mxu0 %v313
  %v476 = vpop.f32.mrb[0].mxu0
  %v477 = vadd.f32 %v344, %v476
  %v478 = vpop.f32.mrb[0].mxu0
  %v479 = vpop.f32.mrb[0].mxu0
  %v480 = vadd.f32 %v344, %v479
  %v481 = vpop.f32.mrb[0].mxu0
  %482 = vmatprep.mubr.bf16.mxu0 0
  %483 = vmatmul.mubr.bf16.gmra.mrb[0].mxu0 %v314
  %v484 = vpop.f32.mrb[0].mxu0
  %v485 = vadd.f32 %v344, %v484
  %v486 = vpop.f32.mrb[0].mxu0
  %v487 = vpop.f32.mrb[0].mxu0
  %v488 = vadd.f32 %v344, %v487
  %v489 = vpop.f32.mrb[0].mxu0
  %490 = vmatprep.mubr.bf16.mxu0 0
  %491 = vmatmul.mubr.bf16.gmra.mrb[0].mxu0 %v315
  %v492 = vpop.f32.mrb[0].mxu0
  %v493 = vadd.f32 %v344, %v492
  %v494 = vpop.f32.mrb[0].mxu0
  %v495 = vpop.f32.mrb[0].mxu0
  %v496 = vadd.f32 %v344, %v495
  %v497 = vpop.f32.mrb[0].mxu0
  %498 = vmatprep.mubr.bf16.mxu0 0
  %499 = vmatmul.mubr.bf16.gmra.mrb[0].mxu0 %v316
  %v500 = vpop.f32.mrb[0].mxu0
  %v501 = vadd.f32 %v344, %v500
  %v502 = vpop.f32.mrb[0].mxu0
  %v503 = vpop.f32.mrb[0].mxu0
  %v504 = vadd.f32 %v344, %v503
  %v505 = vpop.f32.mrb[0].mxu0
  %506 = vmatprep.mubr.bf16.mxu0 0
  %507 = vmatmul.mubr.bf16.gmra.mrb[0].mxu0 %v317
  %v508 = vpop.f32.mrb[0].mxu0
  %v509 = vadd.f32 %v344, %v508
  %v510 = vpop.f32.mrb[0].mxu0
  %v511 = vpop.f32.mrb[0].mxu0
  %v512 = vadd.f32 %v344, %v511
  %v513 = vpop.f32.mrb[0].mxu0
  %514 = vmatprep.mubr.bf16.mxu0 0
  %515 = vmatmul.mubr.bf16.gmra.mrb[0].mxu0 %v318
  %v516 = vpop.f32.mrb[0].mxu0
  %v517 = vadd.f32 %v344, %v516
  %v518 = vpop.f32.mrb[0].mxu0
  %v519 = vpop.f32.mrb[0].mxu0
  %v520 = vadd.f32 %v344, %v519
  %v521 = vpop.f32.mrb[0].mxu0
  %522 = vmatprep.mubr.bf16.mxu0 0
  %523 = vmatmul.mubr.bf16.gmra.mrb[0].mxu0 %v319
  %v524 = vpop.f32.mrb[0].mxu0
  %v525 = vadd.f32 %v344, %v524
  %v526 = vpop.f32.mrb[0].mxu0
  %v527 = vpop.f32.mrb[0].mxu0
  %v528 = vadd.f32 %v344, %v527
  %v529 = vpop.f32.mrb[0].mxu0
  %530 = vmatprep.mubr.bf16.mxu0 0
  %531 = vmatmul.mubr.bf16.gmra.mrb[0].mxu0 %v320
  %v532 = vpop.f32.mrb[0].mxu0
  %v533 = vadd.f32 %v344, %v532
  %v534 = vpop.f32.mrb[0].mxu0
  %v535 = vpop.f32.mrb[0].mxu0
  %v536 = vadd.f32 %v344, %v535
  %v537 = vpop.f32.mrb[0].mxu0
  %538 = vmatprep.mubr.bf16.mxu0 0
  %539 = vmatmul.mubr.bf16.gmra.mrb[0].mxu0 %v321
  %v540 = vpop.f32.mrb[0].mxu0
  %v541 = vadd.f32 %v344, %v540
  %v542 = vpop.f32.mrb[0].mxu0
  %v543 = vpop.f32.mrb[0].mxu0
  %v544 = vadd.f32 %v344, %v543
  %v545 = vpop.f32.mrb[0].mxu0
  %546 = vmatprep.mubr.bf16.mxu0 0
  %547 = vmatmul.mubr.bf16.gmra.mrb[0].mxu0 %v322
  %v548 = vpop.f32.mrb[0].mxu0
  %v549 = vadd.f32 %v344, %v548
  %v550 = vpop.f32.mrb[0].mxu0
  %v551 = vpop.f32.mrb[0].mxu0
  %v552 = vadd.f32 %v344, %v551
  %v553 = vpop.f32.mrb[0].mxu0
  %554 = vdwg.mxu0
  %v555 = vmul.f32 %v429, 0.5
  %v556 = vmul.f32 %v432, 0.5
  %v557 = vmul.f32 %v437, 0.5
  %v558 = vmul.f32 %v440, 0.5
  %v559 = vmul.f32 %v445, 0.5
  %v560 = vmul.f32 %v448, 0.5
  %v561 = vmul.f32 %v453, 0.5
  %v562 = vmul.f32 %v456, 0.5
  %v563 = vmul.f32 %v461, 0.5
  %v564 = vmul.f32 %v464, 0.5
  %v565 = vmul.f32 %v469, 0.5
  %v566 = vmul.f32 %v472, 0.5
  %v567 = vmul.f32 %v477, 0.5
  %v568 = vmul.f32 %v480, 0.5
  %v569 = vmul.f32 %v485, 0.5
  %v570 = vmul.f32 %v488, 0.5
  %v571 = vmul.f32 %v493, 0.5
  %v572 = vmul.f32 %v496, 0.5
  %v573 = vmul.f32 %v501, 0.5
  %v574 = vmul.f32 %v504, 0.5
  %v575 = vmul.f32 %v509, 0.5
  %v576 = vmul.f32 %v512, 0.5
  %v577 = vmul.f32 %v517, 0.5
  %v578 = vmul.f32 %v520, 0.5
  %v579 = vmul.f32 %v525, 0.5
  %v580 = vmul.f32 %v528, 0.5
  %v581 = vmul.f32 %v533, 0.5
  %v582 = vmul.f32 %v536, 0.5
  %v583 = vmul.f32 %v541, 0.5
  %v584 = vmul.f32 %v544, 0.5
  %v585 = vmul.f32 %v549, 0.5
  %v586 = vmul.f32 %v552, 0.5
  %v587 = vmul.f32 %v429, 0.044715
  %v588 = vmul.f32 %v432, 0.044715
  %v589 = vmul.f32 %v437, 0.044715
  %v590 = vmul.f32 %v440, 0.044715
  %v591 = vmul.f32 %v445, 0.044715
  %v592 = vmul.f32 %v448, 0.044715
  %v593 = vmul.f32 %v453, 0.044715
  %v594 = vmul.f32 %v456, 0.044715
  %v595 = vmul.f32 %v461, 0.044715
  %v596 = vmul.f32 %v464, 0.044715
  %v597 = vmul.f32 %v469, 0.044715
  %v598 = vmul.f32 %v472, 0.044715
  %v599 = vmul.f32 %v477, 0.044715
  %v600 = vmul.f32 %v480, 0.044715
  %v601 = vmul.f32 %v485, 0.044715
  %v602 = vmul.f32 %v488, 0.044715
  %v603 = vmul.f32 %v493, 0.044715
  %v604 = vmul.f32 %v496, 0.044715
  %v605 = vmul.f32 %v501, 0.044715
  %v606 = vmul.f32 %v504, 0.044715
  %v607 = vmul.f32 %v509, 0.044715
  %v608 = vmul.f32 %v512, 0.044715
  %v609 = vmul.f32 %v517, 0.044715
  %v610 = vmul.f32 %v520, 0.044715
  %v611 = vmul.f32 %v525, 0.044715
  %v612 = vmul.f32 %v528, 0.044715
  %v613 = vmul.f32 %v533, 0.044715
  %v614 = vmul.f32 %v536, 0.044715
  %v615 = vmul.f32 %v541, 0.044715
  %v616 = vmul.f32 %v544, 0.044715
  %v617 = vmul.f32 %v549, 0.044715
  %v618 = vmul.f32 %v552, 0.044715
  %v619 = vmul.f32 %v587, %v429
  %v620 = vmul.f32 %v588, %v432
  %v621 = vmul.f32 %v589, %v437
  %v622 = vmul.f32 %v590, %v440
  %v623 = vmul.f32 %v591, %v445
  %v624 = vmul.f32 %v592, %v448
  %v625 = vmul.f32 %v593, %v453
  %v626 = vmul.f32 %v594, %v456
  %v627 = vmul.f32 %v595, %v461
  %v628 = vmul.f32 %v596, %v464
  %v629 = vmul.f32 %v597, %v469
  %v630 = vmul.f32 %v598, %v472
  %v631 = vmul.f32 %v599, %v477
  %v632 = vmul.f32 %v600, %v480
  %v633 = vmul.f32 %v601, %v485
  %v634 = vmul.f32 %v602, %v488
  %v635 = vmul.f32 %v603, %v493
  %v636 = vmul.f32 %v604, %v496
  %v637 = vmul.f32 %v605, %v501
  %v638 = vmul.f32 %v606, %v504
  %v639 = vmul.f32 %v607, %v509
  %v640 = vmul.f32 %v608, %v512
  %v641 = vmul.f32 %v609, %v517
  %v642 = vmul.f32 %v610, %v520
  %v643 = vmul.f32 %v611, %v525
  %v644 = vmul.f32 %v612, %v528
  %v645 = vmul.f32 %v613, %v533
  %v646 = vmul.f32 %v614, %v536
  %v647 = vmul.f32 %v615, %v541
  %v648 = vmul.f32 %v616, %v544
  %v649 = vmul.f32 %v617, %v549
  %v650 = vmul.f32 %v618, %v552
  %v651 = vmul.f32 %v619, %v429
  %v652 = vmul.f32 %v620, %v432
  %v653 = vmul.f32 %v621, %v437
  %v654 = vmul.f32 %v622, %v440
  %v655 = vmul.f32 %v623, %v445
  %v656 = vmul.f32 %v624, %v448
  %v657 = vmul.f32 %v625, %v453
  %v658 = vmul.f32 %v626, %v456
  %v659 = vmul.f32 %v627, %v461
  %v660 = vmul.f32 %v628, %v464
  %v661 = vmul.f32 %v629, %v469
  %v662 = vmul.f32 %v630, %v472
  %v663 = vmul.f32 %v631, %v477
  %v664 = vmul.f32 %v632, %v480
  %v665 = vmul.f32 %v633, %v485
  %v666 = vmul.f32 %v634, %v488
  %v667 = vmul.f32 %v635, %v493
  %v668 = vmul.f32 %v636, %v496
  %v669 = vmul.f32 %v637, %v501
  %v670 = vmul.f32 %v638, %v504
  %v671 = vmul.f32 %v639, %v509
  %v672 = vmul.f32 %v640, %v512
  %v673 = vmul.f32 %v641, %v517
  %v674 = vmul.f32 %v642, %v520
  %v675 = vmul.f32 %v643, %v525
  %v676 = vmul.f32 %v644, %v528
  %v677 = vmul.f32 %v645, %v533
  %v678 = vmul.f32 %v646, %v536
  %v679 = vmul.f32 %v647, %v541
  %v680 = vmul.f32 %v648, %v544
  %v681 = vmul.f32 %v649, %v549
  %v682 = vmul.f32 %v650, %v552
  %v683 = vadd.f32 %v429, %v651
  %v684 = vadd.f32 %v432, %v652
  %v685 = vadd.f32 %v437, %v653
  %v686 = vadd.f32 %v440, %v654
  %v687 = vadd.f32 %v445, %v655
  %v688 = vadd.f32 %v448, %v656
  %v689 = vadd.f32 %v453, %v657
  %v690 = vadd.f32 %v456, %v658
  %v691 = vadd.f32 %v461, %v659
  %v692 = vadd.f32 %v464, %v660
  %v693 = vadd.f32 %v469, %v661
  %v694 = vadd.f32 %v472, %v662
  %v695 = vadd.f32 %v477, %v663
  %v696 = vadd.f32 %v480, %v664
  %v697 = vadd.f32 %v485, %v665
  %v698 = vadd.f32 %v488, %v666
  %v699 = vadd.f32 %v493, %v667
  %v700 = vadd.f32 %v496, %v668
  %v701 = vadd.f32 %v501, %v669
  %v702 = vadd.f32 %v504, %v670
  %v703 = vadd.f32 %v509, %v671
  %v704 = vadd.f32 %v512, %v672
  %v705 = vadd.f32 %v517, %v673
  %v706 = vadd.f32 %v520, %v674
  %v707 = vadd.f32 %v525, %v675
  %v708 = vadd.f32 %v528, %v676
  %v709 = vadd.f32 %v533, %v677
  %v710 = vadd.f32 %v536, %v678
  %v711 = vadd.f32 %v541, %v679
  %v712 = vadd.f32 %v544, %v680
  %v713 = vadd.f32 %v549, %v681
  %v714 = vadd.f32 %v552, %v682
  %v715 = vmul.f32 %v683, 0.7978846
  %v716 = vmul.f32 %v684, 0.7978846
  %v717 = vmul.f32 %v685, 0.7978846
  %v718 = vmul.f32 %v686, 0.7978846
  %v719 = vmul.f32 %v687, 0.7978846
  %v720 = vmul.f32 %v688, 0.7978846
  %v721 = vmul.f32 %v689, 0.7978846
  %v722 = vmul.f32 %v690, 0.7978846
  %v723 = vmul.f32 %v691, 0.7978846
  %v724 = vmul.f32 %v692, 0.7978846
  %v725 = vmul.f32 %v693, 0.7978846
  %v726 = vmul.f32 %v694, 0.7978846
  %v727 = vmul.f32 %v695, 0.7978846
  %v728 = vmul.f32 %v696, 0.7978846
  %v729 = vmul.f32 %v697, 0.7978846
  %v730 = vmul.f32 %v698, 0.7978846
  %v731 = vmul.f32 %v699, 0.7978846
  %v732 = vmul.f32 %v700, 0.7978846
  %v733 = vmul.f32 %v701, 0.7978846
  %v734 = vmul.f32 %v702, 0.7978846
  %v735 = vmul.f32 %v703, 0.7978846
  %v736 = vmul.f32 %v704, 0.7978846
  %v737 = vmul.f32 %v705, 0.7978846
  %v738 = vmul.f32 %v706, 0.7978846
  %v739 = vmul.f32 %v707, 0.7978846
  %v740 = vmul.f32 %v708, 0.7978846
  %v741 = vmul.f32 %v709, 0.7978846
  %v742 = vmul.f32 %v710, 0.7978846
  %v743 = vmul.f32 %v711, 0.7978846
  %v744 = vmul.f32 %v712, 0.7978846
  %v745 = vmul.f32 %v713, 0.7978846
  %v746 = vmul.f32 %v714, 0.7978846
  %v747 = vtanh.pop %v715
  %v748 = vtanh.pop %v716
  %v749 = vtanh.pop %v717
  %v750 = vtanh.pop %v718
  %v751 = vtanh.pop %v719
  %v752 = vtanh.pop %v720
  %v753 = vtanh.pop %v721
  %v754 = vtanh.pop %v722
  %v755 = vtanh.pop %v723
  %v756 = vtanh.pop %v724
  %v757 = vtanh.pop %v725
  %v758 = vtanh.pop %v726
  %v759 = vtanh.pop %v727
  %v760 = vtanh.pop %v728
  %v761 = vtanh.pop %v729
  %v762 = vtanh.pop %v730
  %v763 = vtanh.pop %v731
  %v764 = vtanh.pop %v732
  %v765 = vtanh.pop %v733
  %v766 = vtanh.pop %v734
  %v767 = vtanh.pop %v735
  %v768 = vtanh.pop %v736
  %v769 = vtanh.pop %v737
  %v770 = vtanh.pop %v738
  %v771 = vtanh.pop %v739
  %v772 = vtanh.pop %v740
  %v773 = vtanh.pop %v741
  %v774 = vtanh.pop %v742
  %v775 = vtanh.pop %v743
  %v776 = vtanh.pop %v744
  %v777 = vtanh.pop %v745
  %v778 = vtanh.pop %v746
  %v779 = vadd.f32 %v747, 1.0
  %v780 = vadd.f32 %v748, 1.0
  %v781 = vadd.f32 %v749, 1.0
  %v782 = vadd.f32 %v750, 1.0
  %v783 = vadd.f32 %v751, 1.0
  %v784 = vadd.f32 %v752, 1.0
  %v785 = vadd.f32 %v753, 1.0
  %v786 = vadd.f32 %v754, 1.0
  %v787 = vadd.f32 %v755, 1.0
  %v788 = vadd.f32 %v756, 1.0
  %v789 = vadd.f32 %v757, 1.0
  %v790 = vadd.f32 %v758, 1.0
  %v791 = vadd.f32 %v759, 1.0
  %v792 = vadd.f32 %v760, 1.0
  %v793 = vadd.f32 %v761, 1.0
  %v794 = vadd.f32 %v762, 1.0
  %v795 = vadd.f32 %v763, 1.0
  %v796 = vadd.f32 %v764, 1.0
  %v797 = vadd.f32 %v765, 1.0
  %v798 = vadd.f32 %v766, 1.0
  %v799 = vadd.f32 %v767, 1.0
  %v800 = vadd.f32 %v768, 1.0
  %v801 = vadd.f32 %v769, 1.0
  %v802 = vadd.f32 %v770, 1.0
  %v803 = vadd.f32 %v771, 1.0
  %v804 = vadd.f32 %v772, 1.0
  %v805 = vadd.f32 %v773, 1.0
  %v806 = vadd.f32 %v774, 1.0
  %v807 = vadd.f32 %v775, 1.0
  %v808 = vadd.f32 %v776, 1.0
  %v809 = vadd.f32 %v777, 1.0
  %v810 = vadd.f32 %v778, 1.0
  %v811 = vmul.f32 %v555, %v779
  %v812 = vmul.f32 %v556, %v780
  %v813 = vmul.f32 %v557, %v781
  %v814 = vmul.f32 %v558, %v782
  %v815 = vmul.f32 %v559, %v783
  %v816 = vmul.f32 %v560, %v784
  %v817 = vmul.f32 %v561, %v785
  %v818 = vmul.f32 %v562, %v786
  %v819 = vmul.f32 %v563, %v787
  %v820 = vmul.f32 %v564, %v788
  %v821 = vmul.f32 %v565, %v789
  %v822 = vmul.f32 %v566, %v790
  %v823 = vmul.f32 %v567, %v791
  %v824 = vmul.f32 %v568, %v792
  %v825 = vmul.f32 %v569, %v793
  %v826 = vmul.f32 %v570, %v794
  %v827 = vmul.f32 %v571, %v795
  %v828 = vmul.f32 %v572, %v796
  %v829 = vmul.f32 %v573, %v797
  %v830 = vmul.f32 %v574, %v798
  %v831 = vmul.f32 %v575, %v799
  %v832 = vmul.f32 %v576, %v800
  %v833 = vmul.f32 %v577, %v801
  %v834 = vmul.f32 %v578, %v802
  %v835 = vmul.f32 %v579, %v803
  %v836 = vmul.f32 %v580, %v804
  %v837 = vmul.f32 %v581, %v805
  %v838 = vmul.f32 %v582, %v806
  %v839 = vmul.f32 %v583, %v807
  %v840 = vmul.f32 %v584, %v808
  %v841 = vmul.f32 %v585, %v809
  %v842 = vmul.f32 %v586, %v810
  %v843 = vpack.c.bf16 %v812, %v811
  %v844 = vpack.c.bf16 %v814, %v813
  %v845 = vpack.c.bf16 %v816, %v815
  %v846 = vpack.c.bf16 %v818, %v817
  %v847 = vpack.c.bf16 %v820, %v819
  %v848 = vpack.c.bf16 %v822, %v821
  %v849 = vpack.c.bf16 %v824, %v823
  %v850 = vpack.c.bf16 %v826, %v825
  %v851 = vpack.c.bf16 %v828, %v827
  %v852 = vpack.c.bf16 %v830, %v829
  %v853 = vpack.c.bf16 %v832, %v831
  %v854 = vpack.c.bf16 %v834, %v833
  %v855 = vpack.c.bf16 %v836, %v835
  %v856 = vpack.c.bf16 %v838, %v837
  %v857 = vpack.c.bf16 %v840, %v839
  %v858 = vpack.c.bf16 %v842, %v841
  %v875 = vunpack.c.l.b16 %v843
  %v876 = vunpack.c.h.b16 %v843
  %v877 = vunpack.c.l.b16 %v844
  %v878 = vunpack.c.h.b16 %v844
  %v879 = vunpack.c.l.b16 %v845
  %v880 = vunpack.c.h.b16 %v845
  %v881 = vunpack.c.l.b16 %v846
  %v882 = vunpack.c.h.b16 %v846
  %v883 = vunpack.c.l.b16 %v847
  %v884 = vunpack.c.h.b16 %v847
  %v885 = vunpack.c.l.b16 %v848
  %v886 = vunpack.c.h.b16 %v848
  %v887 = vunpack.c.l.b16 %v849
  %v888 = vunpack.c.h.b16 %v849
  %v889 = vunpack.c.l.b16 %v850
  %v890 = vunpack.c.h.b16 %v850
  %v891 = vunpack.c.l.b16 %v851
  %v892 = vunpack.c.h.b16 %v851
  %v893 = vunpack.c.l.b16 %v852
  %v894 = vunpack.c.h.b16 %v852
  %v895 = vunpack.c.l.b16 %v853
  %v896 = vunpack.c.h.b16 %v853
  %v897 = vunpack.c.l.b16 %v854
  %v898 = vunpack.c.h.b16 %v854
  %v899 = vunpack.c.l.b16 %v855
  %v900 = vunpack.c.h.b16 %v855
  %v901 = vunpack.c.l.b16 %v856
  %v902 = vunpack.c.h.b16 %v856
  %v903 = vunpack.c.l.b16 %v857
  %v904 = vunpack.c.h.b16 %v857
  %v905 = vunpack.c.l.b16 %v858
  %v906 = vunpack.c.h.b16 %v858
  %v907 = vpack.c.b16 %v875, %v875
  %v908 = vpack.c.b16 %v876, %v876
  %v909 = vpack.c.b16 %v877, %v877
  %v910 = vpack.c.b16 %v878, %v878
  %v911 = vpack.c.b16 %v879, %v879
  %v912 = vpack.c.b16 %v880, %v880
  %v913 = vpack.c.b16 %v881, %v881
  %v914 = vpack.c.b16 %v882, %v882
  %v915 = vpack.c.b16 %v883, %v883
  %v916 = vpack.c.b16 %v884, %v884
  %v917 = vpack.c.b16 %v885, %v885
  %v918 = vpack.c.b16 %v886, %v886
  %v919 = vpack.c.b16 %v887, %v887
  %v920 = vpack.c.b16 %v888, %v888
  %v921 = vpack.c.b16 %v889, %v889
  %v922 = vpack.c.b16 %v890, %v890
  %v923 = vpack.c.b16 %v891, %v891
  %v924 = vpack.c.b16 %v892, %v892
  %v925 = vpack.c.b16 %v893, %v893
  %v926 = vpack.c.b16 %v894, %v894
  %v927 = vpack.c.b16 %v895, %v895
  %v928 = vpack.c.b16 %v896, %v896
  %v929 = vpack.c.b16 %v897, %v897
  %v930 = vpack.c.b16 %v898, %v898
  %v931 = vpack.c.b16 %v899, %v899
  %v932 = vpack.c.b16 %v900, %v900
  %v933 = vpack.c.b16 %v901, %v901
  %v934 = vpack.c.b16 %v902, %v902
  %v935 = vpack.c.b16 %v903, %v903
  %v936 = vpack.c.b16 %v904, %v904
  %v937 = vpack.c.b16 %v905, %v905
  %v938 = vpack.c.b16 %v906, %v906
  %971 = vst [vmem:[%s7] sm:$0xf] %v907
  %972 = vst [vmem:[%s7 + $0x4] sm:$0xf] %v908
  %973 = vst [vmem:[%s7 + $0x8] sm:$0xf] %v909
  %974 = vst [vmem:[%s7 + $0xc] sm:$0xf] %v910
  %975 = vst [vmem:[%s7 + $0x10] sm:$0xf] %v911
  %976 = vst [vmem:[%s7 + $0x14] sm:$0xf] %v912
  %977 = vst [vmem:[%s7 + $0x18] sm:$0xf] %v913
  %978 = vst [vmem:[%s7 + $0x1c] sm:$0xf] %v914
  %979 = vst [vmem:[%s7 + $0x20] sm:$0xf] %v915
  %980 = vst [vmem:[%s7 + $0x24] sm:$0xf] %v916
  %981 = vst [vmem:[%s7 + $0x28] sm:$0xf] %v917
  %982 = vst [vmem:[%s7 + $0x2c] sm:$0xf] %v918
  %983 = vst [vmem:[%s7 + $0x30] sm:$0xf] %v919
  %984 = vst [vmem:[%s7 + $0x34] sm:$0xf] %v920
  %985 = vst [vmem:[%s7 + $0x38] sm:$0xf] %v921
  %986 = vst [vmem:[%s7 + $0x3c] sm:$0xf] %v922
  %987 = vst [vmem:[%s7 + $0x40] sm:$0xf] %v923
  %988 = vst [vmem:[%s7 + $0x44] sm:$0xf] %v924
  %989 = vst [vmem:[%s7 + $0x48] sm:$0xf] %v925
  %990 = vst [vmem:[%s7 + $0x4c] sm:$0xf] %v926
  %991 = vst [vmem:[%s7 + $0x50] sm:$0xf] %v927
  %992 = vst [vmem:[%s7 + $0x54] sm:$0xf] %v928
  %993 = vst [vmem:[%s7 + $0x58] sm:$0xf] %v929
  %994 = vst [vmem:[%s7 + $0x5c] sm:$0xf] %v930
  %995 = vst [vmem:[%s7 + $0x60] sm:$0xf] %v931
  %996 = vst [vmem:[%s7 + $0x64] sm:$0xf] %v932
  %997 = vst [vmem:[%s7 + $0x68] sm:$0xf] %v933
  %998 = vst [vmem:[%s7 + $0x6c] sm:$0xf] %v934
  %999 = vst [vmem:[%s7 + $0x70] sm:$0xf] %v935
  %1000 = vst [vmem:[%s7 + $0x74] sm:$0xf] %v936
  %1001 = vst [vmem:[%s7 + $0x78] sm:$0xf] %v937
  %1002 = vst [vmem:[%s7 + $0x7c] sm:$0xf] %v938
  %v1003 = vadd.f32 %v811, %v812
  %v1004 = vadd.f32 %v1003, %v813
  %v1005 = vadd.f32 %v1004, %v814
  %v1006 = vadd.f32 %v1005, %v815
  %v1007 = vadd.f32 %v1006, %v816
  %v1008 = vadd.f32 %v1007, %v817
  %v1009 = vadd.f32 %v1008, %v818
  %v1010 = vadd.f32 %v1009, %v819
  %v1011 = vadd.f32 %v1010, %v820
  %v1012 = vadd.f32 %v1011, %v821
  %v1013 = vadd.f32 %v1012, %v822
  %v1014 = vadd.f32 %v1013, %v823
  %v1015 = vadd.f32 %v1014, %v824
  %v1016 = vadd.f32 %v1015, %v825
  %v1017 = vadd.f32 %v1016, %v826
  %v1018 = vadd.f32 %v1017, %v827
  %v1019 = vadd.f32 %v1018, %v828
  %v1020 = vadd.f32 %v1019, %v829
  %v1021 = vadd.f32 %v1020, %v830
  %v1022 = vadd.f32 %v1021, %v831
  %v1023 = vadd.f32 %v1022, %v832
  %v1024 = vadd.f32 %v1023, %v833
  %v1025 = vadd.f32 %v1024, %v834
  %v1026 = vadd.f32 %v1025, %v835
  %v1027 = vadd.f32 %v1026, %v836
  %v1028 = vadd.f32 %v1027, %v837
  %v1029 = vadd.f32 %v1028, %v838
  %v1030 = vadd.f32 %v1029, %v839
  %v1031 = vadd.f32 %v1030, %v840
  %v1032 = vadd.f32 %v1031, %v841
  %v1033 = vadd.f32 %v1032, %v842
  %v1034 = vrot.slane %v1033, 4
  %v1035 = vadd.f32 %v1033, %v1034
  %v1036 = vrot.slane %v1035, 2
  %v1037 = vadd.f32 %v1035, %v1036
  %v1038 = vrot.slane %v1037, 1
  %v1039 = vadd.f32 %v1037, %v1038
  %1040 = vst [vmem:[%s8] sm:$0x1] %v1039
  %v1041 = vmul.f32 %v811, %v811
  %v1042 = vmul.f32 %v812, %v812
  %v1043 = vmul.f32 %v813, %v813
  %v1044 = vmul.f32 %v814, %v814
  %v1045 = vmul.f32 %v815, %v815
  %v1046 = vmul.f32 %v816, %v816
  %v1047 = vmul.f32 %v817, %v817
  %v1048 = vmul.f32 %v818, %v818
  %v1049 = vmul.f32 %v819, %v819
  %v1050 = vmul.f32 %v820, %v820
  %v1051 = vmul.f32 %v821, %v821
  %v1052 = vmul.f32 %v822, %v822
  %v1053 = vmul.f32 %v823, %v823
  %v1054 = vmul.f32 %v824, %v824
  %v1055 = vmul.f32 %v825, %v825
  %v1056 = vmul.f32 %v826, %v826
  %v1057 = vmul.f32 %v827, %v827
  %v1058 = vmul.f32 %v828, %v828
  %v1059 = vmul.f32 %v829, %v829
  %v1060 = vmul.f32 %v830, %v830
  %v1061 = vmul.f32 %v831, %v831
  %v1062 = vmul.f32 %v832, %v832
  %v1063 = vmul.f32 %v833, %v833
  %v1064 = vmul.f32 %v834, %v834
  %v1065 = vmul.f32 %v835, %v835
  %v1066 = vmul.f32 %v836, %v836
  %v1067 = vmul.f32 %v837, %v837
  %v1068 = vmul.f32 %v838, %v838
  %v1069 = vmul.f32 %v839, %v839
  %v1070 = vmul.f32 %v840, %v840
  %v1071 = vmul.f32 %v841, %v841
  %v1072 = vmul.f32 %v842, %v842
  %v1073 = vadd.f32 %v1041, %v1042
  %v1074 = vadd.f32 %v1073, %v1043
  %v1075 = vadd.f32 %v1074, %v1044
  %v1076 = vadd.f32 %v1075, %v1045
  %v1077 = vadd.f32 %v1076, %v1046
  %v1078 = vadd.f32 %v1077, %v1047
  %v1079 = vadd.f32 %v1078, %v1048
  %v1080 = vadd.f32 %v1079, %v1049
  %v1081 = vadd.f32 %v1080, %v1050
  %v1082 = vadd.f32 %v1081, %v1051
  %v1083 = vadd.f32 %v1082, %v1052
  %v1084 = vadd.f32 %v1083, %v1053
  %v1085 = vadd.f32 %v1084, %v1054
  %v1086 = vadd.f32 %v1085, %v1055
  %v1087 = vadd.f32 %v1086, %v1056
  %v1088 = vadd.f32 %v1087, %v1057
  %v1089 = vadd.f32 %v1088, %v1058
  %v1090 = vadd.f32 %v1089, %v1059
  %v1091 = vadd.f32 %v1090, %v1060
  %v1092 = vadd.f32 %v1091, %v1061
  %v1093 = vadd.f32 %v1092, %v1062
  %v1094 = vadd.f32 %v1093, %v1063
  %v1095 = vadd.f32 %v1094, %v1064
  %v1096 = vadd.f32 %v1095, %v1065
  %v1097 = vadd.f32 %v1096, %v1066
  %v1098 = vadd.f32 %v1097, %v1067
  %v1099 = vadd.f32 %v1098, %v1068
  %v1100 = vadd.f32 %v1099, %v1069
  %v1101 = vadd.f32 %v1100, %v1070
  %v1102 = vadd.f32 %v1101, %v1071
  %v1103 = vadd.f32 %v1102, %v1072
  %v1104 = vrot.slane %v1103, 4
  %v1105 = vadd.f32 %v1103, %v1104
  %v1106 = vrot.slane %v1105, 2
  %v1107 = vadd.f32 %v1105, %v1106
  %v1108 = vrot.slane %v1107, 1
  %v1109 = vadd.f32 %v1107, %v1108
  %1110 = vst [vmem:[%s9] sm:$0x1] %v1109
  // Predicated region
  $region30: #{convmixer_adapt_forward.8} parent=0 // pred_check
    _
  $region31: #{convmixer_adapt_forward.8} parent=0 // pred_check_branch
    %1112 = sbr.rel (0) target = $region33
  $region32: #{convmixer_adapt_forward.8} parent=0 // pred_region
    _
  $region33: #{convmixer_adapt_forward.8} parent=0 // pred_fallthru
    _
  // Predicated region
  $region34: #{convmixer_adapt_forward.8} parent=0 // pred_check
    _
  $region35: #{convmixer_adapt_forward.8} parent=0 // pred_check_branch
    %1114 = sbr.rel (0) target = $region37
  $region36: #{convmixer_adapt_forward.8} parent=0 // pred_region
    _
  $region37: #{convmixer_adapt_forward.8} parent=0 // pred_fallthru
    _
  // Predicated region
  $region38: #{convmixer_adapt_forward.8} parent=0 // pred_check
    _
  $region39: #{convmixer_adapt_forward.8} parent=0 // pred_check_branch
    %1116 = sbr.rel (0) target = $region41
  $region40: #{convmixer_adapt_forward.8} parent=0 // pred_region
    _
  $region41: #{convmixer_adapt_forward.8} parent=0 // pred_fallthru
    _
  // Predicated region
  $region42: #{convmixer_adapt_forward.8} parent=0 // pred_check
    _
  $region43: #{convmixer_adapt_forward.8} parent=0 // pred_check_branch
    %1118 = sbr.rel (0) target = $region45
  $region44: #{convmixer_adapt_forward.8} parent=0 // pred_region
    _
  $region45: #{convmixer_adapt_forward.8} parent=0 // pred_fallthru
    _
  // Predicated region
  $region46: #{convmixer_adapt_forward.8} parent=0 // pred_check
    _
  $region47: #{convmixer_adapt_forward.8} parent=0 // pred_check_branch
    %1120 = sbr.rel (0) target = $region49
  $region48: #{convmixer_adapt_forward.8} parent=0 // pred_region
    _
  $region49: #{convmixer_adapt_forward.8} parent=0 // pred_fallthru
    _
  // Predicated region
  $region50: #{convmixer_adapt_forward.8} parent=0 // pred_check
    _
  $region51: #{convmixer_adapt_forward.8} parent=0 // pred_check_branch
    %1122 = sbr.rel (0) target = $region53
  $region52: #{convmixer_adapt_forward.8} parent=0 // pred_region
    _
  $region53: #{convmixer_adapt_forward.8} parent=0 // pred_fallthru
    _

</llo_original>
